<compile_context>
chip_gen: v5e
topology: v5e:2x2
jax: 0.10.0
libtpu: 0.0.40
codegen_flags: <defaults>
</compile_context>

<pallas_src>
import functools

import jax
import jax.numpy as jnp
import numpy as np
from jax.experimental import pallas as pl
from jax.experimental.pallas import tpu as pltpu

OUT_WIDTH = 128  # lane-dense packed output: [critic | actor | hnew | zero pad]


def _elu(x):
    # ELU(alpha=1): x if x > 0 else exp(x) - 1  (matches F.elu)
    return jnp.where(x > 0, x, jnp.exp(x) - 1.0)


def _full_spec(shape):
    nd = len(shape)
    return pl.BlockSpec(shape, lambda i, _nd=nd: (0,) * _nd)


# ---------------------------------------------------------------------------
# In-kernel conv block: Conv2d(3x3, stride 2, pad 1) + ELU as one im2col matmul.
# x4 is spatial-major (S, S, N, Cin) so padding / stride-2 decimation only ever
# touch leading (untiled) dims: no strided loads, no HBM traffic.
# ---------------------------------------------------------------------------
def _conv3x3_s2_elu(x4, w, b):
    """x4: (S, S, N, Cin) value; w: (9*Cin, Cout); b: (1, Cout).
    Returns a 2-D (OH*OW*N, Cout) value with rows ordered (i, j, n)."""
    S = x4.shape[0]
    N = x4.shape[2]
    cin = x4.shape[3]
    OH = OW = S // 2

    # zero-pad the two (outer) spatial dims by 1 via concatenation
    zrow = jnp.zeros((1, S, N, cin), x4.dtype)
    xp = jnp.concatenate([zrow, x4, zrow], axis=0)                 # (S+2, S,   N, Cin)
    zcol = jnp.zeros((S + 2, 1, N, cin), x4.dtype)
    xp = jnp.concatenate([zcol, xp, zcol], axis=1)                 # (S+2, S+2, N, Cin)

    # parity view of the padded input: xp[2q+p, 2r+s] == xr[q, p, r, s]
    # (outer-dim-only reshape: last two tiled dims (N, Cin) are untouched)
    P = (S + 2) // 2
    xr = xp.reshape(P, 2, P, 2, N, cin)

    # im2col: the 9 taps are static contiguous slices; concat along channels.
    taps = []
    for kh in range(3):
        ph, sh = kh % 2, kh // 2
        for kw in range(3):
            pw, sw = kw % 2, kw // 2
            taps.append(xr[sh:sh + OH, ph, sw:sw + OW, pw, :, :])  # (OH, OW, N, Cin)
    patches = jnp.concatenate(taps, axis=-1)                       # (OH, OW, N, 9*Cin)
    im2col = patches.reshape(OH * OW * N, 9 * cin)                 # collapse leading dims

    y = jnp.dot(im2col, w, preferred_element_type=jnp.float32) + b
    return _elu(y)


# ---------------------------------------------------------------------------
# Fused forward kernel: conv trunk + GRUCell + packed heads.
# ---------------------------------------------------------------------------
def _nn_policy_kernel(n_batch, height, width, memsize,
                      x_ref, hx_ref,
                      w1_ref, w2_ref, w3_ref, w4_ref, cb_ref,
                      wi_ref, wh_ref, gb_ref, bhn_ref,
                      wo_ref, bo_ref,
                      out_ref):
    N, M = n_batch, memsize
    H, W = height, width

    cb = cb_ref[...]                                   # (4, 32) packed conv biases

    # ---- conv trunk (activations live entirely in VMEM/vregs) ----
    x = x_ref[...].reshape(H, W, N, x_ref.shape[-1])   # (16, 16, N, Cin0)
    y = _conv3x3_s2_elu(x, w1_ref[...], cb[0:1, :])    # (8*8*N, 32)
    x = y.reshape(H // 2, W // 2, N, y.shape[-1])
    y = _conv3x3_s2_elu(x, w2_ref[...], cb[1:2, :])    # (4*4*N, 32)
    x = y.reshape(H // 4, W // 4, N, y.shape[-1])
    y = _conv3x3_s2_elu(x, w3_ref[...], cb[2:3, :])    # (2*2*N, 32)
    x = y.reshape(H // 8, W // 8, N, y.shape[-1])
    x_gru = _conv3x3_s2_elu(x, w4_ref[...], cb[3:4, :])  # (1*1*N, 32) == (N, 32)

    # ---- GRUCell with packed gate weights ----
    h = hx_ref[...]                                                       # (N, M)
    gi = jnp.dot(x_gru, wi_ref[...], preferred_element_type=jnp.float32)  # (N, 3M)
    gh = jnp.dot(h, wh_ref[...], preferred_element_type=jnp.float32)      # (N, 3M)
    gb = gb_ref[...]                                                      # (1, 3M)

    r = jax.nn.sigmoid(gi[:, 0:M] + gh[:, 0:M] + gb[:, 0:M])
    z = jax.nn.sigmoid(gi[:, M:2 * M] + gh[:, M:2 * M] + gb[:, M:2 * M])
    n = jnp.tanh(gi[:, 2 * M:3 * M] + gb[:, 2 * M:3 * M]
                 + r * (gh[:, 2 * M:3 * M] + bhn_ref[...]))
    hn = (1.0 - z) * n + z * h                                            # (N, M)

    # ---- heads + hidden-state passthrough as one lane-dense matmul ----
    # wo = [critic_w | actor_w | I_M | 0], bo = [critic_b | actor_b | 0 | 0]
    out = jnp.dot(hn, wo_ref[...], preferred_element_type=jnp.float32) + bo_ref[...]
    out_ref[...] = out.astype(out_ref.dtype)


# ---------------------------------------------------------------------------
# Parameter setup / packing and the public forward.
# ---------------------------------------------------------------------------
def init_params(key, channels, memsize, num_actions, h=16, w=16, conv_hidden=32):
    keys = list(jax.random.split(key, 24))
    it = iter(keys)

    def u(k, shape, fan_in):
        bound = 1.0 / np.sqrt(fan_in)
        return jax.random.uniform(k, shape, jnp.float32, -bound, bound)

    p = {}
    cin = channels
    for i in range(1, 5):
        p[f'conv{i}_w'] = u(next(it), (3, 3, cin, conv_hidden), cin * 9)  # HWIO
        p[f'conv{i}_b'] = u(next(it), (conv_hidden,), cin * 9)
        cin = conv_hidden

    gru_in = conv_hidden * (h // 16) * (w // 16)  # == 32*5*5*(w/80)*(h/80)
    for g in ('r', 'z', 'n'):
        p[f'gru_wi{g}'] = u(next(it), (gru_in, memsize), memsize)
        p[f'gru_wh{g}'] = u(next(it), (memsize, memsize), memsize)
        p[f'gru_bi{g}'] = u(next(it), (1, memsize), memsize)
        p[f'gru_bh{g}'] = u(next(it), (1, memsize), memsize)

    p['critic_w'] = u(next(it), (memsize, 1), memsize)
    p['critic_b'] = u(next(it), (1, 1), memsize)
    p['actor_w'] = u(next(it), (memsize, num_actions), memsize)
    p['actor_b'] = u(next(it), (1, num_actions), memsize)
    return p


def pack_params(p):
    """One-time packing of the PyTorch-style params into the fused-kernel layout."""
    M = p['critic_w'].shape[0]
    A = p['actor_w'].shape[1]
    assert 1 + A + M <= OUT_WIDTH

    packed = {}
    for i in range(1, 5):
        w = p[f'conv{i}_w']                                    # (3, 3, Cin, 32) HWIO
        packed[f'w{i}'] = w.reshape(-1, w.shape[-1])           # (9*Cin, 32)
    packed['conv_b'] = jnp.stack([p[f'conv{i}_b'] for i in range(1, 5)], axis=0)  # (4, 32)

    packed['gru_wi'] = jnp.concatenate(
        [p['gru_wir'], p['gru_wiz'], p['gru_win']], axis=1)    # (in, 3M)
    packed['gru_wh'] = jnp.concatenate(
        [p['gru_whr'], p['gru_whz'], p['gru_whn']], axis=1)    # (M, 3M)
    packed['gru_b'] = jnp.concatenate(
        [p['gru_bir'] + p['gru_bhr'],
         p['gru_biz'] + p['gru_bhz'],
         p['gru_bin']], axis=1)                                # (1, 3M)
    packed['gru_bhn'] = p['gru_bhn']                           # (1, M)

    wo = jnp.concatenate([p['critic_w'], p['actor_w'],
                          jnp.eye(M, dtype=jnp.float32)], axis=1)        # (M, 1+A+M)
    bo = jnp.concatenate([p['critic_b'], p['actor_b'],
                          jnp.zeros((1, M), jnp.float32)], axis=1)       # (1, 1+A+M)
    pad = OUT_WIDTH - (1 + A + M)
    packed['head_w'] = jnp.pad(wo, ((0, 0), (0, pad)))         # (M, 128)
    packed['head_b'] = jnp.pad(bo, ((0, 0), (0, pad)))         # (1, 128)
    return packed


def nn_policy_forward(packed, inputs_nhwc, hx, num_actions):
    N, H, W, C = inputs_nhwc.shape
    M = hx.shape[-1]
    A = num_actions

    # single cheap layout transform on the only real HBM activation input:
    # NHWC -> spatial-major 2-D (H*W*N, C)
    x_in = jnp.transpose(inputs_nhwc, (1, 2, 0, 3)).reshape(H * W * N, C)

    args = (x_in, hx,
            packed['w1'], packed['w2'], packed['w3'], packed['w4'], packed['conv_b'],
            packed['gru_wi'], packed['gru_wh'], packed['gru_b'], packed['gru_bhn'],
            packed['head_w'], packed['head_b'])

    # rough cost estimate for XLA's scheduler
    flops, s, cin, act = 0, H, C, 0
    for _ in range(4):
        oh = s // 2
        flops += 2 * (oh * oh * N) * (9 * cin) * 32
        act += oh * oh * N * 32
        s, cin = oh, 32
    flops += 2 * N * cin * 3 * M + 2 * N * M * 3 * M + 2 * N * M * OUT_WIDTH
    trans = act + 3 * N * M
    bytes_accessed = sum(int(np.prod(a.shape)) * 4 for a in args) + N * OUT_WIDTH * 4

    kernel = functools.partial(_nn_policy_kernel, N, H, W, M)
    out = pl.pallas_call(
        kernel,
        out_shape=jax.ShapeDtypeStruct((N, OUT_WIDTH), jnp.float32),
        grid=(1,),
        in_specs=[_full_spec(a.shape) for a in args],
        out_specs=_full_spec((N, OUT_WIDTH)),
        compiler_params=pltpu.CompilerParams(vmem_limit_bytes=32 * 1024 * 1024),
        cost_estimate=pl.CostEstimate(flops=int(flops), transcendentals=int(trans),
                                      bytes_accessed=int(bytes_accessed)),
    )(*args)

    critic = out[:, 0:1]
    actor = out[:, 1:1 + A]
    hnew = out[:, 1 + A:1 + A + M]
    return critic, actor, hnew


# ---------------------------------------------------------------------------
# Pure-JAX reference (uses the unpacked params) for the correctness check.
# ---------------------------------------------------------------------------
def ref_forward(params, inputs_nhwc, hx):
    hp = jax.lax.Precision.HIGHEST
    x = inputs_nhwc
    for i in range(1, 5):
        w = params[f'conv{i}_w']
        b = params[f'conv{i}_b']
        y = jax.lax.conv_general_dilated(
            x, w, window_strides=(2, 2), padding=((1, 1), (1, 1)),
            dimension_numbers=('NHWC', 'HWIO', 'NHWC'), precision=hp)
        x = _elu(y + b.reshape(1, 1, 1, -1))
    N = x.shape[0]
    x_flat = jnp.transpose(x, (0, 3, 1, 2)).reshape(N, -1)

    def mm(a, w):
        return jnp.dot(a, w, precision=hp)

    p = params
    r = jax.nn.sigmoid(mm(x_flat, p['gru_wir']) + p['gru_bir'] + mm(hx, p['gru_whr']) + p['gru_bhr'])
    z = jax.nn.sigmoid(mm(x_flat, p['gru_wiz']) + p['gru_biz'] + mm(hx, p['gru_whz']) + p['gru_bhz'])
    n = jnp.tanh(mm(x_flat, p['gru_win']) + p['gru_bin'] + r * (mm(hx, p['gru_whn']) + p['gru_bhn']))
    hn = (1.0 - z) * n + z * hx
    critic = mm(hn, p['critic_w']) + p['critic_b']
    actor = mm(hn, p['actor_w']) + p['actor_b']
    return critic, actor, hn


if __name__ == "__main__":
    channels, memsize, num_actions = 4, 32, 6
    N, H, W = 2, 16, 16

    key = jax.random.PRNGKey(0)
    kp, kx, kh = jax.random.split(key, 3)
    params = init_params(kp, channels, memsize, num_actions, h=H, w=W)
    packed = jax.tree_util.tree_map(jnp.asarray, pack_params(params))

    x = jax.random.normal(kx, (N, H, W, channels), jnp.float32)   # NHWC of NCHW [2,4,16,16]
    hx = 0.1 * jax.random.normal(kh, (N, memsize), jnp.float32)

    fwd = jax.jit(functools.partial(nn_policy_forward, num_actions=num_actions))
    critic, actor, hnew = fwd(packed, x, hx)
    jax.block_until_ready((critic, actor, hnew))

    rc, ra, rh = ref_forward(params, x, hx)
    np.testing.assert_allclose(np.asarray(critic), np.asarray(rc), rtol=1e-3, atol=1e-3)
    np.testing.assert_allclose(np.asarray(actor), np.asarray(ra), rtol=1e-3, atol=1e-3)
    np.testing.assert_allclose(np.asarray(hnew), np.asarray(rh), rtol=1e-3, atol=1e-3)

    assert critic.shape == (N, 1)
    assert actor.shape == (N, num_actions)
    assert hnew.shape == (N, memsize)
    print("KERNEL_OK")
</pallas_src>

<mosaic_0001>
module attributes {stable_mosaic.version = 11 : i64} {
  func.func @_nn_policy_kernel(%arg0: i32, %arg1: memref<512x4xf32, #tpu.memory_space<vmem>>, %arg2: memref<2x32xf32, #tpu.memory_space<vmem>>, %arg3: memref<36x32xf32, #tpu.memory_space<vmem>>, %arg4: memref<288x32xf32, #tpu.memory_space<vmem>>, %arg5: memref<288x32xf32, #tpu.memory_space<vmem>>, %arg6: memref<288x32xf32, #tpu.memory_space<vmem>>, %arg7: memref<4x32xf32, #tpu.memory_space<vmem>>, %arg8: memref<32x96xf32, #tpu.memory_space<vmem>>, %arg9: memref<32x96xf32, #tpu.memory_space<vmem>>, %arg10: memref<1x96xf32, #tpu.memory_space<vmem>>, %arg11: memref<1x32xf32, #tpu.memory_space<vmem>>, %arg12: memref<32x128xf32, #tpu.memory_space<vmem>>, %arg13: memref<1x128xf32, #tpu.memory_space<vmem>>, %arg14: memref<2x128xf32, #tpu.memory_space<vmem>>) attributes {dimension_semantics = [#tpu.dimension_semantics<arbitrary>], iteration_bounds = array<i64: 1>, scalar_prefetch = 0 : i64, scratch_operands = 0 : i64, tpu.core_type = #tpu.core_type<tc>, window_params = [{pipeline_mode = #tpu.pipeline_mode<synchronous>, transform_indices = @transform_0, window_bounds = array<i64: 512, 4>}, {pipeline_mode = #tpu.pipeline_mode<synchronous>, transform_indices = @transform_1, window_bounds = array<i64: 2, 32>}, {pipeline_mode = #tpu.pipeline_mode<synchronous>, transform_indices = @transform_2, window_bounds = array<i64: 36, 32>}, {pipeline_mode = #tpu.pipeline_mode<synchronous>, transform_indices = @transform_3, window_bounds = array<i64: 288, 32>}, {pipeline_mode = #tpu.pipeline_mode<synchronous>, transform_indices = @transform_4, window_bounds = array<i64: 288, 32>}, {pipeline_mode = #tpu.pipeline_mode<synchronous>, transform_indices = @transform_5, window_bounds = array<i64: 288, 32>}, {pipeline_mode = #tpu.pipeline_mode<synchronous>, transform_indices = @transform_6, window_bounds = array<i64: 4, 32>}, {pipeline_mode = #tpu.pipeline_mode<synchronous>, transform_indices = @transform_7, window_bounds = array<i64: 32, 96>}, {pipeline_mode = #tpu.pipeline_mode<synchronous>, transform_indices = @transform_8, window_bounds = array<i64: 32, 96>}, {pipeline_mode = #tpu.pipeline_mode<synchronous>, transform_indices = @transform_9, window_bounds = array<i64: 1, 96>}, {pipeline_mode = #tpu.pipeline_mode<synchronous>, transform_indices = @transform_10, window_bounds = array<i64: 1, 32>}, {pipeline_mode = #tpu.pipeline_mode<synchronous>, transform_indices = @transform_11, window_bounds = array<i64: 32, 128>}, {pipeline_mode = #tpu.pipeline_mode<synchronous>, transform_indices = @transform_12, window_bounds = array<i64: 1, 128>}, {pipeline_mode = #tpu.pipeline_mode<synchronous>, transform_indices = @transform_13, window_bounds = array<i64: 2, 128>}]} {
    %c0 = arith.constant 0 : index
    %c0_0 = arith.constant 0 : index
    %0 = vector.load %arg7[%c0, %c0_0] : memref<4x32xf32, #tpu.memory_space<vmem>>, vector<4x32xf32>
    %c0_1 = arith.constant 0 : index
    %c0_2 = arith.constant 0 : index
    %1 = vector.load %arg1[%c0_1, %c0_2] : memref<512x4xf32, #tpu.memory_space<vmem>>, vector<512x4xf32>
    %2 = vector.shape_cast %1 : vector<512x4xf32> to vector<16x16x2x4xf32>
    %c0_3 = arith.constant 0 : index
    %c0_4 = arith.constant 0 : index
    %3 = vector.load %arg3[%c0_3, %c0_4] : memref<36x32xf32, #tpu.memory_space<vmem>>, vector<36x32xf32>
    %4 = vector.extract_strided_slice %0 {offsets = [0, 0], sizes = [1, 32], strides = [1, 1]} : vector<4x32xf32> to vector<1x32xf32>
    %cst = arith.constant 0.000000e+00 : f32
    %5 = vector.broadcast %cst : f32 to vector<1x16x2x4xf32>
    %6 = tpu.concatenate %5, %2, %5 in 0 : vector<1x16x2x4xf32>, vector<16x16x2x4xf32>, vector<1x16x2x4xf32> -> vector<18x16x2x4xf32>
    %cst_5 = arith.constant 0.000000e+00 : f32
    %7 = vector.broadcast %cst_5 : f32 to vector<18x1x2x4xf32>
    %8 = tpu.concatenate %7, %6, %7 in 1 : vector<18x1x2x4xf32>, vector<18x16x2x4xf32>, vector<18x1x2x4xf32> -> vector<18x18x2x4xf32>
    %9 = vector.shape_cast %8 : vector<18x18x2x4xf32> to vector<9x2x9x2x2x4xf32>
    %10 = vector.extract_strided_slice %9 {offsets = [0, 0, 0, 0, 0, 0], sizes = [8, 1, 8, 1, 2, 4], strides = [1, 1, 1, 1, 1, 1]} : vector<9x2x9x2x2x4xf32> to vector<8x1x8x1x2x4xf32>
    %11 = vector.shape_cast %10 : vector<8x1x8x1x2x4xf32> to vector<8x8x2x4xf32>
    %12 = vector.extract_strided_slice %9 {offsets = [0, 0, 0, 1, 0, 0], sizes = [8, 1, 8, 1, 2, 4], strides = [1, 1, 1, 1, 1, 1]} : vector<9x2x9x2x2x4xf32> to vector<8x1x8x1x2x4xf32>
    %13 = vector.shape_cast %12 : vector<8x1x8x1x2x4xf32> to vector<8x8x2x4xf32>
    %14 = vector.extract_strided_slice %9 {offsets = [0, 0, 1, 0, 0, 0], sizes = [8, 1, 8, 1, 2, 4], strides = [1, 1, 1, 1, 1, 1]} : vector<9x2x9x2x2x4xf32> to vector<8x1x8x1x2x4xf32>
    %15 = vector.shape_cast %14 : vector<8x1x8x1x2x4xf32> to vector<8x8x2x4xf32>
    %16 = vector.extract_strided_slice %9 {offsets = [0, 1, 0, 0, 0, 0], sizes = [8, 1, 8, 1, 2, 4], strides = [1, 1, 1, 1, 1, 1]} : vector<9x2x9x2x2x4xf32> to vector<8x1x8x1x2x4xf32>
    %17 = vector.shape_cast %16 : vector<8x1x8x1x2x4xf32> to vector<8x8x2x4xf32>
    %18 = vector.extract_strided_slice %9 {offsets = [0, 1, 0, 1, 0, 0], sizes = [8, 1, 8, 1, 2, 4], strides = [1, 1, 1, 1, 1, 1]} : vector<9x2x9x2x2x4xf32> to vector<8x1x8x1x2x4xf32>
    %19 = vector.shape_cast %18 : vector<8x1x8x1x2x4xf32> to vector<8x8x2x4xf32>
    %20 = vector.extract_strided_slice %9 {offsets = [0, 1, 1, 0, 0, 0], sizes = [8, 1, 8, 1, 2, 4], strides = [1, 1, 1, 1, 1, 1]} : vector<9x2x9x2x2x4xf32> to vector<8x1x8x1x2x4xf32>
    %21 = vector.shape_cast %20 : vector<8x1x8x1x2x4xf32> to vector<8x8x2x4xf32>
    %22 = vector.extract_strided_slice %9 {offsets = [1, 0, 0, 0, 0, 0], sizes = [8, 1, 8, 1, 2, 4], strides = [1, 1, 1, 1, 1, 1]} : vector<9x2x9x2x2x4xf32> to vector<8x1x8x1x2x4xf32>
    %23 = vector.shape_cast %22 : vector<8x1x8x1x2x4xf32> to vector<8x8x2x4xf32>
    %24 = vector.extract_strided_slice %9 {offsets = [1, 0, 0, 1, 0, 0], sizes = [8, 1, 8, 1, 2, 4], strides = [1, 1, 1, 1, 1, 1]} : vector<9x2x9x2x2x4xf32> to vector<8x1x8x1x2x4xf32>
    %25 = vector.shape_cast %24 : vector<8x1x8x1x2x4xf32> to vector<8x8x2x4xf32>
    %26 = vector.extract_strided_slice %9 {offsets = [1, 0, 1, 0, 0, 0], sizes = [8, 1, 8, 1, 2, 4], strides = [1, 1, 1, 1, 1, 1]} : vector<9x2x9x2x2x4xf32> to vector<8x1x8x1x2x4xf32>
    %27 = vector.shape_cast %26 : vector<8x1x8x1x2x4xf32> to vector<8x8x2x4xf32>
    %28 = tpu.concatenate %11, %13, %15, %17, %19, %21, %23, %25, %27 in 3 : vector<8x8x2x4xf32>, vector<8x8x2x4xf32>, vector<8x8x2x4xf32>, vector<8x8x2x4xf32>, vector<8x8x2x4xf32>, vector<8x8x2x4xf32>, vector<8x8x2x4xf32>, vector<8x8x2x4xf32>, vector<8x8x2x4xf32> -> vector<8x8x2x36xf32>
    %29 = vector.shape_cast %28 : vector<8x8x2x36xf32> to vector<128x36xf32>
    %cst_6 = arith.constant dense<0.000000e+00> : vector<128x32xf32>
    %30 = tpu.matmul %29, %3, %cst_6 {dimension_numbers = #tpu.dot_dimension_numbers<[1], [0], [0], [1], [0, 0, 1, 1], [], []>} : vector<128x36xf32>, vector<36x32xf32>, vector<128x32xf32> -> vector<128x32xf32>
    %31 = vector.broadcast %4 : vector<1x32xf32> to vector<128x32xf32>
    %32 = arith.addf %30, %31 : vector<128x32xf32>
    %cst_7 = arith.constant 0.000000e+00 : f32
    %33 = vector.broadcast %cst_7 : f32 to vector<128x32xf32>
    %34 = arith.cmpf ogt, %32, %33 : vector<128x32xf32>
    %35 = math.exp %32 : vector<128x32xf32>
    %cst_8 = arith.constant 1.000000e+00 : f32
    %36 = vector.broadcast %cst_8 : f32 to vector<128x32xf32>
    %37 = arith.subf %35, %36 : vector<128x32xf32>
    %38 = arith.select %34, %32, %37 : vector<128x32xi1>, vector<128x32xf32>
    %39 = vector.shape_cast %38 : vector<128x32xf32> to vector<8x8x2x32xf32>
    %c0_9 = arith.constant 0 : index
    %c0_10 = arith.constant 0 : index
    %40 = vector.load %arg4[%c0_9, %c0_10] : memref<288x32xf32, #tpu.memory_space<vmem>>, vector<288x32xf32>
    %41 = vector.extract_strided_slice %0 {offsets = [1, 0], sizes = [1, 32], strides = [1, 1]} : vector<4x32xf32> to vector<1x32xf32>
    %cst_11 = arith.constant 0.000000e+00 : f32
    %42 = vector.broadcast %cst_11 : f32 to vector<1x8x2x32xf32>
    %43 = tpu.concatenate %42, %39, %42 in 0 : vector<1x8x2x32xf32>, vector<8x8x2x32xf32>, vector<1x8x2x32xf32> -> vector<10x8x2x32xf32>
    %cst_12 = arith.constant 0.000000e+00 : f32
    %44 = vector.broadcast %cst_12 : f32 to vector<10x1x2x32xf32>
    %45 = tpu.concatenate %44, %43, %44 in 1 : vector<10x1x2x32xf32>, vector<10x8x2x32xf32>, vector<10x1x2x32xf32> -> vector<10x10x2x32xf32>
    %46 = vector.shape_cast %45 : vector<10x10x2x32xf32> to vector<5x2x5x2x2x32xf32>
    %47 = vector.extract_strided_slice %46 {offsets = [0, 0, 0, 0, 0, 0], sizes = [4, 1, 4, 1, 2, 32], strides = [1, 1, 1, 1, 1, 1]} : vector<5x2x5x2x2x32xf32> to vector<4x1x4x1x2x32xf32>
    %48 = vector.shape_cast %47 : vector<4x1x4x1x2x32xf32> to vector<4x4x2x32xf32>
    %49 = vector.extract_strided_slice %46 {offsets = [0, 0, 0, 1, 0, 0], sizes = [4, 1, 4, 1, 2, 32], strides = [1, 1, 1, 1, 1, 1]} : vector<5x2x5x2x2x32xf32> to vector<4x1x4x1x2x32xf32>
    %50 = vector.shape_cast %49 : vector<4x1x4x1x2x32xf32> to vector<4x4x2x32xf32>
    %51 = vector.extract_strided_slice %46 {offsets = [0, 0, 1, 0, 0, 0], sizes = [4, 1, 4, 1, 2, 32], strides = [1, 1, 1, 1, 1, 1]} : vector<5x2x5x2x2x32xf32> to vector<4x1x4x1x2x32xf32>
    %52 = vector.shape_cast %51 : vector<4x1x4x1x2x32xf32> to vector<4x4x2x32xf32>
    %53 = vector.extract_strided_slice %46 {offsets = [0, 1, 0, 0, 0, 0], sizes = [4, 1, 4, 1, 2, 32], strides = [1, 1, 1, 1, 1, 1]} : vector<5x2x5x2x2x32xf32> to vector<4x1x4x1x2x32xf32>
    %54 = vector.shape_cast %53 : vector<4x1x4x1x2x32xf32> to vector<4x4x2x32xf32>
    %55 = vector.extract_strided_slice %46 {offsets = [0, 1, 0, 1, 0, 0], sizes = [4, 1, 4, 1, 2, 32], strides = [1, 1, 1, 1, 1, 1]} : vector<5x2x5x2x2x32xf32> to vector<4x1x4x1x2x32xf32>
    %56 = vector.shape_cast %55 : vector<4x1x4x1x2x32xf32> to vector<4x4x2x32xf32>
    %57 = vector.extract_strided_slice %46 {offsets = [0, 1, 1, 0, 0, 0], sizes = [4, 1, 4, 1, 2, 32], strides = [1, 1, 1, 1, 1, 1]} : vector<5x2x5x2x2x32xf32> to vector<4x1x4x1x2x32xf32>
    %58 = vector.shape_cast %57 : vector<4x1x4x1x2x32xf32> to vector<4x4x2x32xf32>
    %59 = vector.extract_strided_slice %46 {offsets = [1, 0, 0, 0, 0, 0], sizes = [4, 1, 4, 1, 2, 32], strides = [1, 1, 1, 1, 1, 1]} : vector<5x2x5x2x2x32xf32> to vector<4x1x4x1x2x32xf32>
    %60 = vector.shape_cast %59 : vector<4x1x4x1x2x32xf32> to vector<4x4x2x32xf32>
    %61 = vector.extract_strided_slice %46 {offsets = [1, 0, 0, 1, 0, 0], sizes = [4, 1, 4, 1, 2, 32], strides = [1, 1, 1, 1, 1, 1]} : vector<5x2x5x2x2x32xf32> to vector<4x1x4x1x2x32xf32>
    %62 = vector.shape_cast %61 : vector<4x1x4x1x2x32xf32> to vector<4x4x2x32xf32>
    %63 = vector.extract_strided_slice %46 {offsets = [1, 0, 1, 0, 0, 0], sizes = [4, 1, 4, 1, 2, 32], strides = [1, 1, 1, 1, 1, 1]} : vector<5x2x5x2x2x32xf32> to vector<4x1x4x1x2x32xf32>
    %64 = vector.shape_cast %63 : vector<4x1x4x1x2x32xf32> to vector<4x4x2x32xf32>
    %65 = tpu.concatenate %48, %50, %52, %54, %56, %58, %60, %62, %64 in 3 : vector<4x4x2x32xf32>, vector<4x4x2x32xf32>, vector<4x4x2x32xf32>, vector<4x4x2x32xf32>, vector<4x4x2x32xf32>, vector<4x4x2x32xf32>, vector<4x4x2x32xf32>, vector<4x4x2x32xf32>, vector<4x4x2x32xf32> -> vector<4x4x2x288xf32>
    %66 = vector.shape_cast %65 : vector<4x4x2x288xf32> to vector<32x288xf32>
    %cst_13 = arith.constant dense<0.000000e+00> : vector<32x32xf32>
    %67 = tpu.matmul %66, %40, %cst_13 {dimension_numbers = #tpu.dot_dimension_numbers<[1], [0], [0], [1], [0, 0, 1, 1], [], []>} : vector<32x288xf32>, vector<288x32xf32>, vector<32x32xf32> -> vector<32x32xf32>
    %68 = vector.broadcast %41 : vector<1x32xf32> to vector<32x32xf32>
    %69 = arith.addf %67, %68 : vector<32x32xf32>
    %cst_14 = arith.constant 0.000000e+00 : f32
    %70 = vector.broadcast %cst_14 : f32 to vector<32x32xf32>
    %71 = arith.cmpf ogt, %69, %70 : vector<32x32xf32>
    %72 = math.exp %69 : vector<32x32xf32>
    %cst_15 = arith.constant 1.000000e+00 : f32
    %73 = vector.broadcast %cst_15 : f32 to vector<32x32xf32>
    %74 = arith.subf %72, %73 : vector<32x32xf32>
    %75 = arith.select %71, %69, %74 : vector<32x32xi1>, vector<32x32xf32>
    %76 = vector.shape_cast %75 : vector<32x32xf32> to vector<4x4x2x32xf32>
    %c0_16 = arith.constant 0 : index
    %c0_17 = arith.constant 0 : index
    %77 = vector.load %arg5[%c0_16, %c0_17] : memref<288x32xf32, #tpu.memory_space<vmem>>, vector<288x32xf32>
    %78 = vector.extract_strided_slice %0 {offsets = [2, 0], sizes = [1, 32], strides = [1, 1]} : vector<4x32xf32> to vector<1x32xf32>
    %cst_18 = arith.constant 0.000000e+00 : f32
    %79 = vector.broadcast %cst_18 : f32 to vector<1x4x2x32xf32>
    %80 = tpu.concatenate %79, %76, %79 in 0 : vector<1x4x2x32xf32>, vector<4x4x2x32xf32>, vector<1x4x2x32xf32> -> vector<6x4x2x32xf32>
    %cst_19 = arith.constant 0.000000e+00 : f32
    %81 = vector.broadcast %cst_19 : f32 to vector<6x1x2x32xf32>
    %82 = tpu.concatenate %81, %80, %81 in 1 : vector<6x1x2x32xf32>, vector<6x4x2x32xf32>, vector<6x1x2x32xf32> -> vector<6x6x2x32xf32>
    %83 = vector.shape_cast %82 : vector<6x6x2x32xf32> to vector<3x2x3x2x2x32xf32>
    %84 = vector.extract_strided_slice %83 {offsets = [0, 0, 0, 0, 0, 0], sizes = [2, 1, 2, 1, 2, 32], strides = [1, 1, 1, 1, 1, 1]} : vector<3x2x3x2x2x32xf32> to vector<2x1x2x1x2x32xf32>
    %85 = vector.shape_cast %84 : vector<2x1x2x1x2x32xf32> to vector<2x2x2x32xf32>
    %86 = vector.extract_strided_slice %83 {offsets = [0, 0, 0, 1, 0, 0], sizes = [2, 1, 2, 1, 2, 32], strides = [1, 1, 1, 1, 1, 1]} : vector<3x2x3x2x2x32xf32> to vector<2x1x2x1x2x32xf32>
    %87 = vector.shape_cast %86 : vector<2x1x2x1x2x32xf32> to vector<2x2x2x32xf32>
    %88 = vector.extract_strided_slice %83 {offsets = [0, 0, 1, 0, 0, 0], sizes = [2, 1, 2, 1, 2, 32], strides = [1, 1, 1, 1, 1, 1]} : vector<3x2x3x2x2x32xf32> to vector<2x1x2x1x2x32xf32>
    %89 = vector.shape_cast %88 : vector<2x1x2x1x2x32xf32> to vector<2x2x2x32xf32>
    %90 = vector.extract_strided_slice %83 {offsets = [0, 1, 0, 0, 0, 0], sizes = [2, 1, 2, 1, 2, 32], strides = [1, 1, 1, 1, 1, 1]} : vector<3x2x3x2x2x32xf32> to vector<2x1x2x1x2x32xf32>
    %91 = vector.shape_cast %90 : vector<2x1x2x1x2x32xf32> to vector<2x2x2x32xf32>
    %92 = vector.extract_strided_slice %83 {offsets = [0, 1, 0, 1, 0, 0], sizes = [2, 1, 2, 1, 2, 32], strides = [1, 1, 1, 1, 1, 1]} : vector<3x2x3x2x2x32xf32> to vector<2x1x2x1x2x32xf32>
    %93 = vector.shape_cast %92 : vector<2x1x2x1x2x32xf32> to vector<2x2x2x32xf32>
    %94 = vector.extract_strided_slice %83 {offsets = [0, 1, 1, 0, 0, 0], sizes = [2, 1, 2, 1, 2, 32], strides = [1, 1, 1, 1, 1, 1]} : vector<3x2x3x2x2x32xf32> to vector<2x1x2x1x2x32xf32>
    %95 = vector.shape_cast %94 : vector<2x1x2x1x2x32xf32> to vector<2x2x2x32xf32>
    %96 = vector.extract_strided_slice %83 {offsets = [1, 0, 0, 0, 0, 0], sizes = [2, 1, 2, 1, 2, 32], strides = [1, 1, 1, 1, 1, 1]} : vector<3x2x3x2x2x32xf32> to vector<2x1x2x1x2x32xf32>
    %97 = vector.shape_cast %96 : vector<2x1x2x1x2x32xf32> to vector<2x2x2x32xf32>
    %98 = vector.extract_strided_slice %83 {offsets = [1, 0, 0, 1, 0, 0], sizes = [2, 1, 2, 1, 2, 32], strides = [1, 1, 1, 1, 1, 1]} : vector<3x2x3x2x2x32xf32> to vector<2x1x2x1x2x32xf32>
    %99 = vector.shape_cast %98 : vector<2x1x2x1x2x32xf32> to vector<2x2x2x32xf32>
    %100 = vector.extract_strided_slice %83 {offsets = [1, 0, 1, 0, 0, 0], sizes = [2, 1, 2, 1, 2, 32], strides = [1, 1, 1, 1, 1, 1]} : vector<3x2x3x2x2x32xf32> to vector<2x1x2x1x2x32xf32>
    %101 = vector.shape_cast %100 : vector<2x1x2x1x2x32xf32> to vector<2x2x2x32xf32>
    %102 = tpu.concatenate %85, %87, %89, %91, %93, %95, %97, %99, %101 in 3 : vector<2x2x2x32xf32>, vector<2x2x2x32xf32>, vector<2x2x2x32xf32>, vector<2x2x2x32xf32>, vector<2x2x2x32xf32>, vector<2x2x2x32xf32>, vector<2x2x2x32xf32>, vector<2x2x2x32xf32>, vector<2x2x2x32xf32> -> vector<2x2x2x288xf32>
    %103 = vector.shape_cast %102 : vector<2x2x2x288xf32> to vector<8x288xf32>
    %cst_20 = arith.constant dense<0.000000e+00> : vector<8x32xf32>
    %104 = tpu.matmul %103, %77, %cst_20 {dimension_numbers = #tpu.dot_dimension_numbers<[1], [0], [0], [1], [0, 0, 1, 1], [], []>} : vector<8x288xf32>, vector<288x32xf32>, vector<8x32xf32> -> vector<8x32xf32>
    %105 = vector.broadcast %78 : vector<1x32xf32> to vector<8x32xf32>
    %106 = arith.addf %104, %105 : vector<8x32xf32>
    %cst_21 = arith.constant 0.000000e+00 : f32
    %107 = vector.broadcast %cst_21 : f32 to vector<8x32xf32>
    %108 = arith.cmpf ogt, %106, %107 : vector<8x32xf32>
    %109 = math.exp %106 : vector<8x32xf32>
    %cst_22 = arith.constant 1.000000e+00 : f32
    %110 = vector.broadcast %cst_22 : f32 to vector<8x32xf32>
    %111 = arith.subf %109, %110 : vector<8x32xf32>
    %112 = arith.select %108, %106, %111 : vector<8x32xi1>, vector<8x32xf32>
    %113 = vector.shape_cast %112 : vector<8x32xf32> to vector<2x2x2x32xf32>
    %c0_23 = arith.constant 0 : index
    %c0_24 = arith.constant 0 : index
    %114 = vector.load %arg6[%c0_23, %c0_24] : memref<288x32xf32, #tpu.memory_space<vmem>>, vector<288x32xf32>
    %115 = vector.extract_strided_slice %0 {offsets = [3, 0], sizes = [1, 32], strides = [1, 1]} : vector<4x32xf32> to vector<1x32xf32>
    %cst_25 = arith.constant 0.000000e+00 : f32
    %116 = vector.broadcast %cst_25 : f32 to vector<1x2x2x32xf32>
    %117 = tpu.concatenate %116, %113, %116 in 0 : vector<1x2x2x32xf32>, vector<2x2x2x32xf32>, vector<1x2x2x32xf32> -> vector<4x2x2x32xf32>
    %cst_26 = arith.constant 0.000000e+00 : f32
    %118 = vector.broadcast %cst_26 : f32 to vector<4x1x2x32xf32>
    %119 = tpu.concatenate %118, %117, %118 in 1 : vector<4x1x2x32xf32>, vector<4x2x2x32xf32>, vector<4x1x2x32xf32> -> vector<4x4x2x32xf32>
    %120 = vector.shape_cast %119 : vector<4x4x2x32xf32> to vector<2x2x2x2x2x32xf32>
    %121 = vector.extract_strided_slice %120 {offsets = [0, 0, 0, 0, 0, 0], sizes = [1, 1, 1, 1, 2, 32], strides = [1, 1, 1, 1, 1, 1]} : vector<2x2x2x2x2x32xf32> to vector<1x1x1x1x2x32xf32>
    %122 = vector.shape_cast %121 : vector<1x1x1x1x2x32xf32> to vector<1x1x2x32xf32>
    %123 = vector.extract_strided_slice %120 {offsets = [0, 0, 0, 1, 0, 0], sizes = [1, 1, 1, 1, 2, 32], strides = [1, 1, 1, 1, 1, 1]} : vector<2x2x2x2x2x32xf32> to vector<1x1x1x1x2x32xf32>
    %124 = vector.shape_cast %123 : vector<1x1x1x1x2x32xf32> to vector<1x1x2x32xf32>
    %125 = vector.extract_strided_slice %120 {offsets = [0, 0, 1, 0, 0, 0], sizes = [1, 1, 1, 1, 2, 32], strides = [1, 1, 1, 1, 1, 1]} : vector<2x2x2x2x2x32xf32> to vector<1x1x1x1x2x32xf32>
    %126 = vector.shape_cast %125 : vector<1x1x1x1x2x32xf32> to vector<1x1x2x32xf32>
    %127 = vector.extract_strided_slice %120 {offsets = [0, 1, 0, 0, 0, 0], sizes = [1, 1, 1, 1, 2, 32], strides = [1, 1, 1, 1, 1, 1]} : vector<2x2x2x2x2x32xf32> to vector<1x1x1x1x2x32xf32>
    %128 = vector.shape_cast %127 : vector<1x1x1x1x2x32xf32> to vector<1x1x2x32xf32>
    %129 = vector.extract_strided_slice %120 {offsets = [0, 1, 0, 1, 0, 0], sizes = [1, 1, 1, 1, 2, 32], strides = [1, 1, 1, 1, 1, 1]} : vector<2x2x2x2x2x32xf32> to vector<1x1x1x1x2x32xf32>
    %130 = vector.shape_cast %129 : vector<1x1x1x1x2x32xf32> to vector<1x1x2x32xf32>
    %131 = vector.extract_strided_slice %120 {offsets = [0, 1, 1, 0, 0, 0], sizes = [1, 1, 1, 1, 2, 32], strides = [1, 1, 1, 1, 1, 1]} : vector<2x2x2x2x2x32xf32> to vector<1x1x1x1x2x32xf32>
    %132 = vector.shape_cast %131 : vector<1x1x1x1x2x32xf32> to vector<1x1x2x32xf32>
    %133 = vector.extract_strided_slice %120 {offsets = [1, 0, 0, 0, 0, 0], sizes = [1, 1, 1, 1, 2, 32], strides = [1, 1, 1, 1, 1, 1]} : vector<2x2x2x2x2x32xf32> to vector<1x1x1x1x2x32xf32>
    %134 = vector.shape_cast %133 : vector<1x1x1x1x2x32xf32> to vector<1x1x2x32xf32>
    %135 = vector.extract_strided_slice %120 {offsets = [1, 0, 0, 1, 0, 0], sizes = [1, 1, 1, 1, 2, 32], strides = [1, 1, 1, 1, 1, 1]} : vector<2x2x2x2x2x32xf32> to vector<1x1x1x1x2x32xf32>
    %136 = vector.shape_cast %135 : vector<1x1x1x1x2x32xf32> to vector<1x1x2x32xf32>
    %137 = vector.extract_strided_slice %120 {offsets = [1, 0, 1, 0, 0, 0], sizes = [1, 1, 1, 1, 2, 32], strides = [1, 1, 1, 1, 1, 1]} : vector<2x2x2x2x2x32xf32> to vector<1x1x1x1x2x32xf32>
    %138 = vector.shape_cast %137 : vector<1x1x1x1x2x32xf32> to vector<1x1x2x32xf32>
    %139 = tpu.concatenate %122, %124, %126, %128, %130, %132, %134, %136, %138 in 3 : vector<1x1x2x32xf32>, vector<1x1x2x32xf32>, vector<1x1x2x32xf32>, vector<1x1x2x32xf32>, vector<1x1x2x32xf32>, vector<1x1x2x32xf32>, vector<1x1x2x32xf32>, vector<1x1x2x32xf32>, vector<1x1x2x32xf32> -> vector<1x1x2x288xf32>
    %140 = vector.shape_cast %139 : vector<1x1x2x288xf32> to vector<2x288xf32>
    %cst_27 = arith.constant dense<0.000000e+00> : vector<2x32xf32>
    %141 = tpu.matmul %140, %114, %cst_27 {dimension_numbers = #tpu.dot_dimension_numbers<[1], [0], [0], [1], [0, 0, 1, 1], [], []>} : vector<2x288xf32>, vector<288x32xf32>, vector<2x32xf32> -> vector<2x32xf32>
    %142 = vector.broadcast %115 : vector<1x32xf32> to vector<2x32xf32>
    %143 = arith.addf %141, %142 : vector<2x32xf32>
    %cst_28 = arith.constant 0.000000e+00 : f32
    %144 = vector.broadcast %cst_28 : f32 to vector<2x32xf32>
    %145 = arith.cmpf ogt, %143, %144 : vector<2x32xf32>
    %146 = math.exp %143 : vector<2x32xf32>
    %cst_29 = arith.constant 1.000000e+00 : f32
    %147 = vector.broadcast %cst_29 : f32 to vector<2x32xf32>
    %148 = arith.subf %146, %147 : vector<2x32xf32>
    %149 = arith.select %145, %143, %148 : vector<2x32xi1>, vector<2x32xf32>
    %c0_30 = arith.constant 0 : index
    %c0_31 = arith.constant 0 : index
    %150 = vector.load %arg2[%c0_30, %c0_31] : memref<2x32xf32, #tpu.memory_space<vmem>>, vector<2x32xf32>
    %c0_32 = arith.constant 0 : index
    %c0_33 = arith.constant 0 : index
    %151 = vector.load %arg8[%c0_32, %c0_33] : memref<32x96xf32, #tpu.memory_space<vmem>>, vector<32x96xf32>
    %cst_34 = arith.constant dense<0.000000e+00> : vector<2x96xf32>
    %152 = tpu.matmul %149, %151, %cst_34 {dimension_numbers = #tpu.dot_dimension_numbers<[1], [0], [0], [1], [0, 0, 1, 1], [], []>} : vector<2x32xf32>, vector<32x96xf32>, vector<2x96xf32> -> vector<2x96xf32>
    %c0_35 = arith.constant 0 : index
    %c0_36 = arith.constant 0 : index
    %153 = vector.load %arg9[%c0_35, %c0_36] : memref<32x96xf32, #tpu.memory_space<vmem>>, vector<32x96xf32>
    %cst_37 = arith.constant dense<0.000000e+00> : vector<2x96xf32>
    %154 = tpu.matmul %150, %153, %cst_37 {dimension_numbers = #tpu.dot_dimension_numbers<[1], [0], [0], [1], [0, 0, 1, 1], [], []>} : vector<2x32xf32>, vector<32x96xf32>, vector<2x96xf32> -> vector<2x96xf32>
    %c0_38 = arith.constant 0 : index
    %c0_39 = arith.constant 0 : index
    %155 = vector.load %arg10[%c0_38, %c0_39] : memref<1x96xf32, #tpu.memory_space<vmem>>, vector<1x96xf32>
    %156 = vector.extract_strided_slice %152 {offsets = [0, 0], sizes = [2, 32], strides = [1, 1]} : vector<2x96xf32> to vector<2x32xf32>
    %157 = vector.extract_strided_slice %154 {offsets = [0, 0], sizes = [2, 32], strides = [1, 1]} : vector<2x96xf32> to vector<2x32xf32>
    %158 = arith.addf %156, %157 : vector<2x32xf32>
    %159 = vector.extract_strided_slice %155 {offsets = [0, 0], sizes = [1, 32], strides = [1, 1]} : vector<1x96xf32> to vector<1x32xf32>
    %160 = vector.broadcast %159 : vector<1x32xf32> to vector<2x32xf32>
    %161 = arith.addf %158, %160 : vector<2x32xf32>
    %162 = arith.negf %161 : vector<2x32xf32>
    %163 = math.exp %162 : vector<2x32xf32>
    %cst_40 = arith.constant 1.000000e+00 : f32
    %164 = vector.broadcast %cst_40 : f32 to vector<2x32xf32>
    %165 = arith.addf %164, %163 : vector<2x32xf32>
    %166 = arith.divf %164, %165 : vector<2x32xf32>
    %167 = vector.extract_strided_slice %152 {offsets = [0, 32], sizes = [2, 32], strides = [1, 1]} : vector<2x96xf32> to vector<2x32xf32>
    %168 = vector.extract_strided_slice %154 {offsets = [0, 32], sizes = [2, 32], strides = [1, 1]} : vector<2x96xf32> to vector<2x32xf32>
    %169 = arith.addf %167, %168 : vector<2x32xf32>
    %170 = vector.extract_strided_slice %155 {offsets = [0, 32], sizes = [1, 32], strides = [1, 1]} : vector<1x96xf32> to vector<1x32xf32>
    %171 = vector.broadcast %170 : vector<1x32xf32> to vector<2x32xf32>
    %172 = arith.addf %169, %171 : vector<2x32xf32>
    %173 = arith.negf %172 : vector<2x32xf32>
    %174 = math.exp %173 : vector<2x32xf32>
    %cst_41 = arith.constant 1.000000e+00 : f32
    %175 = vector.broadcast %cst_41 : f32 to vector<2x32xf32>
    %176 = arith.addf %175, %174 : vector<2x32xf32>
    %177 = arith.divf %175, %176 : vector<2x32xf32>
    %178 = vector.extract_strided_slice %152 {offsets = [0, 64], sizes = [2, 32], strides = [1, 1]} : vector<2x96xf32> to vector<2x32xf32>
    %179 = vector.extract_strided_slice %155 {offsets = [0, 64], sizes = [1, 32], strides = [1, 1]} : vector<1x96xf32> to vector<1x32xf32>
    %180 = vector.broadcast %179 : vector<1x32xf32> to vector<2x32xf32>
    %181 = arith.addf %178, %180 : vector<2x32xf32>
    %182 = vector.extract_strided_slice %154 {offsets = [0, 64], sizes = [2, 32], strides = [1, 1]} : vector<2x96xf32> to vector<2x32xf32>
    %c0_42 = arith.constant 0 : index
    %c0_43 = arith.constant 0 : index
    %183 = vector.load %arg11[%c0_42, %c0_43] : memref<1x32xf32, #tpu.memory_space<vmem>>, vector<1x32xf32>
    %184 = vector.broadcast %183 : vector<1x32xf32> to vector<2x32xf32>
    %185 = arith.addf %182, %184 : vector<2x32xf32>
    %186 = arith.mulf %166, %185 : vector<2x32xf32>
    %187 = arith.addf %181, %186 : vector<2x32xf32>
    %188 = math.tanh %187 : vector<2x32xf32>
    %cst_44 = arith.constant 1.000000e+00 : f32
    %189 = vector.broadcast %cst_44 : f32 to vector<2x32xf32>
    %190 = arith.subf %189, %177 : vector<2x32xf32>
    %191 = arith.mulf %190, %188 : vector<2x32xf32>
    %192 = arith.mulf %177, %150 : vector<2x32xf32>
    %193 = arith.addf %191, %192 : vector<2x32xf32>
    %c0_45 = arith.constant 0 : index
    %c0_46 = arith.constant 0 : index
    %194 = vector.load %arg12[%c0_45, %c0_46] : memref<32x128xf32, #tpu.memory_space<vmem>>, vector<32x128xf32>
    %cst_47 = arith.constant dense<0.000000e+00> : vector<2x128xf32>
    %195 = tpu.matmul %193, %194, %cst_47 {dimension_numbers = #tpu.dot_dimension_numbers<[1], [0], [0], [1], [0, 0, 1, 1], [], []>} : vector<2x32xf32>, vector<32x128xf32>, vector<2x128xf32> -> vector<2x128xf32>
    %c0_48 = arith.constant 0 : index
    %c0_49 = arith.constant 0 : index
    %196 = vector.load %arg13[%c0_48, %c0_49] : memref<1x128xf32, #tpu.memory_space<vmem>>, vector<1x128xf32>
    %197 = vector.broadcast %196 : vector<1x128xf32> to vector<2x128xf32>
    %198 = arith.addf %195, %197 : vector<2x128xf32>
    %c0_50 = arith.constant 0 : index
    %c0_51 = arith.constant 0 : index
    %199 = vector.load %arg14[%c0_50, %c0_51] : memref<2x128xf32, #tpu.memory_space<vmem>>, vector<2x128xf32>
    tpu.vector_store %arg14[%c0_50, %c0_51], %198 {strides = array<i32>} : memref<2x128xf32, #tpu.memory_space<vmem>>, vector<2x128xf32>,
    return
  }
  func.func @transform_0(%arg0: i32) -> (i32, i32) {
    %c0_i32 = arith.constant 0 : i32
    %c0_i32_0 = arith.constant 0 : i32
    %c0_i32_1 = arith.constant 0 : i32
    return %c0_i32, %c0_i32_0 : i32, i32
  }
  func.func @transform_1(%arg0: i32) -> (i32, i32) {
    %c0_i32 = arith.constant 0 : i32
    %c0_i32_0 = arith.constant 0 : i32
    %c0_i32_1 = arith.constant 0 : i32
    return %c0_i32, %c0_i32_0 : i32, i32
  }
  func.func @transform_2(%arg0: i32) -> (i32, i32) {
    %c0_i32 = arith.constant 0 : i32
    %c0_i32_0 = arith.constant 0 : i32
    %c0_i32_1 = arith.constant 0 : i32
    return %c0_i32, %c0_i32_0 : i32, i32
  }
  func.func @transform_3(%arg0: i32) -> (i32, i32) {
    %c0_i32 = arith.constant 0 : i32
    %c0_i32_0 = arith.constant 0 : i32
    %c0_i32_1 = arith.constant 0 : i32
    return %c0_i32, %c0_i32_0 : i32, i32
  }
  func.func @transform_4(%arg0: i32) -> (i32, i32) {
    %c0_i32 = arith.constant 0 : i32
    %c0_i32_0 = arith.constant 0 : i32
    %c0_i32_1 = arith.constant 0 : i32
    return %c0_i32, %c0_i32_0 : i32, i32
  }
  func.func @transform_5(%arg0: i32) -> (i32, i32) {
    %c0_i32 = arith.constant 0 : i32
    %c0_i32_0 = arith.constant 0 : i32
    %c0_i32_1 = arith.constant 0 : i32
    return %c0_i32, %c0_i32_0 : i32, i32
  }
  func.func @transform_6(%arg0: i32) -> (i32, i32) {
    %c0_i32 = arith.constant 0 : i32
    %c0_i32_0 = arith.constant 0 : i32
    %c0_i32_1 = arith.constant 0 : i32
    return %c0_i32, %c0_i32_0 : i32, i32
  }
  func.func @transform_7(%arg0: i32) -> (i32, i32) {
    %c0_i32 = arith.constant 0 : i32
    %c0_i32_0 = arith.constant 0 : i32
    %c0_i32_1 = arith.constant 0 : i32
    return %c0_i32, %c0_i32_0 : i32, i32
  }
  func.func @transform_8(%arg0: i32) -> (i32, i32) {
    %c0_i32 = arith.constant 0 : i32
    %c0_i32_0 = arith.constant 0 : i32
    %c0_i32_1 = arith.constant 0 : i32
    return %c0_i32, %c0_i32_0 : i32, i32
  }
  func.func @transform_9(%arg0: i32) -> (i32, i32) {
    %c0_i32 = arith.constant 0 : i32
    %c0_i32_0 = arith.constant 0 : i32
    %c0_i32_1 = arith.constant 0 : i32
    return %c0_i32, %c0_i32_0 : i32, i32
  }
  func.func @transform_10(%arg0: i32) -> (i32, i32) {
    %c0_i32 = arith.constant 0 : i32
    %c0_i32_0 = arith.constant 0 : i32
    %c0_i32_1 = arith.constant 0 : i32
    return %c0_i32, %c0_i32_0 : i32, i32
  }
  func.func @transform_11(%arg0: i32) -> (i32, i32) {
    %c0_i32 = arith.constant 0 : i32
    %c0_i32_0 = arith.constant 0 : i32
    %c0_i32_1 = arith.constant 0 : i32
    return %c0_i32, %c0_i32_0 : i32, i32
  }
  func.func @transform_12(%arg0: i32) -> (i32, i32) {
    %c0_i32 = arith.constant 0 : i32
    %c0_i32_0 = arith.constant 0 : i32
    %c0_i32_1 = arith.constant 0 : i32
    return %c0_i32, %c0_i32_0 : i32, i32
  }
  func.func @transform_13(%arg0: i32) -> (i32, i32) {
    %c0_i32 = arith.constant 0 : i32
    %c0_i32_0 = arith.constant 0 : i32
    %c0_i32_1 = arith.constant 0 : i32
    return %c0_i32, %c0_i32_0 : i32, i32
  }
}

</mosaic_0001>

<llo_original>
// kernel: nn_policy_forward.1
$region0: #{nn_policy_forward.1}
  #allocation0 [shape = 'u32[]', space=smem, size = 0x4, offset = 0x4, fixed_abs, tag = 'smem constant byte address 0x4 - core index']
  #allocation1 [shape = 'u32[72,128]{1,0:T(1,128)}', space=vmem, size = 0x9000, scoped, tag = 'internal scratch']
  %s0 = inlined_call_operand.vmem [shape: f32[512,4], index: 0, kind: input, shape index: {}]
  %s1 = inlined_call_operand.vmem [shape: f32[2,32], index: 1, kind: input, shape index: {}]
  %s2 = inlined_call_operand.vmem [shape: f32[36,32], index: 2, kind: input, shape index: {}]
  %s3 = inlined_call_operand.vmem [shape: f32[288,32], index: 3, kind: input, shape index: {}]
  %s4 = inlined_call_operand.vmem [shape: f32[288,32], index: 4, kind: input, shape index: {}]
  %s5 = inlined_call_operand.vmem [shape: f32[288,32], index: 5, kind: input, shape index: {}]
  %s6 = inlined_call_operand.vmem [shape: f32[4,32], index: 6, kind: input, shape index: {}]
  %s7 = inlined_call_operand.vmem [shape: f32[32,96], index: 7, kind: input, shape index: {}]
  %s8 = inlined_call_operand.vmem [shape: f32[32,96], index: 8, kind: input, shape index: {}]
  %s9 = inlined_call_operand.vmem [shape: f32[1,96], index: 9, kind: input, shape index: {}]
  %s10 = inlined_call_operand.vmem [shape: f32[1,32], index: 10, kind: input, shape index: {}]
  %s11 = inlined_call_operand.vmem [shape: f32[32,128], index: 11, kind: input, shape index: {}]
  %s12 = inlined_call_operand.vmem [shape: f32[1,128], index: 12, kind: input, shape index: {}]
  %s13 = inlined_call_operand.vmem [shape: f32[2,128], index: 13, kind: output, shape index: {}]
  %s14 = sld [smem:[#allocation0]]
  $region62: #{nn_policy_forward.1} parent=0
    _
  %s16 = ssub.s32 1, %s14
  %s17 = scalar_select 0, %s16, %s14
  // Predicated region
  $region2: #{nn_policy_forward.1} parent=0 // pred_check
    _
  $region3: #{nn_policy_forward.1} parent=0 // pred_check_branch
    %19 = sbr.rel (0) target = $region5
  $region4: #{nn_policy_forward.1} parent=0 // pred_region
    _
  $region5: #{nn_policy_forward.1} parent=0 // pred_fallthru
    _
  // Predicated region
  $region6: #{nn_policy_forward.1} parent=0 // pred_check
    _
  $region7: #{nn_policy_forward.1} parent=0 // pred_check_branch
    %21 = sbr.rel (0) target = $region9
  $region8: #{nn_policy_forward.1} parent=0 // pred_region
    _
  $region9: #{nn_policy_forward.1} parent=0 // pred_fallthru
    _
  // Predicated region
  $region10: #{nn_policy_forward.1} parent=0 // pred_check
    _
  $region11: #{nn_policy_forward.1} parent=0 // pred_check_branch
    %23 = sbr.rel (0) target = $region13
  $region12: #{nn_policy_forward.1} parent=0 // pred_region
    _
  $region13: #{nn_policy_forward.1} parent=0 // pred_fallthru
    _
  // Predicated region
  $region14: #{nn_policy_forward.1} parent=0 // pred_check
    _
  $region15: #{nn_policy_forward.1} parent=0 // pred_check_branch
    %25 = sbr.rel (0) target = $region17
  $region16: #{nn_policy_forward.1} parent=0 // pred_region
    _
  $region17: #{nn_policy_forward.1} parent=0 // pred_fallthru
    _
  // Predicated region
  $region18: #{nn_policy_forward.1} parent=0 // pred_check
    _
  $region19: #{nn_policy_forward.1} parent=0 // pred_check_branch
    %27 = sbr.rel (0) target = $region21
  $region20: #{nn_policy_forward.1} parent=0 // pred_region
    _
  $region21: #{nn_policy_forward.1} parent=0 // pred_fallthru
    _
  // Predicated region
  $region22: #{nn_policy_forward.1} parent=0 // pred_check
    _
  $region23: #{nn_policy_forward.1} parent=0 // pred_check_branch
    %29 = sbr.rel (0) target = $region25
  $region24: #{nn_policy_forward.1} parent=0 // pred_region
    _
  $region25: #{nn_policy_forward.1} parent=0 // pred_fallthru
    _
  // Predicated region
  $region26: #{nn_policy_forward.1} parent=0 // pred_check
    _
  $region27: #{nn_policy_forward.1} parent=0 // pred_check_branch
    %31 = sbr.rel (0) target = $region29
  $region28: #{nn_policy_forward.1} parent=0 // pred_region
    _
  $region29: #{nn_policy_forward.1} parent=0 // pred_fallthru
    _
  // Predicated region
  $region30: #{nn_policy_forward.1} parent=0 // pred_check
    _
  $region31: #{nn_policy_forward.1} parent=0 // pred_check_branch
    %33 = sbr.rel (0) target = $region33
  $region32: #{nn_policy_forward.1} parent=0 // pred_region
    _
  $region33: #{nn_policy_forward.1} parent=0 // pred_fallthru
    _
  // Predicated region
  $region34: #{nn_policy_forward.1} parent=0 // pred_check
    _
  $region35: #{nn_policy_forward.1} parent=0 // pred_check_branch
    %35 = sbr.rel (0) target = $region37
  $region36: #{nn_policy_forward.1} parent=0 // pred_region
    _
  $region37: #{nn_policy_forward.1} parent=0 // pred_fallthru
    _
  // Predicated region
  $region38: #{nn_policy_forward.1} parent=0 // pred_check
    _
  $region39: #{nn_policy_forward.1} parent=0 // pred_check_branch
    %37 = sbr.rel (0) target = $region41
  $region40: #{nn_policy_forward.1} parent=0 // pred_region
    _
  $region41: #{nn_policy_forward.1} parent=0 // pred_fallthru
    _
  // Predicated region
  $region42: #{nn_policy_forward.1} parent=0 // pred_check
    _
  $region43: #{nn_policy_forward.1} parent=0 // pred_check_branch
    %39 = sbr.rel (0) target = $region45
  $region44: #{nn_policy_forward.1} parent=0 // pred_region
    _
  $region45: #{nn_policy_forward.1} parent=0 // pred_fallthru
    _
  // Predicated region
  $region46: #{nn_policy_forward.1} parent=0 // pred_check
    _
  $region47: #{nn_policy_forward.1} parent=0 // pred_check_branch
    %41 = sbr.rel (0) target = $region49
  $region48: #{nn_policy_forward.1} parent=0 // pred_region
    _
  $region49: #{nn_policy_forward.1} parent=0 // pred_fallthru
    _
  // Predicated region
  $region50: #{nn_policy_forward.1} parent=0 // pred_check
    _
  $region51: #{nn_policy_forward.1} parent=0 // pred_check_branch
    %43 = sbr.rel (0) target = $region53
  $region52: #{nn_policy_forward.1} parent=0 // pred_region
    _
  $region53: #{nn_policy_forward.1} parent=0 // pred_fallthru
    _
  %v44 = vld [vmem:[%s6] sm:$0xf]
  %v45 = vld [vmem:[%s0] sm:$0xff]
  %v46 = vld [vmem:[%s0 + $0x8] sm:$0xff]
  %v47 = vld [vmem:[%s0 + $0x10] sm:$0xff]
  %v48 = vld [vmem:[%s0 + $0x18] sm:$0xff]
  %v49 = vld [vmem:[%s0 + $0x20] sm:$0xff]
  %v50 = vld [vmem:[%s0 + $0x28] sm:$0xff]
  %v51 = vld [vmem:[%s0 + $0x30] sm:$0xff]
  %v52 = vld [vmem:[%s0 + $0x38] sm:$0xff]
  %v53 = vld [vmem:[%s0 + $0x40] sm:$0xff]
  %v54 = vld [vmem:[%s0 + $0x48] sm:$0xff]
  %v55 = vld [vmem:[%s0 + $0x50] sm:$0xff]
  %v56 = vld [vmem:[%s0 + $0x58] sm:$0xff]
  %v57 = vld [vmem:[%s0 + $0x60] sm:$0xff]
  %v58 = vld [vmem:[%s0 + $0x68] sm:$0xff]
  %v59 = vld [vmem:[%s0 + $0x70] sm:$0xff]
  %v60 = vld [vmem:[%s0 + $0x78] sm:$0xff]
  %v61 = vld [vmem:[%s0 + $0x80] sm:$0xff]
  %v62 = vld [vmem:[%s0 + $0x88] sm:$0xff]
  %v63 = vld [vmem:[%s0 + $0x90] sm:$0xff]
  %v64 = vld [vmem:[%s0 + $0x98] sm:$0xff]
  %v65 = vld [vmem:[%s0 + $0xa0] sm:$0xff]
  %v66 = vld [vmem:[%s0 + $0xa8] sm:$0xff]
  %v67 = vld [vmem:[%s0 + $0xb0] sm:$0xff]
  %v68 = vld [vmem:[%s0 + $0xb8] sm:$0xff]
  %v69 = vld [vmem:[%s0 + $0xc0] sm:$0xff]
  %v70 = vld [vmem:[%s0 + $0xc8] sm:$0xff]
  %v71 = vld [vmem:[%s0 + $0xd0] sm:$0xff]
  %v72 = vld [vmem:[%s0 + $0xd8] sm:$0xff]
  %v73 = vld [vmem:[%s0 + $0xe0] sm:$0xff]
  %v74 = vld [vmem:[%s0 + $0xe8] sm:$0xff]
  %v75 = vld [vmem:[%s0 + $0xf0] sm:$0xff]
  %v76 = vld [vmem:[%s0 + $0xf8] sm:$0xff]
  %v77 = vld [vmem:[%s0 + $0x100] sm:$0xff]
  %v78 = vld [vmem:[%s0 + $0x108] sm:$0xff]
  %v79 = vld [vmem:[%s0 + $0x110] sm:$0xff]
  %v80 = vld [vmem:[%s0 + $0x118] sm:$0xff]
  %v81 = vld [vmem:[%s0 + $0x120] sm:$0xff]
  %v82 = vld [vmem:[%s0 + $0x128] sm:$0xff]
  %v83 = vld [vmem:[%s0 + $0x130] sm:$0xff]
  %v84 = vld [vmem:[%s0 + $0x138] sm:$0xff]
  %v85 = vld [vmem:[%s0 + $0x140] sm:$0xff]
  %v86 = vld [vmem:[%s0 + $0x148] sm:$0xff]
  %v87 = vld [vmem:[%s0 + $0x150] sm:$0xff]
  %v88 = vld [vmem:[%s0 + $0x158] sm:$0xff]
  %v89 = vld [vmem:[%s0 + $0x160] sm:$0xff]
  %v90 = vld [vmem:[%s0 + $0x168] sm:$0xff]
  %v91 = vld [vmem:[%s0 + $0x170] sm:$0xff]
  %v92 = vld [vmem:[%s0 + $0x178] sm:$0xff]
  %v93 = vld [vmem:[%s0 + $0x180] sm:$0xff]
  %v94 = vld [vmem:[%s0 + $0x188] sm:$0xff]
  %v95 = vld [vmem:[%s0 + $0x190] sm:$0xff]
  %v96 = vld [vmem:[%s0 + $0x198] sm:$0xff]
  %v97 = vld [vmem:[%s0 + $0x1a0] sm:$0xff]
  %v98 = vld [vmem:[%s0 + $0x1a8] sm:$0xff]
  %v99 = vld [vmem:[%s0 + $0x1b0] sm:$0xff]
  %v100 = vld [vmem:[%s0 + $0x1b8] sm:$0xff]
  %v101 = vld [vmem:[%s0 + $0x1c0] sm:$0xff]
  %v102 = vld [vmem:[%s0 + $0x1c8] sm:$0xff]
  %v103 = vld [vmem:[%s0 + $0x1d0] sm:$0xff]
  %v104 = vld [vmem:[%s0 + $0x1d8] sm:$0xff]
  %v105 = vld [vmem:[%s0 + $0x1e0] sm:$0xff]
  %v106 = vld [vmem:[%s0 + $0x1e8] sm:$0xff]
  %v107 = vld [vmem:[%s0 + $0x1f0] sm:$0xff]
  %v108 = vld [vmem:[%s0 + $0x1f8] sm:$0xff]
  %v173 = vrot.slane %v45, 2
  %v174 = vrot.slane %v45, 4
  %v175 = vrot.slane %v45, 6
  %v176 = vrot.slane %v46, 2
  %v177 = vrot.slane %v46, 4
  %v178 = vrot.slane %v46, 6
  %v179 = vrot.slane %v47, 2
  %v180 = vrot.slane %v47, 4
  %v181 = vrot.slane %v47, 6
  %v182 = vrot.slane %v48, 2
  %v183 = vrot.slane %v48, 4
  %v184 = vrot.slane %v48, 6
  %v185 = vrot.slane %v49, 2
  %v186 = vrot.slane %v49, 4
  %v187 = vrot.slane %v49, 6
  %v188 = vrot.slane %v50, 2
  %v189 = vrot.slane %v50, 4
  %v190 = vrot.slane %v50, 6
  %v191 = vrot.slane %v51, 2
  %v192 = vrot.slane %v51, 4
  %v193 = vrot.slane %v51, 6
  %v194 = vrot.slane %v52, 2
  %v195 = vrot.slane %v52, 4
  %v196 = vrot.slane %v52, 6
  %v197 = vrot.slane %v53, 2
  %v198 = vrot.slane %v53, 4
  %v199 = vrot.slane %v53, 6
  %v200 = vrot.slane %v54, 2
  %v201 = vrot.slane %v54, 4
  %v202 = vrot.slane %v54, 6
  %v203 = vrot.slane %v55, 2
  %v204 = vrot.slane %v55, 4
  %v205 = vrot.slane %v55, 6
  %v206 = vrot.slane %v56, 2
  %v207 = vrot.slane %v56, 4
  %v208 = vrot.slane %v56, 6
  %v209 = vrot.slane %v57, 2
  %v210 = vrot.slane %v57, 4
  %v211 = vrot.slane %v57, 6
  %v212 = vrot.slane %v58, 2
  %v213 = vrot.slane %v58, 4
  %v214 = vrot.slane %v58, 6
  %v215 = vrot.slane %v59, 2
  %v216 = vrot.slane %v59, 4
  %v217 = vrot.slane %v59, 6
  %v218 = vrot.slane %v60, 2
  %v219 = vrot.slane %v60, 4
  %v220 = vrot.slane %v60, 6
  %v221 = vrot.slane %v61, 2
  %v222 = vrot.slane %v61, 4
  %v223 = vrot.slane %v61, 6
  %v224 = vrot.slane %v62, 2
  %v225 = vrot.slane %v62, 4
  %v226 = vrot.slane %v62, 6
  %v227 = vrot.slane %v63, 2
  %v228 = vrot.slane %v63, 4
  %v229 = vrot.slane %v63, 6
  %v230 = vrot.slane %v64, 2
  %v231 = vrot.slane %v64, 4
  %v232 = vrot.slane %v64, 6
  %v233 = vrot.slane %v65, 2
  %v234 = vrot.slane %v65, 4
  %v235 = vrot.slane %v65, 6
  %v236 = vrot.slane %v66, 2
  %v237 = vrot.slane %v66, 4
  %v238 = vrot.slane %v66, 6
  %v239 = vrot.slane %v67, 2
  %v240 = vrot.slane %v67, 4
  %v241 = vrot.slane %v67, 6
  %v242 = vrot.slane %v68, 2
  %v243 = vrot.slane %v68, 4
  %v244 = vrot.slane %v68, 6
  %v245 = vrot.slane %v69, 2
  %v246 = vrot.slane %v69, 4
  %v247 = vrot.slane %v69, 6
  %v248 = vrot.slane %v70, 2
  %v249 = vrot.slane %v70, 4
  %v250 = vrot.slane %v70, 6
  %v251 = vrot.slane %v71, 2
  %v252 = vrot.slane %v71, 4
  %v253 = vrot.slane %v71, 6
  %v254 = vrot.slane %v72, 2
  %v255 = vrot.slane %v72, 4
  %v256 = vrot.slane %v72, 6
  %v257 = vrot.slane %v73, 2
  %v258 = vrot.slane %v73, 4
  %v259 = vrot.slane %v73, 6
  %v260 = vrot.slane %v74, 2
  %v261 = vrot.slane %v74, 4
  %v262 = vrot.slane %v74, 6
  %v263 = vrot.slane %v75, 2
  %v264 = vrot.slane %v75, 4
  %v265 = vrot.slane %v75, 6
  %v266 = vrot.slane %v76, 2
  %v267 = vrot.slane %v76, 4
  %v268 = vrot.slane %v76, 6
  %v269 = vrot.slane %v77, 2
  %v270 = vrot.slane %v77, 4
  %v271 = vrot.slane %v77, 6
  %v272 = vrot.slane %v78, 2
  %v273 = vrot.slane %v78, 4
  %v274 = vrot.slane %v78, 6
  %v275 = vrot.slane %v79, 2
  %v276 = vrot.slane %v79, 4
  %v277 = vrot.slane %v79, 6
  %v278 = vrot.slane %v80, 2
  %v279 = vrot.slane %v80, 4
  %v280 = vrot.slane %v80, 6
  %v281 = vrot.slane %v81, 2
  %v282 = vrot.slane %v81, 4
  %v283 = vrot.slane %v81, 6
  %v284 = vrot.slane %v82, 2
  %v285 = vrot.slane %v82, 4
  %v286 = vrot.slane %v82, 6
  %v287 = vrot.slane %v83, 2
  %v288 = vrot.slane %v83, 4
  %v289 = vrot.slane %v83, 6
  %v290 = vrot.slane %v84, 2
  %v291 = vrot.slane %v84, 4
  %v292 = vrot.slane %v84, 6
  %v293 = vrot.slane %v85, 2
  %v294 = vrot.slane %v85, 4
  %v295 = vrot.slane %v85, 6
  %v296 = vrot.slane %v86, 2
  %v297 = vrot.slane %v86, 4
  %v298 = vrot.slane %v86, 6
  %v299 = vrot.slane %v87, 2
  %v300 = vrot.slane %v87, 4
  %v301 = vrot.slane %v87, 6
  %v302 = vrot.slane %v88, 2
  %v303 = vrot.slane %v88, 4
  %v304 = vrot.slane %v88, 6
  %v305 = vrot.slane %v89, 2
  %v306 = vrot.slane %v89, 4
  %v307 = vrot.slane %v89, 6
  %v308 = vrot.slane %v90, 2
  %v309 = vrot.slane %v90, 4
  %v310 = vrot.slane %v90, 6
  %v311 = vrot.slane %v91, 2
  %v312 = vrot.slane %v91, 4
  %v313 = vrot.slane %v91, 6
  %v314 = vrot.slane %v92, 2
  %v315 = vrot.slane %v92, 4
  %v316 = vrot.slane %v92, 6
  %v317 = vrot.slane %v93, 2
  %v318 = vrot.slane %v93, 4
  %v319 = vrot.slane %v93, 6
  %v320 = vrot.slane %v94, 2
  %v321 = vrot.slane %v94, 4
  %v322 = vrot.slane %v94, 6
  %v323 = vrot.slane %v95, 2
  %v324 = vrot.slane %v95, 4
  %v325 = vrot.slane %v95, 6
  %v326 = vrot.slane %v96, 2
  %v327 = vrot.slane %v96, 4
  %v328 = vrot.slane %v96, 6
  %v329 = vrot.slane %v97, 2
  %v330 = vrot.slane %v97, 4
  %v331 = vrot.slane %v97, 6
  %v332 = vrot.slane %v98, 2
  %v333 = vrot.slane %v98, 4
  %v334 = vrot.slane %v98, 6
  %v335 = vrot.slane %v99, 2
  %v336 = vrot.slane %v99, 4
  %v337 = vrot.slane %v99, 6
  %v338 = vrot.slane %v100, 2
  %v339 = vrot.slane %v100, 4
  %v340 = vrot.slane %v100, 6
  %v341 = vrot.slane %v101, 2
  %v342 = vrot.slane %v101, 4
  %v343 = vrot.slane %v101, 6
  %v344 = vrot.slane %v102, 2
  %v345 = vrot.slane %v102, 4
  %v346 = vrot.slane %v102, 6
  %v347 = vrot.slane %v103, 2
  %v348 = vrot.slane %v103, 4
  %v349 = vrot.slane %v103, 6
  %v350 = vrot.slane %v104, 2
  %v351 = vrot.slane %v104, 4
  %v352 = vrot.slane %v104, 6
  %v353 = vrot.slane %v105, 2
  %v354 = vrot.slane %v105, 4
  %v355 = vrot.slane %v105, 6
  %v356 = vrot.slane %v106, 2
  %v357 = vrot.slane %v106, 4
  %v358 = vrot.slane %v106, 6
  %v359 = vrot.slane %v107, 2
  %v360 = vrot.slane %v107, 4
  %v361 = vrot.slane %v107, 6
  %v362 = vrot.slane %v108, 2
  %v363 = vrot.slane %v108, 4
  %v364 = vrot.slane %v108, 6
  %v414 = vld [vmem:[%s2] sm:$0xff]
  %v415 = vld [vmem:[%s2 + $0x8] sm:$0xff]
  %v416 = vld [vmem:[%s2 + $0x10] sm:$0xff]
  %v417 = vld [vmem:[%s2 + $0x18] sm:$0xff]
  %v418 = vld [vmem:[%s2 + $0x20] sm:$0xf]
  %420 = vrot.lane.b32.xlu0 0.0, 4
  %v421 = vpop.permute.xlu0 %420
  %422 = vrot.lane.b32.xlu0 %v49, 4
  %v423 = vpop.permute.xlu0 %422
  %424 = vrot.lane.b32.xlu0 %v186, 4
  %v425 = vpop.permute.xlu0 %424
  %426 = vrot.lane.b32.xlu0 %v50, 4
  %v427 = vpop.permute.xlu0 %426
  %428 = vrot.lane.b32.xlu0 %v189, 4
  %v429 = vpop.permute.xlu0 %428
  %430 = vrot.lane.b32.xlu0 %v51, 4
  %v431 = vpop.permute.xlu0 %430
  %432 = vrot.lane.b32.xlu0 %v192, 4
  %v433 = vpop.permute.xlu0 %432
  %434 = vrot.lane.b32.xlu0 %v52, 4
  %v435 = vpop.permute.xlu0 %434
  %436 = vrot.lane.b32.xlu0 %v195, 4
  %v437 = vpop.permute.xlu0 %436
  %438 = vrot.lane.b32.xlu0 %v57, 4
  %v439 = vpop.permute.xlu0 %438
  %440 = vrot.lane.b32.xlu0 %v210, 4
  %v441 = vpop.permute.xlu0 %440
  %442 = vrot.lane.b32.xlu0 %v58, 4
  %v443 = vpop.permute.xlu0 %442
  %444 = vrot.lane.b32.xlu0 %v213, 4
  %v445 = vpop.permute.xlu0 %444
  %446 = vrot.lane.b32.xlu0 %v59, 4
  %v447 = vpop.permute.xlu0 %446
  %448 = vrot.lane.b32.xlu0 %v216, 4
  %v449 = vpop.permute.xlu0 %448
  %450 = vrot.lane.b32.xlu0 %v60, 4
  %v451 = vpop.permute.xlu0 %450
  %452 = vrot.lane.b32.xlu0 %v219, 4
  %v453 = vpop.permute.xlu0 %452
  %454 = vrot.lane.b32.xlu0 %v65, 4
  %v455 = vpop.permute.xlu0 %454
  %456 = vrot.lane.b32.xlu0 %v234, 4
  %v457 = vpop.permute.xlu0 %456
  %458 = vrot.lane.b32.xlu0 %v66, 4
  %v459 = vpop.permute.xlu0 %458
  %460 = vrot.lane.b32.xlu0 %v237, 4
  %v461 = vpop.permute.xlu0 %460
  %462 = vrot.lane.b32.xlu0 %v67, 4
  %v463 = vpop.permute.xlu0 %462
  %464 = vrot.lane.b32.xlu0 %v240, 4
  %v465 = vpop.permute.xlu0 %464
  %466 = vrot.lane.b32.xlu0 %v68, 4
  %v467 = vpop.permute.xlu0 %466
  %468 = vrot.lane.b32.xlu0 %v243, 4
  %v469 = vpop.permute.xlu0 %468
  %470 = vrot.lane.b32.xlu0 %v73, 4
  %v471 = vpop.permute.xlu0 %470
  %472 = vrot.lane.b32.xlu0 %v258, 4
  %v473 = vpop.permute.xlu0 %472
  %474 = vrot.lane.b32.xlu0 %v74, 4
  %v475 = vpop.permute.xlu0 %474
  %476 = vrot.lane.b32.xlu0 %v261, 4
  %v477 = vpop.permute.xlu0 %476
  %478 = vrot.lane.b32.xlu0 %v75, 4
  %v479 = vpop.permute.xlu0 %478
  %480 = vrot.lane.b32.xlu0 %v264, 4
  %v481 = vpop.permute.xlu0 %480
  %482 = vrot.lane.b32.xlu0 %v76, 4
  %v483 = vpop.permute.xlu0 %482
  %484 = vrot.lane.b32.xlu0 %v267, 4
  %v485 = vpop.permute.xlu0 %484
  %486 = vrot.lane.b32.xlu0 %v81, 4
  %v487 = vpop.permute.xlu0 %486
  %488 = vrot.lane.b32.xlu0 %v282, 4
  %v489 = vpop.permute.xlu0 %488
  %490 = vrot.lane.b32.xlu0 %v82, 4
  %v491 = vpop.permute.xlu0 %490
  %492 = vrot.lane.b32.xlu0 %v285, 4
  %v493 = vpop.permute.xlu0 %492
  %494 = vrot.lane.b32.xlu0 %v83, 4
  %v495 = vpop.permute.xlu0 %494
  %496 = vrot.lane.b32.xlu0 %v288, 4
  %v497 = vpop.permute.xlu0 %496
  %498 = vrot.lane.b32.xlu0 %v84, 4
  %v499 = vpop.permute.xlu0 %498
  %500 = vrot.lane.b32.xlu0 %v291, 4
  %v501 = vpop.permute.xlu0 %500
  %502 = vrot.lane.b32.xlu0 %v89, 4
  %v503 = vpop.permute.xlu0 %502
  %504 = vrot.lane.b32.xlu0 %v306, 4
  %v505 = vpop.permute.xlu0 %504
  %506 = vrot.lane.b32.xlu0 %v90, 4
  %v507 = vpop.permute.xlu0 %506
  %508 = vrot.lane.b32.xlu0 %v309, 4
  %v509 = vpop.permute.xlu0 %508
  %510 = vrot.lane.b32.xlu0 %v91, 4
  %v511 = vpop.permute.xlu0 %510
  %512 = vrot.lane.b32.xlu0 %v312, 4
  %v513 = vpop.permute.xlu0 %512
  %514 = vrot.lane.b32.xlu0 %v92, 4
  %v515 = vpop.permute.xlu0 %514
  %516 = vrot.lane.b32.xlu0 %v315, 4
  %v517 = vpop.permute.xlu0 %516
  %518 = vrot.lane.b32.xlu0 %v97, 4
  %v519 = vpop.permute.xlu0 %518
  %520 = vrot.lane.b32.xlu0 %v330, 4
  %v521 = vpop.permute.xlu0 %520
  %522 = vrot.lane.b32.xlu0 %v98, 4
  %v523 = vpop.permute.xlu0 %522
  %524 = vrot.lane.b32.xlu0 %v333, 4
  %v525 = vpop.permute.xlu0 %524
  %526 = vrot.lane.b32.xlu0 %v99, 4
  %v527 = vpop.permute.xlu0 %526
  %528 = vrot.lane.b32.xlu0 %v336, 4
  %v529 = vpop.permute.xlu0 %528
  %530 = vrot.lane.b32.xlu0 %v100, 4
  %v531 = vpop.permute.xlu0 %530
  %532 = vrot.lane.b32.xlu0 %v339, 4
  %v533 = vpop.permute.xlu0 %532
  %591 = vrot.lane.b32.xlu0 0.0, 8
  %v592 = vpop.permute.xlu0 %591
  %593 = vrot.lane.b32.xlu0 %v185, 8
  %v594 = vpop.permute.xlu0 %593
  %595 = vrot.lane.b32.xlu0 %v187, 8
  %v596 = vpop.permute.xlu0 %595
  %597 = vrot.lane.b32.xlu0 %v188, 8
  %v598 = vpop.permute.xlu0 %597
  %599 = vrot.lane.b32.xlu0 %v190, 8
  %v600 = vpop.permute.xlu0 %599
  %601 = vrot.lane.b32.xlu0 %v191, 8
  %v602 = vpop.permute.xlu0 %601
  %603 = vrot.lane.b32.xlu0 %v193, 8
  %v604 = vpop.permute.xlu0 %603
  %605 = vrot.lane.b32.xlu0 %v194, 8
  %v606 = vpop.permute.xlu0 %605
  %607 = vrot.lane.b32.xlu0 %v196, 8
  %v608 = vpop.permute.xlu0 %607
  %609 = vrot.lane.b32.xlu0 %v209, 8
  %v610 = vpop.permute.xlu0 %609
  %611 = vrot.lane.b32.xlu0 %v211, 8
  %v612 = vpop.permute.xlu0 %611
  %613 = vrot.lane.b32.xlu0 %v212, 8
  %v614 = vpop.permute.xlu0 %613
  %615 = vrot.lane.b32.xlu0 %v214, 8
  %v616 = vpop.permute.xlu0 %615
  %617 = vrot.lane.b32.xlu0 %v215, 8
  %v618 = vpop.permute.xlu0 %617
  %619 = vrot.lane.b32.xlu0 %v217, 8
  %v620 = vpop.permute.xlu0 %619
  %621 = vrot.lane.b32.xlu0 %v218, 8
  %v622 = vpop.permute.xlu0 %621
  %623 = vrot.lane.b32.xlu0 %v220, 8
  %v624 = vpop.permute.xlu0 %623
  %625 = vrot.lane.b32.xlu0 %v233, 8
  %v626 = vpop.permute.xlu0 %625
  %627 = vrot.lane.b32.xlu0 %v235, 8
  %v628 = vpop.permute.xlu0 %627
  %629 = vrot.lane.b32.xlu0 %v236, 8
  %v630 = vpop.permute.xlu0 %629
  %631 = vrot.lane.b32.xlu0 %v238, 8
  %v632 = vpop.permute.xlu0 %631
  %633 = vrot.lane.b32.xlu0 %v239, 8
  %v634 = vpop.permute.xlu0 %633
  %635 = vrot.lane.b32.xlu0 %v241, 8
  %v636 = vpop.permute.xlu0 %635
  %637 = vrot.lane.b32.xlu0 %v242, 8
  %v638 = vpop.permute.xlu0 %637
  %639 = vrot.lane.b32.xlu0 %v244, 8
  %v640 = vpop.permute.xlu0 %639
  %641 = vrot.lane.b32.xlu0 %v257, 8
  %v642 = vpop.permute.xlu0 %641
  %643 = vrot.lane.b32.xlu0 %v259, 8
  %v644 = vpop.permute.xlu0 %643
  %645 = vrot.lane.b32.xlu0 %v260, 8
  %v646 = vpop.permute.xlu0 %645
  %647 = vrot.lane.b32.xlu0 %v262, 8
  %v648 = vpop.permute.xlu0 %647
  %649 = vrot.lane.b32.xlu0 %v263, 8
  %v650 = vpop.permute.xlu0 %649
  %651 = vrot.lane.b32.xlu0 %v265, 8
  %v652 = vpop.permute.xlu0 %651
  %653 = vrot.lane.b32.xlu0 %v266, 8
  %v654 = vpop.permute.xlu0 %653
  %655 = vrot.lane.b32.xlu0 %v268, 8
  %v656 = vpop.permute.xlu0 %655
  %657 = vrot.lane.b32.xlu0 %v281, 8
  %v658 = vpop.permute.xlu0 %657
  %659 = vrot.lane.b32.xlu0 %v283, 8
  %v660 = vpop.permute.xlu0 %659
  %661 = vrot.lane.b32.xlu0 %v284, 8
  %v662 = vpop.permute.xlu0 %661
  %663 = vrot.lane.b32.xlu0 %v286, 8
  %v664 = vpop.permute.xlu0 %663
  %665 = vrot.lane.b32.xlu0 %v287, 8
  %v666 = vpop.permute.xlu0 %665
  %667 = vrot.lane.b32.xlu0 %v289, 8
  %v668 = vpop.permute.xlu0 %667
  %669 = vrot.lane.b32.xlu0 %v290, 8
  %v670 = vpop.permute.xlu0 %669
  %671 = vrot.lane.b32.xlu0 %v292, 8
  %v672 = vpop.permute.xlu0 %671
  %673 = vrot.lane.b32.xlu0 %v305, 8
  %v674 = vpop.permute.xlu0 %673
  %675 = vrot.lane.b32.xlu0 %v307, 8
  %v676 = vpop.permute.xlu0 %675
  %677 = vrot.lane.b32.xlu0 %v308, 8
  %v678 = vpop.permute.xlu0 %677
  %679 = vrot.lane.b32.xlu0 %v310, 8
  %v680 = vpop.permute.xlu0 %679
  %681 = vrot.lane.b32.xlu0 %v311, 8
  %v682 = vpop.permute.xlu0 %681
  %683 = vrot.lane.b32.xlu0 %v313, 8
  %v684 = vpop.permute.xlu0 %683
  %685 = vrot.lane.b32.xlu0 %v314, 8
  %v686 = vpop.permute.xlu0 %685
  %687 = vrot.lane.b32.xlu0 %v316, 8
  %v688 = vpop.permute.xlu0 %687
  %689 = vrot.lane.b32.xlu0 %v329, 8
  %v690 = vpop.permute.xlu0 %689
  %691 = vrot.lane.b32.xlu0 %v331, 8
  %v692 = vpop.permute.xlu0 %691
  %693 = vrot.lane.b32.xlu0 %v332, 8
  %v694 = vpop.permute.xlu0 %693
  %695 = vrot.lane.b32.xlu0 %v334, 8
  %v696 = vpop.permute.xlu0 %695
  %697 = vrot.lane.b32.xlu0 %v335, 8
  %v698 = vpop.permute.xlu0 %697
  %699 = vrot.lane.b32.xlu0 %v337, 8
  %v700 = vpop.permute.xlu0 %699
  %701 = vrot.lane.b32.xlu0 %v338, 8
  %v702 = vpop.permute.xlu0 %701
  %703 = vrot.lane.b32.xlu0 %v340, 8
  %v704 = vpop.permute.xlu0 %703
  %762 = vrot.lane.b32.xlu0 0.0, 12
  %v763 = vpop.permute.xlu0 %762
  %764 = vrot.lane.b32.xlu0 %v173, 12
  %v765 = vpop.permute.xlu0 %764
  %766 = vrot.lane.b32.xlu0 %v175, 12
  %v767 = vpop.permute.xlu0 %766
  %768 = vrot.lane.b32.xlu0 %v176, 12
  %v769 = vpop.permute.xlu0 %768
  %770 = vrot.lane.b32.xlu0 %v178, 12
  %v771 = vpop.permute.xlu0 %770
  %772 = vrot.lane.b32.xlu0 %v179, 12
  %v773 = vpop.permute.xlu0 %772
  %774 = vrot.lane.b32.xlu0 %v181, 12
  %v775 = vpop.permute.xlu0 %774
  %776 = vrot.lane.b32.xlu0 %v182, 12
  %v777 = vpop.permute.xlu0 %776
  %778 = vrot.lane.b32.xlu0 %v197, 12
  %v779 = vpop.permute.xlu0 %778
  %780 = vrot.lane.b32.xlu0 %v199, 12
  %v781 = vpop.permute.xlu0 %780
  %782 = vrot.lane.b32.xlu0 %v200, 12
  %v783 = vpop.permute.xlu0 %782
  %784 = vrot.lane.b32.xlu0 %v202, 12
  %v785 = vpop.permute.xlu0 %784
  %786 = vrot.lane.b32.xlu0 %v203, 12
  %v787 = vpop.permute.xlu0 %786
  %788 = vrot.lane.b32.xlu0 %v205, 12
  %v789 = vpop.permute.xlu0 %788
  %790 = vrot.lane.b32.xlu0 %v206, 12
  %v791 = vpop.permute.xlu0 %790
  %792 = vrot.lane.b32.xlu0 %v221, 12
  %v793 = vpop.permute.xlu0 %792
  %794 = vrot.lane.b32.xlu0 %v223, 12
  %v795 = vpop.permute.xlu0 %794
  %796 = vrot.lane.b32.xlu0 %v224, 12
  %v797 = vpop.permute.xlu0 %796
  %798 = vrot.lane.b32.xlu0 %v226, 12
  %v799 = vpop.permute.xlu0 %798
  %800 = vrot.lane.b32.xlu0 %v227, 12
  %v801 = vpop.permute.xlu0 %800
  %802 = vrot.lane.b32.xlu0 %v229, 12
  %v803 = vpop.permute.xlu0 %802
  %804 = vrot.lane.b32.xlu0 %v230, 12
  %v805 = vpop.permute.xlu0 %804
  %806 = vrot.lane.b32.xlu0 %v245, 12
  %v807 = vpop.permute.xlu0 %806
  %808 = vrot.lane.b32.xlu0 %v247, 12
  %v809 = vpop.permute.xlu0 %808
  %810 = vrot.lane.b32.xlu0 %v248, 12
  %v811 = vpop.permute.xlu0 %810
  %812 = vrot.lane.b32.xlu0 %v250, 12
  %v813 = vpop.permute.xlu0 %812
  %814 = vrot.lane.b32.xlu0 %v251, 12
  %v815 = vpop.permute.xlu0 %814
  %816 = vrot.lane.b32.xlu0 %v253, 12
  %v817 = vpop.permute.xlu0 %816
  %818 = vrot.lane.b32.xlu0 %v254, 12
  %v819 = vpop.permute.xlu0 %818
  %820 = vrot.lane.b32.xlu0 %v269, 12
  %v821 = vpop.permute.xlu0 %820
  %822 = vrot.lane.b32.xlu0 %v271, 12
  %v823 = vpop.permute.xlu0 %822
  %824 = vrot.lane.b32.xlu0 %v272, 12
  %v825 = vpop.permute.xlu0 %824
  %826 = vrot.lane.b32.xlu0 %v274, 12
  %v827 = vpop.permute.xlu0 %826
  %828 = vrot.lane.b32.xlu0 %v275, 12
  %v829 = vpop.permute.xlu0 %828
  %830 = vrot.lane.b32.xlu0 %v277, 12
  %v831 = vpop.permute.xlu0 %830
  %832 = vrot.lane.b32.xlu0 %v278, 12
  %v833 = vpop.permute.xlu0 %832
  %834 = vrot.lane.b32.xlu0 %v293, 12
  %v835 = vpop.permute.xlu0 %834
  %836 = vrot.lane.b32.xlu0 %v295, 12
  %v837 = vpop.permute.xlu0 %836
  %838 = vrot.lane.b32.xlu0 %v296, 12
  %v839 = vpop.permute.xlu0 %838
  %840 = vrot.lane.b32.xlu0 %v298, 12
  %v841 = vpop.permute.xlu0 %840
  %842 = vrot.lane.b32.xlu0 %v299, 12
  %v843 = vpop.permute.xlu0 %842
  %844 = vrot.lane.b32.xlu0 %v301, 12
  %v845 = vpop.permute.xlu0 %844
  %846 = vrot.lane.b32.xlu0 %v302, 12
  %v847 = vpop.permute.xlu0 %846
  %848 = vrot.lane.b32.xlu0 %v317, 12
  %v849 = vpop.permute.xlu0 %848
  %850 = vrot.lane.b32.xlu0 %v319, 12
  %v851 = vpop.permute.xlu0 %850
  %852 = vrot.lane.b32.xlu0 %v320, 12
  %v853 = vpop.permute.xlu0 %852
  %854 = vrot.lane.b32.xlu0 %v322, 12
  %v855 = vpop.permute.xlu0 %854
  %856 = vrot.lane.b32.xlu0 %v323, 12
  %v857 = vpop.permute.xlu0 %856
  %858 = vrot.lane.b32.xlu0 %v325, 12
  %v859 = vpop.permute.xlu0 %858
  %860 = vrot.lane.b32.xlu0 %v326, 12
  %v861 = vpop.permute.xlu0 %860
  %862 = vrot.lane.b32.xlu0 %v341, 12
  %v863 = vpop.permute.xlu0 %862
  %864 = vrot.lane.b32.xlu0 %v343, 12
  %v865 = vpop.permute.xlu0 %864
  %866 = vrot.lane.b32.xlu0 %v344, 12
  %v867 = vpop.permute.xlu0 %866
  %868 = vrot.lane.b32.xlu0 %v346, 12
  %v869 = vpop.permute.xlu0 %868
  %870 = vrot.lane.b32.xlu0 %v347, 12
  %v871 = vpop.permute.xlu0 %870
  %872 = vrot.lane.b32.xlu0 %v349, 12
  %v873 = vpop.permute.xlu0 %872
  %874 = vrot.lane.b32.xlu0 %v350, 12
  %v875 = vpop.permute.xlu0 %874
  %933 = vrot.lane.b32.xlu0 %v45, 16
  %v934 = vpop.permute.xlu0 %933
  %935 = vrot.lane.b32.xlu0 %v174, 16
  %v936 = vpop.permute.xlu0 %935
  %937 = vrot.lane.b32.xlu0 %v46, 16
  %v938 = vpop.permute.xlu0 %937
  %939 = vrot.lane.b32.xlu0 %v177, 16
  %v940 = vpop.permute.xlu0 %939
  %941 = vrot.lane.b32.xlu0 %v47, 16
  %v942 = vpop.permute.xlu0 %941
  %943 = vrot.lane.b32.xlu0 %v180, 16
  %v944 = vpop.permute.xlu0 %943
  %945 = vrot.lane.b32.xlu0 %v48, 16
  %v946 = vpop.permute.xlu0 %945
  %947 = vrot.lane.b32.xlu0 %v183, 16
  %v948 = vpop.permute.xlu0 %947
  %949 = vrot.lane.b32.xlu0 %v53, 16
  %v950 = vpop.permute.xlu0 %949
  %951 = vrot.lane.b32.xlu0 %v198, 16
  %v952 = vpop.permute.xlu0 %951
  %953 = vrot.lane.b32.xlu0 %v54, 16
  %v954 = vpop.permute.xlu0 %953
  %955 = vrot.lane.b32.xlu0 %v201, 16
  %v956 = vpop.permute.xlu0 %955
  %957 = vrot.lane.b32.xlu0 %v55, 16
  %v958 = vpop.permute.xlu0 %957
  %959 = vrot.lane.b32.xlu0 %v204, 16
  %v960 = vpop.permute.xlu0 %959
  %961 = vrot.lane.b32.xlu0 %v56, 16
  %v962 = vpop.permute.xlu0 %961
  %963 = vrot.lane.b32.xlu0 %v207, 16
  %v964 = vpop.permute.xlu0 %963
  %965 = vrot.lane.b32.xlu0 %v61, 16
  %v966 = vpop.permute.xlu0 %965
  %967 = vrot.lane.b32.xlu0 %v222, 16
  %v968 = vpop.permute.xlu0 %967
  %969 = vrot.lane.b32.xlu0 %v62, 16
  %v970 = vpop.permute.xlu0 %969
  %971 = vrot.lane.b32.xlu0 %v225, 16
  %v972 = vpop.permute.xlu0 %971
  %973 = vrot.lane.b32.xlu0 %v63, 16
  %v974 = vpop.permute.xlu0 %973
  %975 = vrot.lane.b32.xlu0 %v228, 16
  %v976 = vpop.permute.xlu0 %975
  %977 = vrot.lane.b32.xlu0 %v64, 16
  %v978 = vpop.permute.xlu0 %977
  %979 = vrot.lane.b32.xlu0 %v231, 16
  %v980 = vpop.permute.xlu0 %979
  %981 = vrot.lane.b32.xlu0 %v69, 16
  %v982 = vpop.permute.xlu0 %981
  %983 = vrot.lane.b32.xlu0 %v246, 16
  %v984 = vpop.permute.xlu0 %983
  %985 = vrot.lane.b32.xlu0 %v70, 16
  %v986 = vpop.permute.xlu0 %985
  %987 = vrot.lane.b32.xlu0 %v249, 16
  %v988 = vpop.permute.xlu0 %987
  %989 = vrot.lane.b32.xlu0 %v71, 16
  %v990 = vpop.permute.xlu0 %989
  %991 = vrot.lane.b32.xlu0 %v252, 16
  %v992 = vpop.permute.xlu0 %991
  %993 = vrot.lane.b32.xlu0 %v72, 16
  %v994 = vpop.permute.xlu0 %993
  %995 = vrot.lane.b32.xlu0 %v255, 16
  %v996 = vpop.permute.xlu0 %995
  %997 = vrot.lane.b32.xlu0 %v77, 16
  %v998 = vpop.permute.xlu0 %997
  %999 = vrot.lane.b32.xlu0 %v270, 16
  %v1000 = vpop.permute.xlu0 %999
  %1001 = vrot.lane.b32.xlu0 %v78, 16
  %v1002 = vpop.permute.xlu0 %1001
  %1003 = vrot.lane.b32.xlu0 %v273, 16
  %v1004 = vpop.permute.xlu0 %1003
  %1005 = vrot.lane.b32.xlu0 %v79, 16
  %v1006 = vpop.permute.xlu0 %1005
  %1007 = vrot.lane.b32.xlu0 %v276, 16
  %v1008 = vpop.permute.xlu0 %1007
  %1009 = vrot.lane.b32.xlu0 %v80, 16
  %v1010 = vpop.permute.xlu0 %1009
  %1011 = vrot.lane.b32.xlu0 %v279, 16
  %v1012 = vpop.permute.xlu0 %1011
  %1013 = vrot.lane.b32.xlu0 %v85, 16
  %v1014 = vpop.permute.xlu0 %1013
  %1015 = vrot.lane.b32.xlu0 %v294, 16
  %v1016 = vpop.permute.xlu0 %1015
  %1017 = vrot.lane.b32.xlu0 %v86, 16
  %v1018 = vpop.permute.xlu0 %1017
  %1019 = vrot.lane.b32.xlu0 %v297, 16
  %v1020 = vpop.permute.xlu0 %1019
  %1021 = vrot.lane.b32.xlu0 %v87, 16
  %v1022 = vpop.permute.xlu0 %1021
  %1023 = vrot.lane.b32.xlu0 %v300, 16
  %v1024 = vpop.permute.xlu0 %1023
  %1025 = vrot.lane.b32.xlu0 %v88, 16
  %v1026 = vpop.permute.xlu0 %1025
  %1027 = vrot.lane.b32.xlu0 %v303, 16
  %v1028 = vpop.permute.xlu0 %1027
  %1029 = vrot.lane.b32.xlu0 %v93, 16
  %v1030 = vpop.permute.xlu0 %1029
  %1031 = vrot.lane.b32.xlu0 %v318, 16
  %v1032 = vpop.permute.xlu0 %1031
  %1033 = vrot.lane.b32.xlu0 %v94, 16
  %v1034 = vpop.permute.xlu0 %1033
  %1035 = vrot.lane.b32.xlu0 %v321, 16
  %v1036 = vpop.permute.xlu0 %1035
  %1037 = vrot.lane.b32.xlu0 %v95, 16
  %v1038 = vpop.permute.xlu0 %1037
  %1039 = vrot.lane.b32.xlu0 %v324, 16
  %v1040 = vpop.permute.xlu0 %1039
  %1041 = vrot.lane.b32.xlu0 %v96, 16
  %v1042 = vpop.permute.xlu0 %1041
  %1043 = vrot.lane.b32.xlu0 %v327, 16
  %v1044 = vpop.permute.xlu0 %1043
  %1045 = vrot.lane.b32.xlu0 %v101, 16
  %v1046 = vpop.permute.xlu0 %1045
  %1047 = vrot.lane.b32.xlu0 %v342, 16
  %v1048 = vpop.permute.xlu0 %1047
  %1049 = vrot.lane.b32.xlu0 %v102, 16
  %v1050 = vpop.permute.xlu0 %1049
  %1051 = vrot.lane.b32.xlu0 %v345, 16
  %v1052 = vpop.permute.xlu0 %1051
  %1053 = vrot.lane.b32.xlu0 %v103, 16
  %v1054 = vpop.permute.xlu0 %1053
  %1055 = vrot.lane.b32.xlu0 %v348, 16
  %v1056 = vpop.permute.xlu0 %1055
  %1057 = vrot.lane.b32.xlu0 %v104, 16
  %v1058 = vpop.permute.xlu0 %1057
  %1059 = vrot.lane.b32.xlu0 %v351, 16
  %v1060 = vpop.permute.xlu0 %1059
  %1125 = vrot.lane.b32.xlu0 %v173, 20
  %v1126 = vpop.permute.xlu0 %1125
  %1127 = vrot.lane.b32.xlu0 %v175, 20
  %v1128 = vpop.permute.xlu0 %1127
  %1129 = vrot.lane.b32.xlu0 %v176, 20
  %v1130 = vpop.permute.xlu0 %1129
  %1131 = vrot.lane.b32.xlu0 %v178, 20
  %v1132 = vpop.permute.xlu0 %1131
  %1133 = vrot.lane.b32.xlu0 %v179, 20
  %v1134 = vpop.permute.xlu0 %1133
  %1135 = vrot.lane.b32.xlu0 %v181, 20
  %v1136 = vpop.permute.xlu0 %1135
  %1137 = vrot.lane.b32.xlu0 %v182, 20
  %v1138 = vpop.permute.xlu0 %1137
  %1139 = vrot.lane.b32.xlu0 %v184, 20
  %v1140 = vpop.permute.xlu0 %1139
  %1141 = vrot.lane.b32.xlu0 %v197, 20
  %v1142 = vpop.permute.xlu0 %1141
  %1143 = vrot.lane.b32.xlu0 %v199, 20
  %v1144 = vpop.permute.xlu0 %1143
  %1145 = vrot.lane.b32.xlu0 %v200, 20
  %v1146 = vpop.permute.xlu0 %1145
  %1147 = vrot.lane.b32.xlu0 %v202, 20
  %v1148 = vpop.permute.xlu0 %1147
  %1149 = vrot.lane.b32.xlu0 %v203, 20
  %v1150 = vpop.permute.xlu0 %1149
  %1151 = vrot.lane.b32.xlu0 %v205, 20
  %v1152 = vpop.permute.xlu0 %1151
  %1153 = vrot.lane.b32.xlu0 %v206, 20
  %v1154 = vpop.permute.xlu0 %1153
  %1155 = vrot.lane.b32.xlu0 %v208, 20
  %v1156 = vpop.permute.xlu0 %1155
  %1157 = vrot.lane.b32.xlu0 %v221, 20
  %v1158 = vpop.permute.xlu0 %1157
  %1159 = vrot.lane.b32.xlu0 %v223, 20
  %v1160 = vpop.permute.xlu0 %1159
  %1161 = vrot.lane.b32.xlu0 %v224, 20
  %v1162 = vpop.permute.xlu0 %1161
  %1163 = vrot.lane.b32.xlu0 %v226, 20
  %v1164 = vpop.permute.xlu0 %1163
  %1165 = vrot.lane.b32.xlu0 %v227, 20
  %v1166 = vpop.permute.xlu0 %1165
  %1167 = vrot.lane.b32.xlu0 %v229, 20
  %v1168 = vpop.permute.xlu0 %1167
  %1169 = vrot.lane.b32.xlu0 %v230, 20
  %v1170 = vpop.permute.xlu0 %1169
  %1171 = vrot.lane.b32.xlu0 %v232, 20
  %v1172 = vpop.permute.xlu0 %1171
  %1173 = vrot.lane.b32.xlu0 %v245, 20
  %v1174 = vpop.permute.xlu0 %1173
  %1175 = vrot.lane.b32.xlu0 %v247, 20
  %v1176 = vpop.permute.xlu0 %1175
  %1177 = vrot.lane.b32.xlu0 %v248, 20
  %v1178 = vpop.permute.xlu0 %1177
  %1179 = vrot.lane.b32.xlu0 %v250, 20
  %v1180 = vpop.permute.xlu0 %1179
  %1181 = vrot.lane.b32.xlu0 %v251, 20
  %v1182 = vpop.permute.xlu0 %1181
  %1183 = vrot.lane.b32.xlu0 %v253, 20
  %v1184 = vpop.permute.xlu0 %1183
  %1185 = vrot.lane.b32.xlu0 %v254, 20
  %v1186 = vpop.permute.xlu0 %1185
  %1187 = vrot.lane.b32.xlu0 %v256, 20
  %v1188 = vpop.permute.xlu0 %1187
  %1189 = vrot.lane.b32.xlu0 %v269, 20
  %v1190 = vpop.permute.xlu0 %1189
  %1191 = vrot.lane.b32.xlu0 %v271, 20
  %v1192 = vpop.permute.xlu0 %1191
  %1193 = vrot.lane.b32.xlu0 %v272, 20
  %v1194 = vpop.permute.xlu0 %1193
  %1195 = vrot.lane.b32.xlu0 %v274, 20
  %v1196 = vpop.permute.xlu0 %1195
  %1197 = vrot.lane.b32.xlu0 %v275, 20
  %v1198 = vpop.permute.xlu0 %1197
  %1199 = vrot.lane.b32.xlu0 %v277, 20
  %v1200 = vpop.permute.xlu0 %1199
  %1201 = vrot.lane.b32.xlu0 %v278, 20
  %v1202 = vpop.permute.xlu0 %1201
  %1203 = vrot.lane.b32.xlu0 %v280, 20
  %v1204 = vpop.permute.xlu0 %1203
  %1205 = vrot.lane.b32.xlu0 %v293, 20
  %v1206 = vpop.permute.xlu0 %1205
  %1207 = vrot.lane.b32.xlu0 %v295, 20
  %v1208 = vpop.permute.xlu0 %1207
  %1209 = vrot.lane.b32.xlu0 %v296, 20
  %v1210 = vpop.permute.xlu0 %1209
  %1211 = vrot.lane.b32.xlu0 %v298, 20
  %v1212 = vpop.permute.xlu0 %1211
  %1213 = vrot.lane.b32.xlu0 %v299, 20
  %v1214 = vpop.permute.xlu0 %1213
  %1215 = vrot.lane.b32.xlu0 %v301, 20
  %v1216 = vpop.permute.xlu0 %1215
  %1217 = vrot.lane.b32.xlu0 %v302, 20
  %v1218 = vpop.permute.xlu0 %1217
  %1219 = vrot.lane.b32.xlu0 %v304, 20
  %v1220 = vpop.permute.xlu0 %1219
  %1221 = vrot.lane.b32.xlu0 %v317, 20
  %v1222 = vpop.permute.xlu0 %1221
  %1223 = vrot.lane.b32.xlu0 %v319, 20
  %v1224 = vpop.permute.xlu0 %1223
  %1225 = vrot.lane.b32.xlu0 %v320, 20
  %v1226 = vpop.permute.xlu0 %1225
  %1227 = vrot.lane.b32.xlu0 %v322, 20
  %v1228 = vpop.permute.xlu0 %1227
  %1229 = vrot.lane.b32.xlu0 %v323, 20
  %v1230 = vpop.permute.xlu0 %1229
  %1231 = vrot.lane.b32.xlu0 %v325, 20
  %v1232 = vpop.permute.xlu0 %1231
  %1233 = vrot.lane.b32.xlu0 %v326, 20
  %v1234 = vpop.permute.xlu0 %1233
  %1235 = vrot.lane.b32.xlu0 %v328, 20
  %v1236 = vpop.permute.xlu0 %1235
  %1237 = vrot.lane.b32.xlu0 %v341, 20
  %v1238 = vpop.permute.xlu0 %1237
  %1239 = vrot.lane.b32.xlu0 %v343, 20
  %v1240 = vpop.permute.xlu0 %1239
  %1241 = vrot.lane.b32.xlu0 %v344, 20
  %v1242 = vpop.permute.xlu0 %1241
  %1243 = vrot.lane.b32.xlu0 %v346, 20
  %v1244 = vpop.permute.xlu0 %1243
  %1245 = vrot.lane.b32.xlu0 %v347, 20
  %v1246 = vpop.permute.xlu0 %1245
  %1247 = vrot.lane.b32.xlu0 %v349, 20
  %v1248 = vpop.permute.xlu0 %1247
  %1249 = vrot.lane.b32.xlu0 %v350, 20
  %v1250 = vpop.permute.xlu0 %1249
  %1251 = vrot.lane.b32.xlu0 %v352, 20
  %v1252 = vpop.permute.xlu0 %1251
  %1317 = vrot.lane.b32.xlu0 0.0, 24
  %v1318 = vpop.permute.xlu0 %1317
  %1319 = vrot.lane.b32.xlu0 %v185, 24
  %v1320 = vpop.permute.xlu0 %1319
  %1321 = vrot.lane.b32.xlu0 %v187, 24
  %v1322 = vpop.permute.xlu0 %1321
  %1323 = vrot.lane.b32.xlu0 %v188, 24
  %v1324 = vpop.permute.xlu0 %1323
  %1325 = vrot.lane.b32.xlu0 %v190, 24
  %v1326 = vpop.permute.xlu0 %1325
  %1327 = vrot.lane.b32.xlu0 %v191, 24
  %v1328 = vpop.permute.xlu0 %1327
  %1329 = vrot.lane.b32.xlu0 %v193, 24
  %v1330 = vpop.permute.xlu0 %1329
  %1331 = vrot.lane.b32.xlu0 %v194, 24
  %v1332 = vpop.permute.xlu0 %1331
  %1333 = vrot.lane.b32.xlu0 %v209, 24
  %v1334 = vpop.permute.xlu0 %1333
  %1335 = vrot.lane.b32.xlu0 %v211, 24
  %v1336 = vpop.permute.xlu0 %1335
  %1337 = vrot.lane.b32.xlu0 %v212, 24
  %v1338 = vpop.permute.xlu0 %1337
  %1339 = vrot.lane.b32.xlu0 %v214, 24
  %v1340 = vpop.permute.xlu0 %1339
  %1341 = vrot.lane.b32.xlu0 %v215, 24
  %v1342 = vpop.permute.xlu0 %1341
  %1343 = vrot.lane.b32.xlu0 %v217, 24
  %v1344 = vpop.permute.xlu0 %1343
  %1345 = vrot.lane.b32.xlu0 %v218, 24
  %v1346 = vpop.permute.xlu0 %1345
  %1347 = vrot.lane.b32.xlu0 %v233, 24
  %v1348 = vpop.permute.xlu0 %1347
  %1349 = vrot.lane.b32.xlu0 %v235, 24
  %v1350 = vpop.permute.xlu0 %1349
  %1351 = vrot.lane.b32.xlu0 %v236, 24
  %v1352 = vpop.permute.xlu0 %1351
  %1353 = vrot.lane.b32.xlu0 %v238, 24
  %v1354 = vpop.permute.xlu0 %1353
  %1355 = vrot.lane.b32.xlu0 %v239, 24
  %v1356 = vpop.permute.xlu0 %1355
  %1357 = vrot.lane.b32.xlu0 %v241, 24
  %v1358 = vpop.permute.xlu0 %1357
  %1359 = vrot.lane.b32.xlu0 %v242, 24
  %v1360 = vpop.permute.xlu0 %1359
  %1361 = vrot.lane.b32.xlu0 %v257, 24
  %v1362 = vpop.permute.xlu0 %1361
  %1363 = vrot.lane.b32.xlu0 %v259, 24
  %v1364 = vpop.permute.xlu0 %1363
  %1365 = vrot.lane.b32.xlu0 %v260, 24
  %v1366 = vpop.permute.xlu0 %1365
  %1367 = vrot.lane.b32.xlu0 %v262, 24
  %v1368 = vpop.permute.xlu0 %1367
  %1369 = vrot.lane.b32.xlu0 %v263, 24
  %v1370 = vpop.permute.xlu0 %1369
  %1371 = vrot.lane.b32.xlu0 %v265, 24
  %v1372 = vpop.permute.xlu0 %1371
  %1373 = vrot.lane.b32.xlu0 %v266, 24
  %v1374 = vpop.permute.xlu0 %1373
  %1375 = vrot.lane.b32.xlu0 %v281, 24
  %v1376 = vpop.permute.xlu0 %1375
  %1377 = vrot.lane.b32.xlu0 %v283, 24
  %v1378 = vpop.permute.xlu0 %1377
  %1379 = vrot.lane.b32.xlu0 %v284, 24
  %v1380 = vpop.permute.xlu0 %1379
  %1381 = vrot.lane.b32.xlu0 %v286, 24
  %v1382 = vpop.permute.xlu0 %1381
  %1383 = vrot.lane.b32.xlu0 %v287, 24
  %v1384 = vpop.permute.xlu0 %1383
  %1385 = vrot.lane.b32.xlu0 %v289, 24
  %v1386 = vpop.permute.xlu0 %1385
  %1387 = vrot.lane.b32.xlu0 %v290, 24
  %v1388 = vpop.permute.xlu0 %1387
  %1389 = vrot.lane.b32.xlu0 %v305, 24
  %v1390 = vpop.permute.xlu0 %1389
  %1391 = vrot.lane.b32.xlu0 %v307, 24
  %v1392 = vpop.permute.xlu0 %1391
  %1393 = vrot.lane.b32.xlu0 %v308, 24
  %v1394 = vpop.permute.xlu0 %1393
  %1395 = vrot.lane.b32.xlu0 %v310, 24
  %v1396 = vpop.permute.xlu0 %1395
  %1397 = vrot.lane.b32.xlu0 %v311, 24
  %v1398 = vpop.permute.xlu0 %1397
  %1399 = vrot.lane.b32.xlu0 %v313, 24
  %v1400 = vpop.permute.xlu0 %1399
  %1401 = vrot.lane.b32.xlu0 %v314, 24
  %v1402 = vpop.permute.xlu0 %1401
  %1403 = vrot.lane.b32.xlu0 %v329, 24
  %v1404 = vpop.permute.xlu0 %1403
  %1405 = vrot.lane.b32.xlu0 %v331, 24
  %v1406 = vpop.permute.xlu0 %1405
  %1407 = vrot.lane.b32.xlu0 %v332, 24
  %v1408 = vpop.permute.xlu0 %1407
  %1409 = vrot.lane.b32.xlu0 %v334, 24
  %v1410 = vpop.permute.xlu0 %1409
  %1411 = vrot.lane.b32.xlu0 %v335, 24
  %v1412 = vpop.permute.xlu0 %1411
  %1413 = vrot.lane.b32.xlu0 %v337, 24
  %v1414 = vpop.permute.xlu0 %1413
  %1415 = vrot.lane.b32.xlu0 %v338, 24
  %v1416 = vpop.permute.xlu0 %1415
  %1417 = vrot.lane.b32.xlu0 %v353, 24
  %v1418 = vpop.permute.xlu0 %1417
  %1419 = vrot.lane.b32.xlu0 %v355, 24
  %v1420 = vpop.permute.xlu0 %1419
  %1421 = vrot.lane.b32.xlu0 %v356, 24
  %v1422 = vpop.permute.xlu0 %1421
  %1423 = vrot.lane.b32.xlu0 %v358, 24
  %v1424 = vpop.permute.xlu0 %1423
  %1425 = vrot.lane.b32.xlu0 %v359, 24
  %v1426 = vpop.permute.xlu0 %1425
  %1427 = vrot.lane.b32.xlu0 %v361, 24
  %v1428 = vpop.permute.xlu0 %1427
  %1429 = vrot.lane.b32.xlu0 %v362, 24
  %v1430 = vpop.permute.xlu0 %1429
  %1488 = vrot.lane.b32.xlu0 %v49, 28
  %v1489 = vpop.permute.xlu0 %1488
  %1490 = vrot.lane.b32.xlu0 %v186, 28
  %v1491 = vpop.permute.xlu0 %1490
  %1492 = vrot.lane.b32.xlu0 %v50, 28
  %v1493 = vpop.permute.xlu0 %1492
  %1494 = vrot.lane.b32.xlu0 %v189, 28
  %v1495 = vpop.permute.xlu0 %1494
  %1496 = vrot.lane.b32.xlu0 %v51, 28
  %v1497 = vpop.permute.xlu0 %1496
  %1498 = vrot.lane.b32.xlu0 %v192, 28
  %v1499 = vpop.permute.xlu0 %1498
  %1500 = vrot.lane.b32.xlu0 %v52, 28
  %v1501 = vpop.permute.xlu0 %1500
  %1502 = vrot.lane.b32.xlu0 %v195, 28
  %v1503 = vpop.permute.xlu0 %1502
  %1504 = vrot.lane.b32.xlu0 %v57, 28
  %v1505 = vpop.permute.xlu0 %1504
  %1506 = vrot.lane.b32.xlu0 %v210, 28
  %v1507 = vpop.permute.xlu0 %1506
  %1508 = vrot.lane.b32.xlu0 %v58, 28
  %v1509 = vpop.permute.xlu0 %1508
  %1510 = vrot.lane.b32.xlu0 %v213, 28
  %v1511 = vpop.permute.xlu0 %1510
  %1512 = vrot.lane.b32.xlu0 %v59, 28
  %v1513 = vpop.permute.xlu0 %1512
  %1514 = vrot.lane.b32.xlu0 %v216, 28
  %v1515 = vpop.permute.xlu0 %1514
  %1516 = vrot.lane.b32.xlu0 %v60, 28
  %v1517 = vpop.permute.xlu0 %1516
  %1518 = vrot.lane.b32.xlu0 %v219, 28
  %v1519 = vpop.permute.xlu0 %1518
  %1520 = vrot.lane.b32.xlu0 %v65, 28
  %v1521 = vpop.permute.xlu0 %1520
  %1522 = vrot.lane.b32.xlu0 %v234, 28
  %v1523 = vpop.permute.xlu0 %1522
  %1524 = vrot.lane.b32.xlu0 %v66, 28
  %v1525 = vpop.permute.xlu0 %1524
  %1526 = vrot.lane.b32.xlu0 %v237, 28
  %v1527 = vpop.permute.xlu0 %1526
  %1528 = vrot.lane.b32.xlu0 %v67, 28
  %v1529 = vpop.permute.xlu0 %1528
  %1530 = vrot.lane.b32.xlu0 %v240, 28
  %v1531 = vpop.permute.xlu0 %1530
  %1532 = vrot.lane.b32.xlu0 %v68, 28
  %v1533 = vpop.permute.xlu0 %1532
  %1534 = vrot.lane.b32.xlu0 %v243, 28
  %v1535 = vpop.permute.xlu0 %1534
  %1536 = vrot.lane.b32.xlu0 %v73, 28
  %v1537 = vpop.permute.xlu0 %1536
  %1538 = vrot.lane.b32.xlu0 %v258, 28
  %v1539 = vpop.permute.xlu0 %1538
  %1540 = vrot.lane.b32.xlu0 %v74, 28
  %v1541 = vpop.permute.xlu0 %1540
  %1542 = vrot.lane.b32.xlu0 %v261, 28
  %v1543 = vpop.permute.xlu0 %1542
  %1544 = vrot.lane.b32.xlu0 %v75, 28
  %v1545 = vpop.permute.xlu0 %1544
  %1546 = vrot.lane.b32.xlu0 %v264, 28
  %v1547 = vpop.permute.xlu0 %1546
  %1548 = vrot.lane.b32.xlu0 %v76, 28
  %v1549 = vpop.permute.xlu0 %1548
  %1550 = vrot.lane.b32.xlu0 %v267, 28
  %v1551 = vpop.permute.xlu0 %1550
  %1552 = vrot.lane.b32.xlu0 %v81, 28
  %v1553 = vpop.permute.xlu0 %1552
  %1554 = vrot.lane.b32.xlu0 %v282, 28
  %v1555 = vpop.permute.xlu0 %1554
  %1556 = vrot.lane.b32.xlu0 %v82, 28
  %v1557 = vpop.permute.xlu0 %1556
  %1558 = vrot.lane.b32.xlu0 %v285, 28
  %v1559 = vpop.permute.xlu0 %1558
  %1560 = vrot.lane.b32.xlu0 %v83, 28
  %v1561 = vpop.permute.xlu0 %1560
  %1562 = vrot.lane.b32.xlu0 %v288, 28
  %v1563 = vpop.permute.xlu0 %1562
  %1564 = vrot.lane.b32.xlu0 %v84, 28
  %v1565 = vpop.permute.xlu0 %1564
  %1566 = vrot.lane.b32.xlu0 %v291, 28
  %v1567 = vpop.permute.xlu0 %1566
  %1568 = vrot.lane.b32.xlu0 %v89, 28
  %v1569 = vpop.permute.xlu0 %1568
  %1570 = vrot.lane.b32.xlu0 %v306, 28
  %v1571 = vpop.permute.xlu0 %1570
  %1572 = vrot.lane.b32.xlu0 %v90, 28
  %v1573 = vpop.permute.xlu0 %1572
  %1574 = vrot.lane.b32.xlu0 %v309, 28
  %v1575 = vpop.permute.xlu0 %1574
  %1576 = vrot.lane.b32.xlu0 %v91, 28
  %v1577 = vpop.permute.xlu0 %1576
  %1578 = vrot.lane.b32.xlu0 %v312, 28
  %v1579 = vpop.permute.xlu0 %1578
  %1580 = vrot.lane.b32.xlu0 %v92, 28
  %v1581 = vpop.permute.xlu0 %1580
  %1582 = vrot.lane.b32.xlu0 %v315, 28
  %v1583 = vpop.permute.xlu0 %1582
  %1584 = vrot.lane.b32.xlu0 %v97, 28
  %v1585 = vpop.permute.xlu0 %1584
  %1586 = vrot.lane.b32.xlu0 %v330, 28
  %v1587 = vpop.permute.xlu0 %1586
  %1588 = vrot.lane.b32.xlu0 %v98, 28
  %v1589 = vpop.permute.xlu0 %1588
  %1590 = vrot.lane.b32.xlu0 %v333, 28
  %v1591 = vpop.permute.xlu0 %1590
  %1592 = vrot.lane.b32.xlu0 %v99, 28
  %v1593 = vpop.permute.xlu0 %1592
  %1594 = vrot.lane.b32.xlu0 %v336, 28
  %v1595 = vpop.permute.xlu0 %1594
  %1596 = vrot.lane.b32.xlu0 %v100, 28
  %v1597 = vpop.permute.xlu0 %1596
  %1598 = vrot.lane.b32.xlu0 %v339, 28
  %v1599 = vpop.permute.xlu0 %1598
  %1600 = vrot.lane.b32.xlu0 %v105, 28
  %v1601 = vpop.permute.xlu0 %1600
  %1602 = vrot.lane.b32.xlu0 %v354, 28
  %v1603 = vpop.permute.xlu0 %1602
  %1604 = vrot.lane.b32.xlu0 %v106, 28
  %v1605 = vpop.permute.xlu0 %1604
  %1606 = vrot.lane.b32.xlu0 %v357, 28
  %v1607 = vpop.permute.xlu0 %1606
  %1608 = vrot.lane.b32.xlu0 %v107, 28
  %v1609 = vpop.permute.xlu0 %1608
  %1610 = vrot.lane.b32.xlu0 %v360, 28
  %v1611 = vpop.permute.xlu0 %1610
  %1612 = vrot.lane.b32.xlu0 %v108, 28
  %v1613 = vpop.permute.xlu0 %1612
  %1614 = vrot.lane.b32.xlu0 %v363, 28
  %v1615 = vpop.permute.xlu0 %1614
  %1680 = vrot.lane.b32.xlu0 %v185, 32
  %v1681 = vpop.permute.xlu0 %1680
  %1682 = vrot.lane.b32.xlu0 %v187, 32
  %v1683 = vpop.permute.xlu0 %1682
  %1684 = vrot.lane.b32.xlu0 %v188, 32
  %v1685 = vpop.permute.xlu0 %1684
  %1686 = vrot.lane.b32.xlu0 %v190, 32
  %v1687 = vpop.permute.xlu0 %1686
  %1688 = vrot.lane.b32.xlu0 %v191, 32
  %v1689 = vpop.permute.xlu0 %1688
  %1690 = vrot.lane.b32.xlu0 %v193, 32
  %v1691 = vpop.permute.xlu0 %1690
  %1692 = vrot.lane.b32.xlu0 %v194, 32
  %v1693 = vpop.permute.xlu0 %1692
  %1694 = vrot.lane.b32.xlu0 %v196, 32
  %v1695 = vpop.permute.xlu0 %1694
  %1696 = vrot.lane.b32.xlu0 %v209, 32
  %v1697 = vpop.permute.xlu0 %1696
  %1698 = vrot.lane.b32.xlu0 %v211, 32
  %v1699 = vpop.permute.xlu0 %1698
  %1700 = vrot.lane.b32.xlu0 %v212, 32
  %v1701 = vpop.permute.xlu0 %1700
  %1702 = vrot.lane.b32.xlu0 %v214, 32
  %v1703 = vpop.permute.xlu0 %1702
  %1704 = vrot.lane.b32.xlu0 %v215, 32
  %v1705 = vpop.permute.xlu0 %1704
  %1706 = vrot.lane.b32.xlu0 %v217, 32
  %v1707 = vpop.permute.xlu0 %1706
  %1708 = vrot.lane.b32.xlu0 %v218, 32
  %v1709 = vpop.permute.xlu0 %1708
  %1710 = vrot.lane.b32.xlu0 %v220, 32
  %v1711 = vpop.permute.xlu0 %1710
  %1712 = vrot.lane.b32.xlu0 %v233, 32
  %v1713 = vpop.permute.xlu0 %1712
  %1714 = vrot.lane.b32.xlu0 %v235, 32
  %v1715 = vpop.permute.xlu0 %1714
  %1716 = vrot.lane.b32.xlu0 %v236, 32
  %v1717 = vpop.permute.xlu0 %1716
  %1718 = vrot.lane.b32.xlu0 %v238, 32
  %v1719 = vpop.permute.xlu0 %1718
  %1720 = vrot.lane.b32.xlu0 %v239, 32
  %v1721 = vpop.permute.xlu0 %1720
  %1722 = vrot.lane.b32.xlu0 %v241, 32
  %v1723 = vpop.permute.xlu0 %1722
  %1724 = vrot.lane.b32.xlu0 %v242, 32
  %v1725 = vpop.permute.xlu0 %1724
  %1726 = vrot.lane.b32.xlu0 %v244, 32
  %v1727 = vpop.permute.xlu0 %1726
  %1728 = vrot.lane.b32.xlu0 %v257, 32
  %v1729 = vpop.permute.xlu0 %1728
  %1730 = vrot.lane.b32.xlu0 %v259, 32
  %v1731 = vpop.permute.xlu0 %1730
  %1732 = vrot.lane.b32.xlu0 %v260, 32
  %v1733 = vpop.permute.xlu0 %1732
  %1734 = vrot.lane.b32.xlu0 %v262, 32
  %v1735 = vpop.permute.xlu0 %1734
  %1736 = vrot.lane.b32.xlu0 %v263, 32
  %v1737 = vpop.permute.xlu0 %1736
  %1738 = vrot.lane.b32.xlu0 %v265, 32
  %v1739 = vpop.permute.xlu0 %1738
  %1740 = vrot.lane.b32.xlu0 %v266, 32
  %v1741 = vpop.permute.xlu0 %1740
  %1742 = vrot.lane.b32.xlu0 %v268, 32
  %v1743 = vpop.permute.xlu0 %1742
  %1744 = vrot.lane.b32.xlu0 %v281, 32
  %v1745 = vpop.permute.xlu0 %1744
  %1746 = vrot.lane.b32.xlu0 %v283, 32
  %v1747 = vpop.permute.xlu0 %1746
  %1748 = vrot.lane.b32.xlu0 %v284, 32
  %v1749 = vpop.permute.xlu0 %1748
  %1750 = vrot.lane.b32.xlu0 %v286, 32
  %v1751 = vpop.permute.xlu0 %1750
  %1752 = vrot.lane.b32.xlu0 %v287, 32
  %v1753 = vpop.permute.xlu0 %1752
  %1754 = vrot.lane.b32.xlu0 %v289, 32
  %v1755 = vpop.permute.xlu0 %1754
  %1756 = vrot.lane.b32.xlu0 %v290, 32
  %v1757 = vpop.permute.xlu0 %1756
  %1758 = vrot.lane.b32.xlu0 %v292, 32
  %v1759 = vpop.permute.xlu0 %1758
  %1760 = vrot.lane.b32.xlu0 %v305, 32
  %v1761 = vpop.permute.xlu0 %1760
  %1762 = vrot.lane.b32.xlu0 %v307, 32
  %v1763 = vpop.permute.xlu0 %1762
  %1764 = vrot.lane.b32.xlu0 %v308, 32
  %v1765 = vpop.permute.xlu0 %1764
  %1766 = vrot.lane.b32.xlu0 %v310, 32
  %v1767 = vpop.permute.xlu0 %1766
  %1768 = vrot.lane.b32.xlu0 %v311, 32
  %v1769 = vpop.permute.xlu0 %1768
  %1770 = vrot.lane.b32.xlu0 %v313, 32
  %v1771 = vpop.permute.xlu0 %1770
  %1772 = vrot.lane.b32.xlu0 %v314, 32
  %v1773 = vpop.permute.xlu0 %1772
  %1774 = vrot.lane.b32.xlu0 %v316, 32
  %v1775 = vpop.permute.xlu0 %1774
  %1776 = vrot.lane.b32.xlu0 %v329, 32
  %v1777 = vpop.permute.xlu0 %1776
  %1778 = vrot.lane.b32.xlu0 %v331, 32
  %v1779 = vpop.permute.xlu0 %1778
  %1780 = vrot.lane.b32.xlu0 %v332, 32
  %v1781 = vpop.permute.xlu0 %1780
  %1782 = vrot.lane.b32.xlu0 %v334, 32
  %v1783 = vpop.permute.xlu0 %1782
  %1784 = vrot.lane.b32.xlu0 %v335, 32
  %v1785 = vpop.permute.xlu0 %1784
  %1786 = vrot.lane.b32.xlu0 %v337, 32
  %v1787 = vpop.permute.xlu0 %1786
  %1788 = vrot.lane.b32.xlu0 %v338, 32
  %v1789 = vpop.permute.xlu0 %1788
  %1790 = vrot.lane.b32.xlu0 %v340, 32
  %v1791 = vpop.permute.xlu0 %1790
  %1792 = vrot.lane.b32.xlu0 %v353, 32
  %v1793 = vpop.permute.xlu0 %1792
  %1794 = vrot.lane.b32.xlu0 %v355, 32
  %v1795 = vpop.permute.xlu0 %1794
  %1796 = vrot.lane.b32.xlu0 %v356, 32
  %v1797 = vpop.permute.xlu0 %1796
  %1798 = vrot.lane.b32.xlu0 %v358, 32
  %v1799 = vpop.permute.xlu0 %1798
  %1800 = vrot.lane.b32.xlu0 %v359, 32
  %v1801 = vpop.permute.xlu0 %1800
  %1802 = vrot.lane.b32.xlu0 %v361, 32
  %v1803 = vpop.permute.xlu0 %1802
  %1804 = vrot.lane.b32.xlu0 %v362, 32
  %v1805 = vpop.permute.xlu0 %1804
  %1806 = vrot.lane.b32.xlu0 %v364, 32
  %v1807 = vpop.permute.xlu0 %1806
  %vm1872 = vcmask 31744
  %v1873 = vsel %vm1872, 0.0, %v421
  %v1874 = vsel %vm1872, 0.0, %v423
  %v1875 = vsel %vm1872, %v185, %v425
  %v1876 = vsel %vm1872, %v187, %v427
  %v1877 = vsel %vm1872, %v188, %v429
  %v1878 = vsel %vm1872, %v190, %v431
  %v1879 = vsel %vm1872, %v191, %v433
  %v1880 = vsel %vm1872, %v193, %v435
  %v1881 = vsel %vm1872, %v194, %v437
  %v1882 = vsel %vm1872, 0.0, %v439
  %v1883 = vsel %vm1872, %v209, %v441
  %v1884 = vsel %vm1872, %v211, %v443
  %v1885 = vsel %vm1872, %v212, %v445
  %v1886 = vsel %vm1872, %v214, %v447
  %v1887 = vsel %vm1872, %v215, %v449
  %v1888 = vsel %vm1872, %v217, %v451
  %v1889 = vsel %vm1872, %v218, %v453
  %v1890 = vsel %vm1872, 0.0, %v455
  %v1891 = vsel %vm1872, %v233, %v457
  %v1892 = vsel %vm1872, %v235, %v459
  %v1893 = vsel %vm1872, %v236, %v461
  %v1894 = vsel %vm1872, %v238, %v463
  %v1895 = vsel %vm1872, %v239, %v465
  %v1896 = vsel %vm1872, %v241, %v467
  %v1897 = vsel %vm1872, %v242, %v469
  %v1898 = vsel %vm1872, 0.0, %v471
  %v1899 = vsel %vm1872, %v257, %v473
  %v1900 = vsel %vm1872, %v259, %v475
  %v1901 = vsel %vm1872, %v260, %v477
  %v1902 = vsel %vm1872, %v262, %v479
  %v1903 = vsel %vm1872, %v263, %v481
  %v1904 = vsel %vm1872, %v265, %v483
  %v1905 = vsel %vm1872, %v266, %v485
  %v1906 = vsel %vm1872, 0.0, %v487
  %v1907 = vsel %vm1872, %v281, %v489
  %v1908 = vsel %vm1872, %v283, %v491
  %v1909 = vsel %vm1872, %v284, %v493
  %v1910 = vsel %vm1872, %v286, %v495
  %v1911 = vsel %vm1872, %v287, %v497
  %v1912 = vsel %vm1872, %v289, %v499
  %v1913 = vsel %vm1872, %v290, %v501
  %v1914 = vsel %vm1872, 0.0, %v503
  %v1915 = vsel %vm1872, %v305, %v505
  %v1916 = vsel %vm1872, %v307, %v507
  %v1917 = vsel %vm1872, %v308, %v509
  %v1918 = vsel %vm1872, %v310, %v511
  %v1919 = vsel %vm1872, %v311, %v513
  %v1920 = vsel %vm1872, %v313, %v515
  %v1921 = vsel %vm1872, %v314, %v517
  %v1922 = vsel %vm1872, 0.0, %v519
  %v1923 = vsel %vm1872, %v329, %v521
  %v1924 = vsel %vm1872, %v331, %v523
  %v1925 = vsel %vm1872, %v332, %v525
  %v1926 = vsel %vm1872, %v334, %v527
  %v1927 = vsel %vm1872, %v335, %v529
  %v1928 = vsel %vm1872, %v337, %v531
  %v1929 = vsel %vm1872, %v338, %v533
  %vm1930 = vcmask 64512
  %v1931 = vsel %vm1930, %v1873, %v592
  %v1932 = vsel %vm1930, %v1874, %v594
  %v1933 = vsel %vm1930, %v1875, %v596
  %v1934 = vsel %vm1930, %v1876, %v598
  %v1935 = vsel %vm1930, %v1877, %v600
  %v1936 = vsel %vm1930, %v1878, %v602
  %v1937 = vsel %vm1930, %v1879, %v604
  %v1938 = vsel %vm1930, %v1880, %v606
  %v1939 = vsel %vm1930, %v1881, %v608
  %v1940 = vsel %vm1930, %v1882, %v610
  %v1941 = vsel %vm1930, %v1883, %v612
  %v1942 = vsel %vm1930, %v1884, %v614
  %v1943 = vsel %vm1930, %v1885, %v616
  %v1944 = vsel %vm1930, %v1886, %v618
  %v1945 = vsel %vm1930, %v1887, %v620
  %v1946 = vsel %vm1930, %v1888, %v622
  %v1947 = vsel %vm1930, %v1889, %v624
  %v1948 = vsel %vm1930, %v1890, %v626
  %v1949 = vsel %vm1930, %v1891, %v628
  %v1950 = vsel %vm1930, %v1892, %v630
  %v1951 = vsel %vm1930, %v1893, %v632
  %v1952 = vsel %vm1930, %v1894, %v634
  %v1953 = vsel %vm1930, %v1895, %v636
  %v1954 = vsel %vm1930, %v1896, %v638
  %v1955 = vsel %vm1930, %v1897, %v640
  %v1956 = vsel %vm1930, %v1898, %v642
  %v1957 = vsel %vm1930, %v1899, %v644
  %v1958 = vsel %vm1930, %v1900, %v646
  %v1959 = vsel %vm1930, %v1901, %v648
  %v1960 = vsel %vm1930, %v1902, %v650
  %v1961 = vsel %vm1930, %v1903, %v652
  %v1962 = vsel %vm1930, %v1904, %v654
  %v1963 = vsel %vm1930, %v1905, %v656
  %v1964 = vsel %vm1930, %v1906, %v658
  %v1965 = vsel %vm1930, %v1907, %v660
  %v1966 = vsel %vm1930, %v1908, %v662
  %v1967 = vsel %vm1930, %v1909, %v664
  %v1968 = vsel %vm1930, %v1910, %v666
  %v1969 = vsel %vm1930, %v1911, %v668
  %v1970 = vsel %vm1930, %v1912, %v670
  %v1971 = vsel %vm1930, %v1913, %v672
  %v1972 = vsel %vm1930, %v1914, %v674
  %v1973 = vsel %vm1930, %v1915, %v676
  %v1974 = vsel %vm1930, %v1916, %v678
  %v1975 = vsel %vm1930, %v1917, %v680
  %v1976 = vsel %vm1930, %v1918, %v682
  %v1977 = vsel %vm1930, %v1919, %v684
  %v1978 = vsel %vm1930, %v1920, %v686
  %v1979 = vsel %vm1930, %v1921, %v688
  %v1980 = vsel %vm1930, %v1922, %v690
  %v1981 = vsel %vm1930, %v1923, %v692
  %v1982 = vsel %vm1930, %v1924, %v694
  %v1983 = vsel %vm1930, %v1925, %v696
  %v1984 = vsel %vm1930, %v1926, %v698
  %v1985 = vsel %vm1930, %v1927, %v700
  %v1986 = vsel %vm1930, %v1928, %v702
  %v1987 = vsel %vm1930, %v1929, %v704
  %vm1988 = vcmask 97280
  %v1989 = vsel %vm1988, %v1931, %v763
  %v1990 = vsel %vm1988, %v1931, %v765
  %v1991 = vsel %vm1988, %v1931, %v767
  %v1992 = vsel %vm1988, %v1931, %v769
  %v1993 = vsel %vm1988, %v1931, %v771
  %v1994 = vsel %vm1988, %v1931, %v773
  %v1995 = vsel %vm1988, %v1931, %v775
  %v1996 = vsel %vm1988, %v1931, %v777
  %v1997 = vsel %vm1988, %v1932, %v763
  %v1998 = vsel %vm1988, %v1933, %v779
  %v1999 = vsel %vm1988, %v1934, %v781
  %v2000 = vsel %vm1988, %v1935, %v783
  %v2001 = vsel %vm1988, %v1936, %v785
  %v2002 = vsel %vm1988, %v1937, %v787
  %v2003 = vsel %vm1988, %v1938, %v789
  %v2004 = vsel %vm1988, %v1939, %v791
  %v2005 = vsel %vm1988, %v1940, %v763
  %v2006 = vsel %vm1988, %v1941, %v793
  %v2007 = vsel %vm1988, %v1942, %v795
  %v2008 = vsel %vm1988, %v1943, %v797
  %v2009 = vsel %vm1988, %v1944, %v799
  %v2010 = vsel %vm1988, %v1945, %v801
  %v2011 = vsel %vm1988, %v1946, %v803
  %v2012 = vsel %vm1988, %v1947, %v805
  %v2013 = vsel %vm1988, %v1948, %v763
  %v2014 = vsel %vm1988, %v1949, %v807
  %v2015 = vsel %vm1988, %v1950, %v809
  %v2016 = vsel %vm1988, %v1951, %v811
  %v2017 = vsel %vm1988, %v1952, %v813
  %v2018 = vsel %vm1988, %v1953, %v815
  %v2019 = vsel %vm1988, %v1954, %v817
  %v2020 = vsel %vm1988, %v1955, %v819
  %v2021 = vsel %vm1988, %v1956, %v763
  %v2022 = vsel %vm1988, %v1957, %v821
  %v2023 = vsel %vm1988, %v1958, %v823
  %v2024 = vsel %vm1988, %v1959, %v825
  %v2025 = vsel %vm1988, %v1960, %v827
  %v2026 = vsel %vm1988, %v1961, %v829
  %v2027 = vsel %vm1988, %v1962, %v831
  %v2028 = vsel %vm1988, %v1963, %v833
  %v2029 = vsel %vm1988, %v1964, %v763
  %v2030 = vsel %vm1988, %v1965, %v835
  %v2031 = vsel %vm1988, %v1966, %v837
  %v2032 = vsel %vm1988, %v1967, %v839
  %v2033 = vsel %vm1988, %v1968, %v841
  %v2034 = vsel %vm1988, %v1969, %v843
  %v2035 = vsel %vm1988, %v1970, %v845
  %v2036 = vsel %vm1988, %v1971, %v847
  %v2037 = vsel %vm1988, %v1972, %v763
  %v2038 = vsel %vm1988, %v1973, %v849
  %v2039 = vsel %vm1988, %v1974, %v851
  %v2040 = vsel %vm1988, %v1975, %v853
  %v2041 = vsel %vm1988, %v1976, %v855
  %v2042 = vsel %vm1988, %v1977, %v857
  %v2043 = vsel %vm1988, %v1978, %v859
  %v2044 = vsel %vm1988, %v1979, %v861
  %v2045 = vsel %vm1988, %v1980, %v763
  %v2046 = vsel %vm1988, %v1981, %v863
  %v2047 = vsel %vm1988, %v1982, %v865
  %v2048 = vsel %vm1988, %v1983, %v867
  %v2049 = vsel %vm1988, %v1984, %v869
  %v2050 = vsel %vm1988, %v1985, %v871
  %v2051 = vsel %vm1988, %v1986, %v873
  %v2052 = vsel %vm1988, %v1987, %v875
  %vm2053 = vcmask 130048
  %v2054 = vsel %vm2053, %v1989, %v934
  %v2055 = vsel %vm2053, %v1990, %v936
  %v2056 = vsel %vm2053, %v1991, %v938
  %v2057 = vsel %vm2053, %v1992, %v940
  %v2058 = vsel %vm2053, %v1993, %v942
  %v2059 = vsel %vm2053, %v1994, %v944
  %v2060 = vsel %vm2053, %v1995, %v946
  %v2061 = vsel %vm2053, %v1996, %v948
  %v2062 = vsel %vm2053, %v1997, %v950
  %v2063 = vsel %vm2053, %v1998, %v952
  %v2064 = vsel %vm2053, %v1999, %v954
  %v2065 = vsel %vm2053, %v2000, %v956
  %v2066 = vsel %vm2053, %v2001, %v958
  %v2067 = vsel %vm2053, %v2002, %v960
  %v2068 = vsel %vm2053, %v2003, %v962
  %v2069 = vsel %vm2053, %v2004, %v964
  %v2070 = vsel %vm2053, %v2005, %v966
  %v2071 = vsel %vm2053, %v2006, %v968
  %v2072 = vsel %vm2053, %v2007, %v970
  %v2073 = vsel %vm2053, %v2008, %v972
  %v2074 = vsel %vm2053, %v2009, %v974
  %v2075 = vsel %vm2053, %v2010, %v976
  %v2076 = vsel %vm2053, %v2011, %v978
  %v2077 = vsel %vm2053, %v2012, %v980
  %v2078 = vsel %vm2053, %v2013, %v982
  %v2079 = vsel %vm2053, %v2014, %v984
  %v2080 = vsel %vm2053, %v2015, %v986
  %v2081 = vsel %vm2053, %v2016, %v988
  %v2082 = vsel %vm2053, %v2017, %v990
  %v2083 = vsel %vm2053, %v2018, %v992
  %v2084 = vsel %vm2053, %v2019, %v994
  %v2085 = vsel %vm2053, %v2020, %v996
  %v2086 = vsel %vm2053, %v2021, %v998
  %v2087 = vsel %vm2053, %v2022, %v1000
  %v2088 = vsel %vm2053, %v2023, %v1002
  %v2089 = vsel %vm2053, %v2024, %v1004
  %v2090 = vsel %vm2053, %v2025, %v1006
  %v2091 = vsel %vm2053, %v2026, %v1008
  %v2092 = vsel %vm2053, %v2027, %v1010
  %v2093 = vsel %vm2053, %v2028, %v1012
  %v2094 = vsel %vm2053, %v2029, %v1014
  %v2095 = vsel %vm2053, %v2030, %v1016
  %v2096 = vsel %vm2053, %v2031, %v1018
  %v2097 = vsel %vm2053, %v2032, %v1020
  %v2098 = vsel %vm2053, %v2033, %v1022
  %v2099 = vsel %vm2053, %v2034, %v1024
  %v2100 = vsel %vm2053, %v2035, %v1026
  %v2101 = vsel %vm2053, %v2036, %v1028
  %v2102 = vsel %vm2053, %v2037, %v1030
  %v2103 = vsel %vm2053, %v2038, %v1032
  %v2104 = vsel %vm2053, %v2039, %v1034
  %v2105 = vsel %vm2053, %v2040, %v1036
  %v2106 = vsel %vm2053, %v2041, %v1038
  %v2107 = vsel %vm2053, %v2042, %v1040
  %v2108 = vsel %vm2053, %v2043, %v1042
  %v2109 = vsel %vm2053, %v2044, %v1044
  %v2110 = vsel %vm2053, %v2045, %v1046
  %v2111 = vsel %vm2053, %v2046, %v1048
  %v2112 = vsel %vm2053, %v2047, %v1050
  %v2113 = vsel %vm2053, %v2048, %v1052
  %v2114 = vsel %vm2053, %v2049, %v1054
  %v2115 = vsel %vm2053, %v2050, %v1056
  %v2116 = vsel %vm2053, %v2051, %v1058
  %v2117 = vsel %vm2053, %v2052, %v1060
  %vm2118 = vcmask 162816
  %v2119 = vsel %vm2118, %v2054, %v1126
  %v2120 = vsel %vm2118, %v2055, %v1128
  %v2121 = vsel %vm2118, %v2056, %v1130
  %v2122 = vsel %vm2118, %v2057, %v1132
  %v2123 = vsel %vm2118, %v2058, %v1134
  %v2124 = vsel %vm2118, %v2059, %v1136
  %v2125 = vsel %vm2118, %v2060, %v1138
  %v2126 = vsel %vm2118, %v2061, %v1140
  %v2127 = vsel %vm2118, %v2062, %v1142
  %v2128 = vsel %vm2118, %v2063, %v1144
  %v2129 = vsel %vm2118, %v2064, %v1146
  %v2130 = vsel %vm2118, %v2065, %v1148
  %v2131 = vsel %vm2118, %v2066, %v1150
  %v2132 = vsel %vm2118, %v2067, %v1152
  %v2133 = vsel %vm2118, %v2068, %v1154
  %v2134 = vsel %vm2118, %v2069, %v1156
  %v2135 = vsel %vm2118, %v2070, %v1158
  %v2136 = vsel %vm2118, %v2071, %v1160
  %v2137 = vsel %vm2118, %v2072, %v1162
  %v2138 = vsel %vm2118, %v2073, %v1164
  %v2139 = vsel %vm2118, %v2074, %v1166
  %v2140 = vsel %vm2118, %v2075, %v1168
  %v2141 = vsel %vm2118, %v2076, %v1170
  %v2142 = vsel %vm2118, %v2077, %v1172
  %v2143 = vsel %vm2118, %v2078, %v1174
  %v2144 = vsel %vm2118, %v2079, %v1176
  %v2145 = vsel %vm2118, %v2080, %v1178
  %v2146 = vsel %vm2118, %v2081, %v1180
  %v2147 = vsel %vm2118, %v2082, %v1182
  %v2148 = vsel %vm2118, %v2083, %v1184
  %v2149 = vsel %vm2118, %v2084, %v1186
  %v2150 = vsel %vm2118, %v2085, %v1188
  %v2151 = vsel %vm2118, %v2086, %v1190
  %v2152 = vsel %vm2118, %v2087, %v1192
  %v2153 = vsel %vm2118, %v2088, %v1194
  %v2154 = vsel %vm2118, %v2089, %v1196
  %v2155 = vsel %vm2118, %v2090, %v1198
  %v2156 = vsel %vm2118, %v2091, %v1200
  %v2157 = vsel %vm2118, %v2092, %v1202
  %v2158 = vsel %vm2118, %v2093, %v1204
  %v2159 = vsel %vm2118, %v2094, %v1206
  %v2160 = vsel %vm2118, %v2095, %v1208
  %v2161 = vsel %vm2118, %v2096, %v1210
  %v2162 = vsel %vm2118, %v2097, %v1212
  %v2163 = vsel %vm2118, %v2098, %v1214
  %v2164 = vsel %vm2118, %v2099, %v1216
  %v2165 = vsel %vm2118, %v2100, %v1218
  %v2166 = vsel %vm2118, %v2101, %v1220
  %v2167 = vsel %vm2118, %v2102, %v1222
  %v2168 = vsel %vm2118, %v2103, %v1224
  %v2169 = vsel %vm2118, %v2104, %v1226
  %v2170 = vsel %vm2118, %v2105, %v1228
  %v2171 = vsel %vm2118, %v2106, %v1230
  %v2172 = vsel %vm2118, %v2107, %v1232
  %v2173 = vsel %vm2118, %v2108, %v1234
  %v2174 = vsel %vm2118, %v2109, %v1236
  %v2175 = vsel %vm2118, %v2110, %v1238
  %v2176 = vsel %vm2118, %v2111, %v1240
  %v2177 = vsel %vm2118, %v2112, %v1242
  %v2178 = vsel %vm2118, %v2113, %v1244
  %v2179 = vsel %vm2118, %v2114, %v1246
  %v2180 = vsel %vm2118, %v2115, %v1248
  %v2181 = vsel %vm2118, %v2116, %v1250
  %v2182 = vsel %vm2118, %v2117, %v1252
  %vm2183 = vcmask 195584
  %v2184 = vsel %vm2183, %v2119, %v1318
  %v2185 = vsel %vm2183, %v2120, %v1320
  %v2186 = vsel %vm2183, %v2121, %v1322
  %v2187 = vsel %vm2183, %v2122, %v1324
  %v2188 = vsel %vm2183, %v2123, %v1326
  %v2189 = vsel %vm2183, %v2124, %v1328
  %v2190 = vsel %vm2183, %v2125, %v1330
  %v2191 = vsel %vm2183, %v2126, %v1332
  %v2192 = vsel %vm2183, %v2127, %v1318
  %v2193 = vsel %vm2183, %v2128, %v1334
  %v2194 = vsel %vm2183, %v2129, %v1336
  %v2195 = vsel %vm2183, %v2130, %v1338
  %v2196 = vsel %vm2183, %v2131, %v1340
  %v2197 = vsel %vm2183, %v2132, %v1342
  %v2198 = vsel %vm2183, %v2133, %v1344
  %v2199 = vsel %vm2183, %v2134, %v1346
  %v2200 = vsel %vm2183, %v2135, %v1318
  %v2201 = vsel %vm2183, %v2136, %v1348
  %v2202 = vsel %vm2183, %v2137, %v1350
  %v2203 = vsel %vm2183, %v2138, %v1352
  %v2204 = vsel %vm2183, %v2139, %v1354
  %v2205 = vsel %vm2183, %v2140, %v1356
  %v2206 = vsel %vm2183, %v2141, %v1358
  %v2207 = vsel %vm2183, %v2142, %v1360
  %v2208 = vsel %vm2183, %v2143, %v1318
  %v2209 = vsel %vm2183, %v2144, %v1362
  %v2210 = vsel %vm2183, %v2145, %v1364
  %v2211 = vsel %vm2183, %v2146, %v1366
  %v2212 = vsel %vm2183, %v2147, %v1368
  %v2213 = vsel %vm2183, %v2148, %v1370
  %v2214 = vsel %vm2183, %v2149, %v1372
  %v2215 = vsel %vm2183, %v2150, %v1374
  %v2216 = vsel %vm2183, %v2151, %v1318
  %v2217 = vsel %vm2183, %v2152, %v1376
  %v2218 = vsel %vm2183, %v2153, %v1378
  %v2219 = vsel %vm2183, %v2154, %v1380
  %v2220 = vsel %vm2183, %v2155, %v1382
  %v2221 = vsel %vm2183, %v2156, %v1384
  %v2222 = vsel %vm2183, %v2157, %v1386
  %v2223 = vsel %vm2183, %v2158, %v1388
  %v2224 = vsel %vm2183, %v2159, %v1318
  %v2225 = vsel %vm2183, %v2160, %v1390
  %v2226 = vsel %vm2183, %v2161, %v1392
  %v2227 = vsel %vm2183, %v2162, %v1394
  %v2228 = vsel %vm2183, %v2163, %v1396
  %v2229 = vsel %vm2183, %v2164, %v1398
  %v2230 = vsel %vm2183, %v2165, %v1400
  %v2231 = vsel %vm2183, %v2166, %v1402
  %v2232 = vsel %vm2183, %v2167, %v1318
  %v2233 = vsel %vm2183, %v2168, %v1404
  %v2234 = vsel %vm2183, %v2169, %v1406
  %v2235 = vsel %vm2183, %v2170, %v1408
  %v2236 = vsel %vm2183, %v2171, %v1410
  %v2237 = vsel %vm2183, %v2172, %v1412
  %v2238 = vsel %vm2183, %v2173, %v1414
  %v2239 = vsel %vm2183, %v2174, %v1416
  %v2240 = vsel %vm2183, %v2175, %v1318
  %v2241 = vsel %vm2183, %v2176, %v1418
  %v2242 = vsel %vm2183, %v2177, %v1420
  %v2243 = vsel %vm2183, %v2178, %v1422
  %v2244 = vsel %vm2183, %v2179, %v1424
  %v2245 = vsel %vm2183, %v2180, %v1426
  %v2246 = vsel %vm2183, %v2181, %v1428
  %v2247 = vsel %vm2183, %v2182, %v1430
  %vm2248 = vcmask 228352
  %v2249 = vsel %vm2248, %v2184, %v1489
  %v2250 = vsel %vm2248, %v2185, %v1491
  %v2251 = vsel %vm2248, %v2186, %v1493
  %v2252 = vsel %vm2248, %v2187, %v1495
  %v2253 = vsel %vm2248, %v2188, %v1497
  %v2254 = vsel %vm2248, %v2189, %v1499
  %v2255 = vsel %vm2248, %v2190, %v1501
  %v2256 = vsel %vm2248, %v2191, %v1503
  %v2257 = vsel %vm2248, %v2192, %v1505
  %v2258 = vsel %vm2248, %v2193, %v1507
  %v2259 = vsel %vm2248, %v2194, %v1509
  %v2260 = vsel %vm2248, %v2195, %v1511
  %v2261 = vsel %vm2248, %v2196, %v1513
  %v2262 = vsel %vm2248, %v2197, %v1515
  %v2263 = vsel %vm2248, %v2198, %v1517
  %v2264 = vsel %vm2248, %v2199, %v1519
  %v2265 = vsel %vm2248, %v2200, %v1521
  %v2266 = vsel %vm2248, %v2201, %v1523
  %v2267 = vsel %vm2248, %v2202, %v1525
  %v2268 = vsel %vm2248, %v2203, %v1527
  %v2269 = vsel %vm2248, %v2204, %v1529
  %v2270 = vsel %vm2248, %v2205, %v1531
  %v2271 = vsel %vm2248, %v2206, %v1533
  %v2272 = vsel %vm2248, %v2207, %v1535
  %v2273 = vsel %vm2248, %v2208, %v1537
  %v2274 = vsel %vm2248, %v2209, %v1539
  %v2275 = vsel %vm2248, %v2210, %v1541
  %v2276 = vsel %vm2248, %v2211, %v1543
  %v2277 = vsel %vm2248, %v2212, %v1545
  %v2278 = vsel %vm2248, %v2213, %v1547
  %v2279 = vsel %vm2248, %v2214, %v1549
  %v2280 = vsel %vm2248, %v2215, %v1551
  %v2281 = vsel %vm2248, %v2216, %v1553
  %v2282 = vsel %vm2248, %v2217, %v1555
  %v2283 = vsel %vm2248, %v2218, %v1557
  %v2284 = vsel %vm2248, %v2219, %v1559
  %v2285 = vsel %vm2248, %v2220, %v1561
  %v2286 = vsel %vm2248, %v2221, %v1563
  %v2287 = vsel %vm2248, %v2222, %v1565
  %v2288 = vsel %vm2248, %v2223, %v1567
  %v2289 = vsel %vm2248, %v2224, %v1569
  %v2290 = vsel %vm2248, %v2225, %v1571
  %v2291 = vsel %vm2248, %v2226, %v1573
  %v2292 = vsel %vm2248, %v2227, %v1575
  %v2293 = vsel %vm2248, %v2228, %v1577
  %v2294 = vsel %vm2248, %v2229, %v1579
  %v2295 = vsel %vm2248, %v2230, %v1581
  %v2296 = vsel %vm2248, %v2231, %v1583
  %v2297 = vsel %vm2248, %v2232, %v1585
  %v2298 = vsel %vm2248, %v2233, %v1587
  %v2299 = vsel %vm2248, %v2234, %v1589
  %v2300 = vsel %vm2248, %v2235, %v1591
  %v2301 = vsel %vm2248, %v2236, %v1593
  %v2302 = vsel %vm2248, %v2237, %v1595
  %v2303 = vsel %vm2248, %v2238, %v1597
  %v2304 = vsel %vm2248, %v2239, %v1599
  %v2305 = vsel %vm2248, %v2240, %v1601
  %v2306 = vsel %vm2248, %v2241, %v1603
  %v2307 = vsel %vm2248, %v2242, %v1605
  %v2308 = vsel %vm2248, %v2243, %v1607
  %v2309 = vsel %vm2248, %v2244, %v1609
  %v2310 = vsel %vm2248, %v2245, %v1611
  %v2311 = vsel %vm2248, %v2246, %v1613
  %v2312 = vsel %vm2248, %v2247, %v1615
  %vm2313 = vcmask 261120
  %v2314 = vsel %vm2313, %v2249, %v1681
  %v2315 = vsel %vm2313, %v2250, %v1683
  %v2316 = vsel %vm2313, %v2251, %v1685
  %v2317 = vsel %vm2313, %v2252, %v1687
  %v2318 = vsel %vm2313, %v2253, %v1689
  %v2319 = vsel %vm2313, %v2254, %v1691
  %v2320 = vsel %vm2313, %v2255, %v1693
  %v2321 = vsel %vm2313, %v2256, %v1695
  %v2322 = vsel %vm2313, %v2257, %v1697
  %v2323 = vsel %vm2313, %v2258, %v1699
  %v2324 = vsel %vm2313, %v2259, %v1701
  %v2325 = vsel %vm2313, %v2260, %v1703
  %v2326 = vsel %vm2313, %v2261, %v1705
  %v2327 = vsel %vm2313, %v2262, %v1707
  %v2328 = vsel %vm2313, %v2263, %v1709
  %v2329 = vsel %vm2313, %v2264, %v1711
  %v2330 = vsel %vm2313, %v2265, %v1713
  %v2331 = vsel %vm2313, %v2266, %v1715
  %v2332 = vsel %vm2313, %v2267, %v1717
  %v2333 = vsel %vm2313, %v2268, %v1719
  %v2334 = vsel %vm2313, %v2269, %v1721
  %v2335 = vsel %vm2313, %v2270, %v1723
  %v2336 = vsel %vm2313, %v2271, %v1725
  %v2337 = vsel %vm2313, %v2272, %v1727
  %v2338 = vsel %vm2313, %v2273, %v1729
  %v2339 = vsel %vm2313, %v2274, %v1731
  %v2340 = vsel %vm2313, %v2275, %v1733
  %v2341 = vsel %vm2313, %v2276, %v1735
  %v2342 = vsel %vm2313, %v2277, %v1737
  %v2343 = vsel %vm2313, %v2278, %v1739
  %v2344 = vsel %vm2313, %v2279, %v1741
  %v2345 = vsel %vm2313, %v2280, %v1743
  %v2346 = vsel %vm2313, %v2281, %v1745
  %v2347 = vsel %vm2313, %v2282, %v1747
  %v2348 = vsel %vm2313, %v2283, %v1749
  %v2349 = vsel %vm2313, %v2284, %v1751
  %v2350 = vsel %vm2313, %v2285, %v1753
  %v2351 = vsel %vm2313, %v2286, %v1755
  %v2352 = vsel %vm2313, %v2287, %v1757
  %v2353 = vsel %vm2313, %v2288, %v1759
  %v2354 = vsel %vm2313, %v2289, %v1761
  %v2355 = vsel %vm2313, %v2290, %v1763
  %v2356 = vsel %vm2313, %v2291, %v1765
  %v2357 = vsel %vm2313, %v2292, %v1767
  %v2358 = vsel %vm2313, %v2293, %v1769
  %v2359 = vsel %vm2313, %v2294, %v1771
  %v2360 = vsel %vm2313, %v2295, %v1773
  %v2361 = vsel %vm2313, %v2296, %v1775
  %v2362 = vsel %vm2313, %v2297, %v1777
  %v2363 = vsel %vm2313, %v2298, %v1779
  %v2364 = vsel %vm2313, %v2299, %v1781
  %v2365 = vsel %vm2313, %v2300, %v1783
  %v2366 = vsel %vm2313, %v2301, %v1785
  %v2367 = vsel %vm2313, %v2302, %v1787
  %v2368 = vsel %vm2313, %v2303, %v1789
  %v2369 = vsel %vm2313, %v2304, %v1791
  %v2370 = vsel %vm2313, %v2305, %v1793
  %v2371 = vsel %vm2313, %v2306, %v1795
  %v2372 = vsel %vm2313, %v2307, %v1797
  %v2373 = vsel %vm2313, %v2308, %v1799
  %v2374 = vsel %vm2313, %v2309, %v1801
  %v2375 = vsel %vm2313, %v2310, %v1803
  %v2376 = vsel %vm2313, %v2311, %v1805
  %v2377 = vsel %vm2313, %v2312, %v1807
  %v2378 = vperm.slane %v44, 0
  %2443 = vst [vmem:[#allocation1] ss:$4 sm:$0xff] %v2314
  %s2444 = scalar_lea.vmem [#allocation1], 1
  %2445 = vst [vmem:[%s2444] ss:$4 sm:$0xff] %v2315
  %s2446 = scalar_lea.vmem [#allocation1], 2
  %2447 = vst [vmem:[%s2446] ss:$4 sm:$0xff] %v2316
  %s2448 = scalar_lea.vmem [#allocation1], 3
  %2449 = vst [vmem:[%s2448] ss:$4 sm:$0xff] %v2317
  %s2450 = scalar_lea.vmem [#allocation1], 32
  %2451 = vst [vmem:[%s2450] ss:$4 sm:$0xff] %v2318
  %s2452 = scalar_lea.vmem [#allocation1], 33
  %2453 = vst [vmem:[%s2452] ss:$4 sm:$0xff] %v2319
  %s2454 = scalar_lea.vmem [#allocation1], 34
  %2455 = vst [vmem:[%s2454] ss:$4 sm:$0xff] %v2320
  %s2456 = scalar_lea.vmem [#allocation1], 35
  %2457 = vst [vmem:[%s2456] ss:$4 sm:$0xff] %v2321
  %v2458 = vld.sshfl [vmem:[#allocation1] sm:$0xff pattern:$0x73625140]
  %v2459 = vld.sshfl [vmem:[#allocation1 + $0x20] sm:$0xff pattern:$0x73625140]
  %2460 = vst [vmem:[#allocation1] ss:$4 sm:$0xff] %v2322
  %2461 = vst [vmem:[%s2444] ss:$4 sm:$0xff] %v2323
  %2462 = vst [vmem:[%s2446] ss:$4 sm:$0xff] %v2324
  %2463 = vst [vmem:[%s2448] ss:$4 sm:$0xff] %v2325
  %2464 = vst [vmem:[%s2450] ss:$4 sm:$0xff] %v2326
  %2465 = vst [vmem:[%s2452] ss:$4 sm:$0xff] %v2327
  %2466 = vst [vmem:[%s2454] ss:$4 sm:$0xff] %v2328
  %2467 = vst [vmem:[%s2456] ss:$4 sm:$0xff] %v2329
  %v2468 = vld.sshfl [vmem:[#allocation1] sm:$0xff pattern:$0x73625140]
  %v2469 = vld.sshfl [vmem:[#allocation1 + $0x20] sm:$0xff pattern:$0x73625140]
  %2470 = vst [vmem:[#allocation1] ss:$4 sm:$0xff] %v2330
  %2471 = vst [vmem:[%s2444] ss:$4 sm:$0xff] %v2331
  %2472 = vst [vmem:[%s2446] ss:$4 sm:$0xff] %v2332
  %2473 = vst [vmem:[%s2448] ss:$4 sm:$0xff] %v2333
  %2474 = vst [vmem:[%s2450] ss:$4 sm:$0xff] %v2334
  %2475 = vst [vmem:[%s2452] ss:$4 sm:$0xff] %v2335
  %2476 = vst [vmem:[%s2454] ss:$4 sm:$0xff] %v2336
  %2477 = vst [vmem:[%s2456] ss:$4 sm:$0xff] %v2337
  %v2478 = vld.sshfl [vmem:[#allocation1] sm:$0xff pattern:$0x73625140]
  %v2479 = vld.sshfl [vmem:[#allocation1 + $0x20] sm:$0xff pattern:$0x73625140]
  %2480 = vst [vmem:[#allocation1] ss:$4 sm:$0xff] %v2338
  %2481 = vst [vmem:[%s2444] ss:$4 sm:$0xff] %v2339
  %2482 = vst [vmem:[%s2446] ss:$4 sm:$0xff] %v2340
  %2483 = vst [vmem:[%s2448] ss:$4 sm:$0xff] %v2341
  %2484 = vst [vmem:[%s2450] ss:$4 sm:$0xff] %v2342
  %2485 = vst [vmem:[%s2452] ss:$4 sm:$0xff] %v2343
  %2486 = vst [vmem:[%s2454] ss:$4 sm:$0xff] %v2344
  %2487 = vst [vmem:[%s2456] ss:$4 sm:$0xff] %v2345
  %v2488 = vld.sshfl [vmem:[#allocation1] sm:$0xff pattern:$0x73625140]
  %v2489 = vld.sshfl [vmem:[#allocation1 + $0x20] sm:$0xff pattern:$0x73625140]
  %2490 = vst [vmem:[#allocation1] ss:$4 sm:$0xff] %v2346
  %2491 = vst [vmem:[%s2444] ss:$4 sm:$0xff] %v2347
  %2492 = vst [vmem:[%s2446] ss:$4 sm:$0xff] %v2348
  %2493 = vst [vmem:[%s2448] ss:$4 sm:$0xff] %v2349
  %2494 = vst [vmem:[%s2450] ss:$4 sm:$0xff] %v2350
  %2495 = vst [vmem:[%s2452] ss:$4 sm:$0xff] %v2351
  %2496 = vst [vmem:[%s2454] ss:$4 sm:$0xff] %v2352
  %2497 = vst [vmem:[%s2456] ss:$4 sm:$0xff] %v2353
  %v2498 = vld.sshfl [vmem:[#allocation1] sm:$0xff pattern:$0x73625140]
  %v2499 = vld.sshfl [vmem:[#allocation1 + $0x20] sm:$0xff pattern:$0x73625140]
  %2500 = vst [vmem:[#allocation1] ss:$4 sm:$0xff] %v2354
  %2501 = vst [vmem:[%s2444] ss:$4 sm:$0xff] %v2355
  %2502 = vst [vmem:[%s2446] ss:$4 sm:$0xff] %v2356
  %2503 = vst [vmem:[%s2448] ss:$4 sm:$0xff] %v2357
  %2504 = vst [vmem:[%s2450] ss:$4 sm:$0xff] %v2358
  %2505 = vst [vmem:[%s2452] ss:$4 sm:$0xff] %v2359
  %2506 = vst [vmem:[%s2454] ss:$4 sm:$0xff] %v2360
  %2507 = vst [vmem:[%s2456] ss:$4 sm:$0xff] %v2361
  %v2508 = vld.sshfl [vmem:[#allocation1] sm:$0xff pattern:$0x73625140]
  %v2509 = vld.sshfl [vmem:[#allocation1 + $0x20] sm:$0xff pattern:$0x73625140]
  %2510 = vst [vmem:[#allocation1] ss:$4 sm:$0xff] %v2362
  %2511 = vst [vmem:[%s2444] ss:$4 sm:$0xff] %v2363
  %2512 = vst [vmem:[%s2446] ss:$4 sm:$0xff] %v2364
  %2513 = vst [vmem:[%s2448] ss:$4 sm:$0xff] %v2365
  %2514 = vst [vmem:[%s2450] ss:$4 sm:$0xff] %v2366
  %2515 = vst [vmem:[%s2452] ss:$4 sm:$0xff] %v2367
  %2516 = vst [vmem:[%s2454] ss:$4 sm:$0xff] %v2368
  %2517 = vst [vmem:[%s2456] ss:$4 sm:$0xff] %v2369
  %v2518 = vld.sshfl [vmem:[#allocation1] sm:$0xff pattern:$0x73625140]
  %v2519 = vld.sshfl [vmem:[#allocation1 + $0x20] sm:$0xff pattern:$0x73625140]
  %2520 = vst [vmem:[#allocation1] ss:$4 sm:$0xff] %v2370
  %2521 = vst [vmem:[%s2444] ss:$4 sm:$0xff] %v2371
  %2522 = vst [vmem:[%s2446] ss:$4 sm:$0xff] %v2372
  %2523 = vst [vmem:[%s2448] ss:$4 sm:$0xff] %v2373
  %2524 = vst [vmem:[%s2450] ss:$4 sm:$0xff] %v2374
  %2525 = vst [vmem:[%s2452] ss:$4 sm:$0xff] %v2375
  %2526 = vst [vmem:[%s2454] ss:$4 sm:$0xff] %v2376
  %2527 = vst [vmem:[%s2456] ss:$4 sm:$0xff] %v2377
  %v2528 = vld.sshfl [vmem:[#allocation1] sm:$0xff pattern:$0x73625140]
  %v2529 = vld.sshfl [vmem:[#allocation1 + $0x20] sm:$0xff pattern:$0x73625140]
  %vm2530 = vcmask 293888
  %v2531 = vsel %vm2530, %v2458, 0
  %v2533 = vsel %vm2530, %v2459, 0
  %v2535 = vsel %vm2530, %v2468, 0
  %v2537 = vsel %vm2530, %v2469, 0
  %v2539 = vsel %vm2530, %v2478, 0
  %v2541 = vsel %vm2530, %v2479, 0
  %v2543 = vsel %vm2530, %v2488, 0
  %v2545 = vsel %vm2530, %v2489, 0
  %v2547 = vsel %vm2530, %v2498, 0
  %v2549 = vsel %vm2530, %v2499, 0
  %v2551 = vsel %vm2530, %v2508, 0
  %v2553 = vsel %vm2530, %v2509, 0
  %v2555 = vsel %vm2530, %v2518, 0
  %v2557 = vsel %vm2530, %v2519, 0
  %v2559 = vsel %vm2530, %v2528, 0
  %v2561 = vsel %vm2530, %v2529, 0
  %vm2563 = vcmask 1043456
  %v2565 = vsel %vm2563, %v418, 0
  %2567 = vmatpush.msra.mxu0 0.0
  %2568 = vmatpush.msra.mxu0 0.0
  %2569 = vmatpush.msra.mxu0 0.0
  %2570 = vmatpush.msra.mxu0 0.0
  %2571 = vmatpush.msra.mxu0 0.0
  %2572 = vmatpush.msra.mxu0 0.0
  %2573 = vmatpush.msra.mxu0 0.0
  %2574 = vmatpush.msra.mxu0 0.0
  %2575 = vmatpush.msra.mxu0 0.0
  %2576 = vmatpush.msra.mxu0 0.0
  %2577 = vmatpush.msra.mxu0 0.0
  %2578 = vmatpush.msra.mxu0 %v2565
  %2579 = vmatpush.msra.mxu0 %v417
  %2580 = vmatpush.msra.mxu0 %v416
  %2581 = vmatpush.msra.mxu0 %v415
  %2582 = vmatpush.msra.mxu0 %v414
  %2583 = vmatmul.f32.gmra.mxu0 %v2531
  %v2584 = vpop.f32.mrf.mxu0
  %v2585 = vadd.f32 %v2378, %v2584
  %2586 = vmatmul.f32.gmra.mxu0 %v2533
  %v2587 = vpop.f32.mrf.mxu0
  %v2588 = vadd.f32 %v2378, %v2587
  %2589 = vmatmul.f32.gmra.mxu0 %v2535
  %v2590 = vpop.f32.mrf.mxu0
  %v2591 = vadd.f32 %v2378, %v2590
  %2592 = vmatmul.f32.gmra.mxu0 %v2537
  %v2593 = vpop.f32.mrf.mxu0
  %v2594 = vadd.f32 %v2378, %v2593
  %2595 = vmatmul.f32.gmra.mxu0 %v2539
  %v2596 = vpop.f32.mrf.mxu0
  %v2597 = vadd.f32 %v2378, %v2596
  %2598 = vmatmul.f32.gmra.mxu0 %v2541
  %v2599 = vpop.f32.mrf.mxu0
  %v2600 = vadd.f32 %v2378, %v2599
  %2601 = vmatmul.f32.gmra.mxu0 %v2543
  %v2602 = vpop.f32.mrf.mxu0
  %v2603 = vadd.f32 %v2378, %v2602
  %2604 = vmatmul.f32.gmra.mxu0 %v2545
  %v2605 = vpop.f32.mrf.mxu0
  %v2606 = vadd.f32 %v2378, %v2605
  %2607 = vmatmul.f32.gmra.mxu0 %v2547
  %v2608 = vpop.f32.mrf.mxu0
  %v2609 = vadd.f32 %v2378, %v2608
  %2610 = vmatmul.f32.gmra.mxu0 %v2549
  %v2611 = vpop.f32.mrf.mxu0
  %v2612 = vadd.f32 %v2378, %v2611
  %2613 = vmatmul.f32.gmra.mxu0 %v2551
  %v2614 = vpop.f32.mrf.mxu0
  %v2615 = vadd.f32 %v2378, %v2614
  %2616 = vmatmul.f32.gmra.mxu0 %v2553
  %v2617 = vpop.f32.mrf.mxu0
  %v2618 = vadd.f32 %v2378, %v2617
  %2619 = vmatmul.f32.gmra.mxu0 %v2555
  %v2620 = vpop.f32.mrf.mxu0
  %v2621 = vadd.f32 %v2378, %v2620
  %2622 = vmatmul.f32.gmra.mxu0 %v2557
  %v2623 = vpop.f32.mrf.mxu0
  %v2624 = vadd.f32 %v2378, %v2623
  %2625 = vmatmul.f32.gmra.mxu0 %v2559
  %v2626 = vpop.f32.mrf.mxu0
  %v2627 = vadd.f32 %v2378, %v2626
  %2628 = vmatmul.f32.gmra.mxu0 %v2561
  %v2629 = vpop.f32.mrf.mxu0
  %v2630 = vadd.f32 %v2378, %v2629
  %2631 = vdwg.mxu0
  %vm2632 = vcmp.gt.f32.partialorder %v2585, 0.0
  %vm2633 = vcmp.gt.f32.partialorder %v2588, 0.0
  %vm2634 = vcmp.gt.f32.partialorder %v2591, 0.0
  %vm2635 = vcmp.gt.f32.partialorder %v2594, 0.0
  %vm2636 = vcmp.gt.f32.partialorder %v2597, 0.0
  %vm2637 = vcmp.gt.f32.partialorder %v2600, 0.0
  %vm2638 = vcmp.gt.f32.partialorder %v2603, 0.0
  %vm2639 = vcmp.gt.f32.partialorder %v2606, 0.0
  %vm2640 = vcmp.gt.f32.partialorder %v2609, 0.0
  %vm2641 = vcmp.gt.f32.partialorder %v2612, 0.0
  %vm2642 = vcmp.gt.f32.partialorder %v2615, 0.0
  %vm2643 = vcmp.gt.f32.partialorder %v2618, 0.0
  %vm2644 = vcmp.gt.f32.partialorder %v2621, 0.0
  %vm2645 = vcmp.gt.f32.partialorder %v2624, 0.0
  %vm2646 = vcmp.gt.f32.partialorder %v2627, 0.0
  %vm2647 = vcmp.gt.f32.partialorder %v2630, 0.0
  %v2648 = vmul.f32 %v2585, 1.442695
  %v2649 = vpow.pop %v2648
  %v2650 = vmul.f32 %v2588, 1.442695
  %v2651 = vpow.pop %v2650
  %v2652 = vmul.f32 %v2591, 1.442695
  %v2653 = vpow.pop %v2652
  %v2654 = vmul.f32 %v2594, 1.442695
  %v2655 = vpow.pop %v2654
  %v2656 = vmul.f32 %v2597, 1.442695
  %v2657 = vpow.pop %v2656
  %v2658 = vmul.f32 %v2600, 1.442695
  %v2659 = vpow.pop %v2658
  %v2660 = vmul.f32 %v2603, 1.442695
  %v2661 = vpow.pop %v2660
  %v2662 = vmul.f32 %v2606, 1.442695
  %v2663 = vpow.pop %v2662
  %v2664 = vmul.f32 %v2609, 1.442695
  %v2665 = vpow.pop %v2664
  %v2666 = vmul.f32 %v2612, 1.442695
  %v2667 = vpow.pop %v2666
  %v2668 = vmul.f32 %v2615, 1.442695
  %v2669 = vpow.pop %v2668
  %v2670 = vmul.f32 %v2618, 1.442695
  %v2671 = vpow.pop %v2670
  %v2672 = vmul.f32 %v2621, 1.442695
  %v2673 = vpow.pop %v2672
  %v2674 = vmul.f32 %v2624, 1.442695
  %v2675 = vpow.pop %v2674
  %v2676 = vmul.f32 %v2627, 1.442695
  %v2677 = vpow.pop %v2676
  %v2678 = vmul.f32 %v2630, 1.442695
  %v2679 = vpow.pop %v2678
  %v2680 = vsub.f32 %v2649, 1.0
  %v2681 = vsub.f32 %v2651, 1.0
  %v2682 = vsub.f32 %v2653, 1.0
  %v2683 = vsub.f32 %v2655, 1.0
  %v2684 = vsub.f32 %v2657, 1.0
  %v2685 = vsub.f32 %v2659, 1.0
  %v2686 = vsub.f32 %v2661, 1.0
  %v2687 = vsub.f32 %v2663, 1.0
  %v2688 = vsub.f32 %v2665, 1.0
  %v2689 = vsub.f32 %v2667, 1.0
  %v2690 = vsub.f32 %v2669, 1.0
  %v2691 = vsub.f32 %v2671, 1.0
  %v2692 = vsub.f32 %v2673, 1.0
  %v2693 = vsub.f32 %v2675, 1.0
  %v2694 = vsub.f32 %v2677, 1.0
  %v2695 = vsub.f32 %v2679, 1.0
  %v2696 = vsel %vm2632, %v2585, %v2680
  %v2697 = vsel %vm2633, %v2588, %v2681
  %v2698 = vsel %vm2634, %v2591, %v2682
  %v2699 = vsel %vm2635, %v2594, %v2683
  %v2700 = vsel %vm2636, %v2597, %v2684
  %v2701 = vsel %vm2637, %v2600, %v2685
  %v2702 = vsel %vm2638, %v2603, %v2686
  %v2703 = vsel %vm2639, %v2606, %v2687
  %v2704 = vsel %vm2640, %v2609, %v2688
  %v2705 = vsel %vm2641, %v2612, %v2689
  %v2706 = vsel %vm2642, %v2615, %v2690
  %v2707 = vsel %vm2643, %v2618, %v2691
  %v2708 = vsel %vm2644, %v2621, %v2692
  %v2709 = vsel %vm2645, %v2624, %v2693
  %v2710 = vsel %vm2646, %v2627, %v2694
  %v2711 = vsel %vm2647, %v2630, %v2695
  %v2728 = vrot.slane %v2696, 2
  %v2729 = vrot.slane %v2696, 4
  %v2730 = vrot.slane %v2696, 6
  %v2731 = vrot.slane %v2697, 2
  %v2732 = vrot.slane %v2697, 4
  %v2733 = vrot.slane %v2697, 6
  %v2734 = vrot.slane %v2698, 2
  %v2735 = vrot.slane %v2698, 4
  %v2736 = vrot.slane %v2698, 6
  %v2737 = vrot.slane %v2699, 2
  %v2738 = vrot.slane %v2699, 4
  %v2739 = vrot.slane %v2699, 6
  %v2740 = vrot.slane %v2700, 2
  %v2741 = vrot.slane %v2700, 4
  %v2742 = vrot.slane %v2700, 6
  %v2743 = vrot.slane %v2701, 2
  %v2744 = vrot.slane %v2701, 4
  %v2745 = vrot.slane %v2701, 6
  %v2746 = vrot.slane %v2702, 2
  %v2747 = vrot.slane %v2702, 4
  %v2748 = vrot.slane %v2702, 6
  %v2749 = vrot.slane %v2703, 2
  %v2750 = vrot.slane %v2703, 4
  %v2751 = vrot.slane %v2703, 6
  %v2752 = vrot.slane %v2704, 2
  %v2753 = vrot.slane %v2704, 4
  %v2754 = vrot.slane %v2704, 6
  %v2755 = vrot.slane %v2705, 2
  %v2756 = vrot.slane %v2705, 4
  %v2757 = vrot.slane %v2705, 6
  %v2758 = vrot.slane %v2706, 2
  %v2759 = vrot.slane %v2706, 4
  %v2760 = vrot.slane %v2706, 6
  %v2761 = vrot.slane %v2707, 2
  %v2762 = vrot.slane %v2707, 4
  %v2763 = vrot.slane %v2707, 6
  %v2764 = vrot.slane %v2708, 2
  %v2765 = vrot.slane %v2708, 4
  %v2766 = vrot.slane %v2708, 6
  %v2767 = vrot.slane %v2709, 2
  %v2768 = vrot.slane %v2709, 4
  %v2769 = vrot.slane %v2709, 6
  %v2770 = vrot.slane %v2710, 2
  %v2771 = vrot.slane %v2710, 4
  %v2772 = vrot.slane %v2710, 6
  %v2773 = vrot.slane %v2711, 2
  %v2774 = vrot.slane %v2711, 4
  %v2775 = vrot.slane %v2711, 6
  %v2793 = vld [vmem:[%s3] sm:$0xff]
  %v2794 = vld [vmem:[%s3 + $0x8] sm:$0xff]
  %v2795 = vld [vmem:[%s3 + $0x10] sm:$0xff]
  %v2796 = vld [vmem:[%s3 + $0x18] sm:$0xff]
  %v2797 = vld [vmem:[%s3 + $0x20] sm:$0xff]
  %v2798 = vld [vmem:[%s3 + $0x28] sm:$0xff]
  %v2799 = vld [vmem:[%s3 + $0x30] sm:$0xff]
  %v2800 = vld [vmem:[%s3 + $0x38] sm:$0xff]
  %v2801 = vld [vmem:[%s3 + $0x40] sm:$0xff]
  %v2802 = vld [vmem:[%s3 + $0x48] sm:$0xff]
  %v2803 = vld [vmem:[%s3 + $0x50] sm:$0xff]
  %v2804 = vld [vmem:[%s3 + $0x58] sm:$0xff]
  %v2805 = vld [vmem:[%s3 + $0x60] sm:$0xff]
  %v2806 = vld [vmem:[%s3 + $0x68] sm:$0xff]
  %v2807 = vld [vmem:[%s3 + $0x70] sm:$0xff]
  %v2808 = vld [vmem:[%s3 + $0x78] sm:$0xff]
  %v2809 = vld [vmem:[%s3 + $0x80] sm:$0xff]
  %v2810 = vld [vmem:[%s3 + $0x88] sm:$0xff]
  %v2811 = vld [vmem:[%s3 + $0x90] sm:$0xff]
  %v2812 = vld [vmem:[%s3 + $0x98] sm:$0xff]
  %v2813 = vld [vmem:[%s3 + $0xa0] sm:$0xff]
  %v2814 = vld [vmem:[%s3 + $0xa8] sm:$0xff]
  %v2815 = vld [vmem:[%s3 + $0xb0] sm:$0xff]
  %v2816 = vld [vmem:[%s3 + $0xb8] sm:$0xff]
  %v2817 = vld [vmem:[%s3 + $0xc0] sm:$0xff]
  %v2818 = vld [vmem:[%s3 + $0xc8] sm:$0xff]
  %v2819 = vld [vmem:[%s3 + $0xd0] sm:$0xff]
  %v2820 = vld [vmem:[%s3 + $0xd8] sm:$0xff]
  %v2821 = vld [vmem:[%s3 + $0xe0] sm:$0xff]
  %v2822 = vld [vmem:[%s3 + $0xe8] sm:$0xff]
  %v2823 = vld [vmem:[%s3 + $0xf0] sm:$0xff]
  %v2824 = vld [vmem:[%s3 + $0xf8] sm:$0xff]
  %v2825 = vld [vmem:[%s3 + $0x100] sm:$0xff]
  %v2826 = vld [vmem:[%s3 + $0x108] sm:$0xff]
  %v2827 = vld [vmem:[%s3 + $0x110] sm:$0xff]
  %v2828 = vld [vmem:[%s3 + $0x118] sm:$0xff]
  %2829 = vrot.lane.b32.xlu0 0.0, 32
  %v2830 = vpop.permute.xlu0 %2829
  %2831 = vrot.lane.b32.xlu0 %v2698, 32
  %v2832 = vpop.permute.xlu0 %2831
  %2833 = vrot.lane.b32.xlu0 %v2735, 32
  %v2834 = vpop.permute.xlu0 %2833
  %2835 = vrot.lane.b32.xlu0 %v2699, 32
  %v2836 = vpop.permute.xlu0 %2835
  %2837 = vrot.lane.b32.xlu0 %v2738, 32
  %v2838 = vpop.permute.xlu0 %2837
  %2839 = vrot.lane.b32.xlu0 %v2702, 32
  %v2840 = vpop.permute.xlu0 %2839
  %2841 = vrot.lane.b32.xlu0 %v2747, 32
  %v2842 = vpop.permute.xlu0 %2841
  %2843 = vrot.lane.b32.xlu0 %v2703, 32
  %v2844 = vpop.permute.xlu0 %2843
  %2845 = vrot.lane.b32.xlu0 %v2750, 32
  %v2846 = vpop.permute.xlu0 %2845
  %2847 = vrot.lane.b32.xlu0 %v2706, 32
  %v2848 = vpop.permute.xlu0 %2847
  %2849 = vrot.lane.b32.xlu0 %v2759, 32
  %v2850 = vpop.permute.xlu0 %2849
  %2851 = vrot.lane.b32.xlu0 %v2707, 32
  %v2852 = vpop.permute.xlu0 %2851
  %2853 = vrot.lane.b32.xlu0 %v2762, 32
  %v2854 = vpop.permute.xlu0 %2853
  %2868 = vrot.lane.b32.xlu0 0.0, 64
  %v2869 = vpop.permute.xlu0 %2868
  %2870 = vrot.lane.b32.xlu0 %v2734, 64
  %v2871 = vpop.permute.xlu0 %2870
  %2872 = vrot.lane.b32.xlu0 %v2736, 64
  %v2873 = vpop.permute.xlu0 %2872
  %2874 = vrot.lane.b32.xlu0 %v2737, 64
  %v2875 = vpop.permute.xlu0 %2874
  %2876 = vrot.lane.b32.xlu0 %v2739, 64
  %v2877 = vpop.permute.xlu0 %2876
  %2878 = vrot.lane.b32.xlu0 %v2746, 64
  %v2879 = vpop.permute.xlu0 %2878
  %2880 = vrot.lane.b32.xlu0 %v2748, 64
  %v2881 = vpop.permute.xlu0 %2880
  %2882 = vrot.lane.b32.xlu0 %v2749, 64
  %v2883 = vpop.permute.xlu0 %2882
  %2884 = vrot.lane.b32.xlu0 %v2751, 64
  %v2885 = vpop.permute.xlu0 %2884
  %2886 = vrot.lane.b32.xlu0 %v2758, 64
  %v2887 = vpop.permute.xlu0 %2886
  %2888 = vrot.lane.b32.xlu0 %v2760, 64
  %v2889 = vpop.permute.xlu0 %2888
  %2890 = vrot.lane.b32.xlu0 %v2761, 64
  %v2891 = vpop.permute.xlu0 %2890
  %2892 = vrot.lane.b32.xlu0 %v2763, 64
  %v2893 = vpop.permute.xlu0 %2892
  %2907 = vrot.lane.b32.xlu0 0.0, 96
  %v2908 = vpop.permute.xlu0 %2907
  %2909 = vrot.lane.b32.xlu0 %v2728, 96
  %v2910 = vpop.permute.xlu0 %2909
  %2911 = vrot.lane.b32.xlu0 %v2730, 96
  %v2912 = vpop.permute.xlu0 %2911
  %2913 = vrot.lane.b32.xlu0 %v2731, 96
  %v2914 = vpop.permute.xlu0 %2913
  %2915 = vrot.lane.b32.xlu0 %v2740, 96
  %v2916 = vpop.permute.xlu0 %2915
  %2917 = vrot.lane.b32.xlu0 %v2742, 96
  %v2918 = vpop.permute.xlu0 %2917
  %2919 = vrot.lane.b32.xlu0 %v2743, 96
  %v2920 = vpop.permute.xlu0 %2919
  %2921 = vrot.lane.b32.xlu0 %v2752, 96
  %v2922 = vpop.permute.xlu0 %2921
  %2923 = vrot.lane.b32.xlu0 %v2754, 96
  %v2924 = vpop.permute.xlu0 %2923
  %2925 = vrot.lane.b32.xlu0 %v2755, 96
  %v2926 = vpop.permute.xlu0 %2925
  %2927 = vrot.lane.b32.xlu0 %v2764, 96
  %v2928 = vpop.permute.xlu0 %2927
  %2929 = vrot.lane.b32.xlu0 %v2766, 96
  %v2930 = vpop.permute.xlu0 %2929
  %2931 = vrot.lane.b32.xlu0 %v2767, 96
  %v2932 = vpop.permute.xlu0 %2931
  %2946 = vrot.lane.b32.xlu0 %v2728, 32
  %v2947 = vpop.permute.xlu0 %2946
  %2948 = vrot.lane.b32.xlu0 %v2730, 32
  %v2949 = vpop.permute.xlu0 %2948
  %2950 = vrot.lane.b32.xlu0 %v2731, 32
  %v2951 = vpop.permute.xlu0 %2950
  %2952 = vrot.lane.b32.xlu0 %v2733, 32
  %v2953 = vpop.permute.xlu0 %2952
  %2954 = vrot.lane.b32.xlu0 %v2740, 32
  %v2955 = vpop.permute.xlu0 %2954
  %2956 = vrot.lane.b32.xlu0 %v2742, 32
  %v2957 = vpop.permute.xlu0 %2956
  %2958 = vrot.lane.b32.xlu0 %v2743, 32
  %v2959 = vpop.permute.xlu0 %2958
  %2960 = vrot.lane.b32.xlu0 %v2745, 32
  %v2961 = vpop.permute.xlu0 %2960
  %2962 = vrot.lane.b32.xlu0 %v2752, 32
  %v2963 = vpop.permute.xlu0 %2962
  %2964 = vrot.lane.b32.xlu0 %v2754, 32
  %v2965 = vpop.permute.xlu0 %2964
  %2966 = vrot.lane.b32.xlu0 %v2755, 32
  %v2967 = vpop.permute.xlu0 %2966
  %2968 = vrot.lane.b32.xlu0 %v2757, 32
  %v2969 = vpop.permute.xlu0 %2968
  %2970 = vrot.lane.b32.xlu0 %v2764, 32
  %v2971 = vpop.permute.xlu0 %2970
  %2972 = vrot.lane.b32.xlu0 %v2766, 32
  %v2973 = vpop.permute.xlu0 %2972
  %2974 = vrot.lane.b32.xlu0 %v2767, 32
  %v2975 = vpop.permute.xlu0 %2974
  %2976 = vrot.lane.b32.xlu0 %v2769, 32
  %v2977 = vpop.permute.xlu0 %2976
  %2994 = vrot.lane.b32.xlu0 %v2770, 64
  %v2995 = vpop.permute.xlu0 %2994
  %2996 = vrot.lane.b32.xlu0 %v2772, 64
  %v2997 = vpop.permute.xlu0 %2996
  %2998 = vrot.lane.b32.xlu0 %v2773, 64
  %v2999 = vpop.permute.xlu0 %2998
  %3003 = vrot.lane.b32.xlu0 %v2698, 96
  %v3004 = vpop.permute.xlu0 %3003
  %3005 = vrot.lane.b32.xlu0 %v2735, 96
  %v3006 = vpop.permute.xlu0 %3005
  %3007 = vrot.lane.b32.xlu0 %v2699, 96
  %v3008 = vpop.permute.xlu0 %3007
  %3009 = vrot.lane.b32.xlu0 %v2738, 96
  %v3010 = vpop.permute.xlu0 %3009
  %3011 = vrot.lane.b32.xlu0 %v2702, 96
  %v3012 = vpop.permute.xlu0 %3011
  %3013 = vrot.lane.b32.xlu0 %v2747, 96
  %v3014 = vpop.permute.xlu0 %3013
  %3015 = vrot.lane.b32.xlu0 %v2703, 96
  %v3016 = vpop.permute.xlu0 %3015
  %3017 = vrot.lane.b32.xlu0 %v2750, 96
  %v3018 = vpop.permute.xlu0 %3017
  %3019 = vrot.lane.b32.xlu0 %v2706, 96
  %v3020 = vpop.permute.xlu0 %3019
  %3021 = vrot.lane.b32.xlu0 %v2759, 96
  %v3022 = vpop.permute.xlu0 %3021
  %3023 = vrot.lane.b32.xlu0 %v2707, 96
  %v3024 = vpop.permute.xlu0 %3023
  %3025 = vrot.lane.b32.xlu0 %v2762, 96
  %v3026 = vpop.permute.xlu0 %3025
  %3027 = vrot.lane.b32.xlu0 %v2710, 96
  %v3028 = vpop.permute.xlu0 %3027
  %3029 = vrot.lane.b32.xlu0 %v2771, 96
  %v3030 = vpop.permute.xlu0 %3029
  %3031 = vrot.lane.b32.xlu0 %v2711, 96
  %v3032 = vpop.permute.xlu0 %3031
  %3033 = vrot.lane.b32.xlu0 %v2774, 96
  %v3034 = vpop.permute.xlu0 %3033
  %v3051 = vsel %vm2313, 0.0, %v2830
  %v3052 = vsel %vm2313, 0.0, %v2832
  %v3053 = vsel %vm2313, %v2734, %v2834
  %v3054 = vsel %vm2313, %v2736, %v2836
  %v3055 = vsel %vm2313, %v2737, %v2838
  %v3056 = vsel %vm2313, 0.0, %v2840
  %v3057 = vsel %vm2313, %v2746, %v2842
  %v3058 = vsel %vm2313, %v2748, %v2844
  %v3059 = vsel %vm2313, %v2749, %v2846
  %v3060 = vsel %vm2313, 0.0, %v2848
  %v3061 = vsel %vm2313, %v2758, %v2850
  %v3062 = vsel %vm2313, %v2760, %v2852
  %v3063 = vsel %vm2313, %v2761, %v2854
  %vm3064 = vcmask 523264
  %v3065 = vsel %vm3064, %v3051, %v2869
  %v3066 = vsel %vm3064, %v3052, %v2871
  %v3067 = vsel %vm3064, %v3053, %v2873
  %v3068 = vsel %vm3064, %v3054, %v2875
  %v3069 = vsel %vm3064, %v3055, %v2877
  %v3070 = vsel %vm3064, %v3056, %v2879
  %v3071 = vsel %vm3064, %v3057, %v2881
  %v3072 = vsel %vm3064, %v3058, %v2883
  %v3073 = vsel %vm3064, %v3059, %v2885
  %v3074 = vsel %vm3064, %v3060, %v2887
  %v3075 = vsel %vm3064, %v3061, %v2889
  %v3076 = vsel %vm3064, %v3062, %v2891
  %v3077 = vsel %vm3064, %v3063, %v2893
  %vm3078 = vcmask 785408
  %v3079 = vsel %vm3078, %v3065, %v2908
  %v3080 = vsel %vm3078, %v3065, %v2910
  %v3081 = vsel %vm3078, %v3065, %v2912
  %v3082 = vsel %vm3078, %v3065, %v2914
  %v3083 = vsel %vm3078, %v3066, %v2908
  %v3084 = vsel %vm3078, %v3067, %v2916
  %v3085 = vsel %vm3078, %v3068, %v2918
  %v3086 = vsel %vm3078, %v3069, %v2920
  %v3087 = vsel %vm3078, %v3070, %v2908
  %v3088 = vsel %vm3078, %v3071, %v2922
  %v3089 = vsel %vm3078, %v3072, %v2924
  %v3090 = vsel %vm3078, %v3073, %v2926
  %v3091 = vsel %vm3078, %v3074, %v2908
  %v3092 = vsel %vm3078, %v3075, %v2928
  %v3093 = vsel %vm3078, %v3076, %v2930
  %v3094 = vsel %vm3078, %v3077, %v2932
  %v3095 = vsel %vm2313, %v2696, %v2947
  %v3096 = vsel %vm2313, %v2729, %v2949
  %v3097 = vsel %vm2313, %v2697, %v2951
  %v3098 = vsel %vm2313, %v2732, %v2953
  %v3099 = vsel %vm2313, %v2700, %v2955
  %v3100 = vsel %vm2313, %v2741, %v2957
  %v3101 = vsel %vm2313, %v2701, %v2959
  %v3102 = vsel %vm2313, %v2744, %v2961
  %v3103 = vsel %vm2313, %v2704, %v2963
  %v3104 = vsel %vm2313, %v2753, %v2965
  %v3105 = vsel %vm2313, %v2705, %v2967
  %v3106 = vsel %vm2313, %v2756, %v2969
  %v3107 = vsel %vm2313, %v2708, %v2971
  %v3108 = vsel %vm2313, %v2765, %v2973
  %v3109 = vsel %vm2313, %v2709, %v2975
  %v3110 = vsel %vm2313, %v2768, %v2977
  %v3111 = vsel %vm3064, %v3095, %v2869
  %v3112 = vsel %vm3064, %v3096, %v2871
  %v3113 = vsel %vm3064, %v3097, %v2873
  %v3114 = vsel %vm3064, %v3098, %v2875
  %v3115 = vsel %vm3064, %v3099, %v2869
  %v3116 = vsel %vm3064, %v3100, %v2879
  %v3117 = vsel %vm3064, %v3101, %v2881
  %v3118 = vsel %vm3064, %v3102, %v2883
  %v3119 = vsel %vm3064, %v3103, %v2869
  %v3120 = vsel %vm3064, %v3104, %v2887
  %v3121 = vsel %vm3064, %v3105, %v2889
  %v3122 = vsel %vm3064, %v3106, %v2891
  %v3123 = vsel %vm3064, %v3107, %v2869
  %v3124 = vsel %vm3064, %v3108, %v2995
  %v3125 = vsel %vm3064, %v3109, %v2997
  %v3126 = vsel %vm3064, %v3110, %v2999
  %v3127 = vsel %vm3078, %v3111, %v3004
  %v3128 = vsel %vm3078, %v3112, %v3006
  %v3129 = vsel %vm3078, %v3113, %v3008
  %v3130 = vsel %vm3078, %v3114, %v3010
  %v3131 = vsel %vm3078, %v3115, %v3012
  %v3132 = vsel %vm3078, %v3116, %v3014
  %v3133 = vsel %vm3078, %v3117, %v3016
  %v3134 = vsel %vm3078, %v3118, %v3018
  %v3135 = vsel %vm3078, %v3119, %v3020
  %v3136 = vsel %vm3078, %v3120, %v3022
  %v3137 = vsel %vm3078, %v3121, %v3024
  %v3138 = vsel %vm3078, %v3122, %v3026
  %v3139 = vsel %vm3078, %v3123, %v3028
  %v3140 = vsel %vm3078, %v3124, %v3030
  %v3141 = vsel %vm3078, %v3125, %v3032
  %v3142 = vsel %vm3078, %v3126, %v3034
  %v3175 = vrot.slane %v3127, 6
  %v3176 = vrot.slane %v2734, 4
  %v3177 = vrot.slane %v3128, 6
  %v3178 = vrot.slane %v2736, 4
  %v3179 = vrot.slane %v3129, 6
  %v3180 = vrot.slane %v2737, 4
  %v3181 = vrot.slane %v3130, 6
  %v3182 = vrot.slane %v2739, 4
  %v3183 = vrot.slane %v3131, 6
  %v3184 = vrot.slane %v2746, 4
  %v3185 = vrot.slane %v3132, 6
  %v3186 = vrot.slane %v2748, 4
  %v3187 = vrot.slane %v3133, 6
  %v3188 = vrot.slane %v2749, 4
  %v3189 = vrot.slane %v3134, 6
  %v3190 = vrot.slane %v2751, 4
  %v3191 = vrot.slane %v3135, 6
  %v3192 = vrot.slane %v2758, 4
  %v3193 = vrot.slane %v3136, 6
  %v3194 = vrot.slane %v2760, 4
  %v3195 = vrot.slane %v3137, 6
  %v3196 = vrot.slane %v2761, 4
  %v3197 = vrot.slane %v3138, 6
  %v3198 = vrot.slane %v2763, 4
  %v3199 = vrot.slane %v3139, 6
  %v3200 = vrot.slane %v2770, 4
  %v3201 = vrot.slane %v3140, 6
  %v3202 = vrot.slane %v2772, 4
  %v3203 = vrot.slane %v3141, 6
  %v3204 = vrot.slane %v2773, 4
  %v3205 = vrot.slane %v3142, 6
  %v3206 = vrot.slane %v2775, 4
  %vm3207 = vcmask 1041408
  %v3208 = vsel %vm3207, %v3079, %v3175
  %v3209 = vsel %vm2563, %v3208, %v3176
  %v3210 = vsel %vm3207, %v3080, %v3177
  %v3211 = vsel %vm2563, %v3210, %v3178
  %v3212 = vsel %vm3207, %v3081, %v3179
  %v3213 = vsel %vm2563, %v3212, %v3180
  %v3214 = vsel %vm3207, %v3082, %v3181
  %v3215 = vsel %vm2563, %v3214, %v3182
  %v3216 = vsel %vm3207, %v3083, %v3183
  %v3217 = vsel %vm2563, %v3216, %v3184
  %v3218 = vsel %vm3207, %v3084, %v3185
  %v3219 = vsel %vm2563, %v3218, %v3186
  %v3220 = vsel %vm3207, %v3085, %v3187
  %v3221 = vsel %vm2563, %v3220, %v3188
  %v3222 = vsel %vm3207, %v3086, %v3189
  %v3223 = vsel %vm2563, %v3222, %v3190
  %v3224 = vsel %vm3207, %v3087, %v3191
  %v3225 = vsel %vm2563, %v3224, %v3192
  %v3226 = vsel %vm3207, %v3088, %v3193
  %v3227 = vsel %vm2563, %v3226, %v3194
  %v3228 = vsel %vm3207, %v3089, %v3195
  %v3229 = vsel %vm2563, %v3228, %v3196
  %v3230 = vsel %vm3207, %v3090, %v3197
  %v3231 = vsel %vm2563, %v3230, %v3198
  %v3232 = vsel %vm3207, %v3091, %v3199
  %v3233 = vsel %vm2563, %v3232, %v3200
  %v3234 = vsel %vm3207, %v3092, %v3201
  %v3235 = vsel %vm2563, %v3234, %v3202
  %v3236 = vsel %vm3207, %v3093, %v3203
  %v3237 = vsel %vm2563, %v3236, %v3204
  %v3238 = vsel %vm3207, %v3094, %v3205
  %v3239 = vsel %vm2563, %v3238, %v3206
  %v3240 = vperm.slane %v44, 1
  %3241 = vst [vmem:[#allocation1] ss:$4 sm:$0xff] %v3209
  %s3242 = scalar_lea.vmem [#allocation1], 1
  %3243 = vst [vmem:[%s3242] ss:$4 sm:$0xff] %v3211
  %s3244 = scalar_lea.vmem [#allocation1], 2
  %3245 = vst [vmem:[%s3244] ss:$4 sm:$0xff] %v3213
  %s3246 = scalar_lea.vmem [#allocation1], 3
  %3247 = vst [vmem:[%s3246] ss:$4 sm:$0xff] %v3215
  %s3248 = scalar_lea.vmem [#allocation1], 32
  %3249 = vst [vmem:[%s3248] ss:$4 sm:$0xff] %v3217
  %s3250 = scalar_lea.vmem [#allocation1], 33
  %3251 = vst [vmem:[%s3250] ss:$4 sm:$0xff] %v3219
  %s3252 = scalar_lea.vmem [#allocation1], 34
  %3253 = vst [vmem:[%s3252] ss:$4 sm:$0xff] %v3221
  %s3254 = scalar_lea.vmem [#allocation1], 35
  %3255 = vst [vmem:[%s3254] ss:$4 sm:$0xff] %v3223
  %v3256 = vld.sshfl [vmem:[#allocation1] sm:$0xff pattern:$0x73625140]
  %v3257 = vld.sshfl [vmem:[#allocation1 + $0x8] sm:$0xff pattern:$0x73625140]
  %v3258 = vld.sshfl [vmem:[#allocation1 + $0x10] sm:$0xff pattern:$0x73625140]
  %v3259 = vld.sshfl [vmem:[#allocation1 + $0x20] sm:$0xff pattern:$0x73625140]
  %v3260 = vld.sshfl [vmem:[#allocation1 + $0x28] sm:$0xff pattern:$0x73625140]
  %v3261 = vld.sshfl [vmem:[#allocation1 + $0x30] sm:$0xff pattern:$0x73625140]
  %3262 = vst [vmem:[#allocation1] ss:$4 sm:$0xff] %v3225
  %3263 = vst [vmem:[%s3242] ss:$4 sm:$0xff] %v3227
  %3264 = vst [vmem:[%s3244] ss:$4 sm:$0xff] %v3229
  %3265 = vst [vmem:[%s3246] ss:$4 sm:$0xff] %v3231
  %3266 = vst [vmem:[%s3248] ss:$4 sm:$0xff] %v3233
  %3267 = vst [vmem:[%s3250] ss:$4 sm:$0xff] %v3235
  %3268 = vst [vmem:[%s3252] ss:$4 sm:$0xff] %v3237
  %3269 = vst [vmem:[%s3254] ss:$4 sm:$0xff] %v3239
  %v3270 = vld.sshfl [vmem:[#allocation1] sm:$0xff pattern:$0x73625140]
  %v3271 = vld.sshfl [vmem:[#allocation1 + $0x8] sm:$0xff pattern:$0x73625140]
  %v3272 = vld.sshfl [vmem:[#allocation1 + $0x10] sm:$0xff pattern:$0x73625140]
  %v3273 = vld.sshfl [vmem:[#allocation1 + $0x20] sm:$0xff pattern:$0x73625140]
  %v3274 = vld.sshfl [vmem:[#allocation1 + $0x28] sm:$0xff pattern:$0x73625140]
  %v3275 = vld.sshfl [vmem:[#allocation1 + $0x30] sm:$0xff pattern:$0x73625140]
  %v3284 = vsel %vm2313, %v3258, 0
  %v3286 = vsel %vm2313, %v3261, 0
  %v3288 = vsel %vm2313, %v3272, 0
  %v3290 = vsel %vm2313, %v3275, 0
  %3292 = vmatpush.msra.mxu0 %v2808
  %3293 = vmatpush.msra.mxu0 %v2807
  %3294 = vmatpush.msra.mxu0 %v2806
  %3295 = vmatpush.msra.mxu0 %v2805
  %3296 = vmatpush.msra.mxu0 %v2804
  %3297 = vmatpush.msra.mxu0 %v2803
  %3298 = vmatpush.msra.mxu0 %v2802
  %3299 = vmatpush.msra.mxu0 %v2801
  %3300 = vmatpush.msra.mxu0 %v2800
  %3301 = vmatpush.msra.mxu0 %v2799
  %3302 = vmatpush.msra.mxu0 %v2798
  %3303 = vmatpush.msra.mxu0 %v2797
  %3304 = vmatpush.msra.mxu0 %v2796
  %3305 = vmatpush.msra.mxu0 %v2795
  %3306 = vmatpush.msra.mxu0 %v2794
  %3307 = vmatpush.msra.mxu0 %v2793
  %3308 = vmatmul.f32.gmra.mxu0 %v3256
  %v3309 = vpop.f32.mrf.mxu0
  %v3310 = vadd.f32 %v3240, %v3309
  %3311 = vmatmul.f32.gmra.mxu0 %v3259
  %v3312 = vpop.f32.mrf.mxu0
  %v3313 = vadd.f32 %v3240, %v3312
  %3314 = vmatmul.f32.gmra.mxu0 %v3270
  %v3315 = vpop.f32.mrf.mxu0
  %v3316 = vadd.f32 %v3240, %v3315
  %3317 = vmatmul.f32.gmra.mxu0 %v3273
  %v3318 = vpop.f32.mrf.mxu0
  %v3319 = vadd.f32 %v3240, %v3318
  %3320 = vdwg.mxu0
  %3321 = vmatpush.msra.mxu0 %v2824
  %3322 = vmatpush.msra.mxu0 %v2823
  %3323 = vmatpush.msra.mxu0 %v2822
  %3324 = vmatpush.msra.mxu0 %v2821
  %3325 = vmatpush.msra.mxu0 %v2820
  %3326 = vmatpush.msra.mxu0 %v2819
  %3327 = vmatpush.msra.mxu0 %v2818
  %3328 = vmatpush.msra.mxu0 %v2817
  %3329 = vmatpush.msra.mxu0 %v2816
  %3330 = vmatpush.msra.mxu0 %v2815
  %3331 = vmatpush.msra.mxu0 %v2814
  %3332 = vmatpush.msra.mxu0 %v2813
  %3333 = vmatpush.msra.mxu0 %v2812
  %3334 = vmatpush.msra.mxu0 %v2811
  %3335 = vmatpush.msra.mxu0 %v2810
  %3336 = vmatpush.msra.mxu0 %v2809
  %3337 = vmatmul.f32.gmra.mxu0 %v3257
  %v3338 = vpop.f32.mrf.mxu0
  %v3339 = vadd.f32 %v3310, %v3338
  %3340 = vmatmul.f32.gmra.mxu0 %v3260
  %v3341 = vpop.f32.mrf.mxu0
  %v3342 = vadd.f32 %v3313, %v3341
  %3343 = vmatmul.f32.gmra.mxu0 %v3271
  %v3344 = vpop.f32.mrf.mxu0
  %v3345 = vadd.f32 %v3316, %v3344
  %3346 = vmatmul.f32.gmra.mxu0 %v3274
  %v3347 = vpop.f32.mrf.mxu0
  %v3348 = vadd.f32 %v3319, %v3347
  %3349 = vdwg.mxu0
  %3350 = vmatpush.msra.mxu0 0.0
  %3351 = vmatpush.msra.mxu0 0.0
  %3352 = vmatpush.msra.mxu0 0.0
  %3353 = vmatpush.msra.mxu0 0.0
  %3354 = vmatpush.msra.mxu0 0.0
  %3355 = vmatpush.msra.mxu0 0.0
  %3356 = vmatpush.msra.mxu0 0.0
  %3357 = vmatpush.msra.mxu0 0.0
  %3358 = vmatpush.msra.mxu0 0.0
  %3359 = vmatpush.msra.mxu0 0.0
  %3360 = vmatpush.msra.mxu0 0.0
  %3361 = vmatpush.msra.mxu0 0.0
  %3362 = vmatpush.msra.mxu0 %v2828
  %3363 = vmatpush.msra.mxu0 %v2827
  %3364 = vmatpush.msra.mxu0 %v2826
  %3365 = vmatpush.msra.mxu0 %v2825
  %3366 = vmatmul.f32.gmra.mxu0 %v3284
  %v3367 = vpop.f32.mrf.mxu0
  %v3368 = vadd.f32 %v3339, %v3367
  %3369 = vmatmul.f32.gmra.mxu0 %v3286
  %v3370 = vpop.f32.mrf.mxu0
  %v3371 = vadd.f32 %v3342, %v3370
  %3372 = vmatmul.f32.gmra.mxu0 %v3288
  %v3373 = vpop.f32.mrf.mxu0
  %v3374 = vadd.f32 %v3345, %v3373
  %3375 = vmatmul.f32.gmra.mxu0 %v3290
  %v3376 = vpop.f32.mrf.mxu0
  %v3377 = vadd.f32 %v3348, %v3376
  %3378 = vdwg.mxu0
  %vm3379 = vcmp.gt.f32.partialorder %v3368, 0.0
  %vm3380 = vcmp.gt.f32.partialorder %v3371, 0.0
  %vm3381 = vcmp.gt.f32.partialorder %v3374, 0.0
  %vm3382 = vcmp.gt.f32.partialorder %v3377, 0.0
  %v3383 = vmul.f32 %v3368, 1.442695
  %v3384 = vpow.pop %v3383
  %v3385 = vmul.f32 %v3371, 1.442695
  %v3386 = vpow.pop %v3385
  %v3387 = vmul.f32 %v3374, 1.442695
  %v3388 = vpow.pop %v3387
  %v3389 = vmul.f32 %v3377, 1.442695
  %v3390 = vpow.pop %v3389
  %v3391 = vsub.f32 %v3384, 1.0
  %v3392 = vsub.f32 %v3386, 1.0
  %v3393 = vsub.f32 %v3388, 1.0
  %v3394 = vsub.f32 %v3390, 1.0
  %v3395 = vsel %vm3379, %v3368, %v3391
  %v3396 = vsel %vm3380, %v3371, %v3392
  %v3397 = vsel %vm3381, %v3374, %v3393
  %v3398 = vsel %vm3382, %v3377, %v3394
  %v3403 = vrot.slane %v3395, 2
  %v3404 = vrot.slane %v3395, 4
  %v3405 = vrot.slane %v3395, 6
  %v3406 = vrot.slane %v3396, 2
  %v3407 = vrot.slane %v3396, 4
  %v3408 = vrot.slane %v3396, 6
  %v3409 = vrot.slane %v3397, 2
  %v3410 = vrot.slane %v3397, 4
  %v3411 = vrot.slane %v3397, 6
  %v3412 = vrot.slane %v3398, 2
  %v3413 = vrot.slane %v3398, 4
  %v3414 = vrot.slane %v3398, 6
  %v3418 = vld [vmem:[%s4] sm:$0xff]
  %v3419 = vld [vmem:[%s4 + $0x8] sm:$0xff]
  %v3420 = vld [vmem:[%s4 + $0x10] sm:$0xff]
  %v3421 = vld [vmem:[%s4 + $0x18] sm:$0xff]
  %v3422 = vld [vmem:[%s4 + $0x20] sm:$0xff]
  %v3423 = vld [vmem:[%s4 + $0x28] sm:$0xff]
  %v3424 = vld [vmem:[%s4 + $0x30] sm:$0xff]
  %v3425 = vld [vmem:[%s4 + $0x38] sm:$0xff]
  %v3426 = vld [vmem:[%s4 + $0x40] sm:$0xff]
  %v3427 = vld [vmem:[%s4 + $0x48] sm:$0xff]
  %v3428 = vld [vmem:[%s4 + $0x50] sm:$0xff]
  %v3429 = vld [vmem:[%s4 + $0x58] sm:$0xff]
  %v3430 = vld [vmem:[%s4 + $0x60] sm:$0xff]
  %v3431 = vld [vmem:[%s4 + $0x68] sm:$0xff]
  %v3432 = vld [vmem:[%s4 + $0x70] sm:$0xff]
  %v3433 = vld [vmem:[%s4 + $0x78] sm:$0xff]
  %v3434 = vld [vmem:[%s4 + $0x80] sm:$0xff]
  %v3435 = vld [vmem:[%s4 + $0x88] sm:$0xff]
  %v3436 = vld [vmem:[%s4 + $0x90] sm:$0xff]
  %v3437 = vld [vmem:[%s4 + $0x98] sm:$0xff]
  %v3438 = vld [vmem:[%s4 + $0xa0] sm:$0xff]
  %v3439 = vld [vmem:[%s4 + $0xa8] sm:$0xff]
  %v3440 = vld [vmem:[%s4 + $0xb0] sm:$0xff]
  %v3441 = vld [vmem:[%s4 + $0xb8] sm:$0xff]
  %v3442 = vld [vmem:[%s4 + $0xc0] sm:$0xff]
  %v3443 = vld [vmem:[%s4 + $0xc8] sm:$0xff]
  %v3444 = vld [vmem:[%s4 + $0xd0] sm:$0xff]
  %v3445 = vld [vmem:[%s4 + $0xd8] sm:$0xff]
  %v3446 = vld [vmem:[%s4 + $0xe0] sm:$0xff]
  %v3447 = vld [vmem:[%s4 + $0xe8] sm:$0xff]
  %v3448 = vld [vmem:[%s4 + $0xf0] sm:$0xff]
  %v3449 = vld [vmem:[%s4 + $0xf8] sm:$0xff]
  %v3450 = vld [vmem:[%s4 + $0x100] sm:$0xff]
  %v3451 = vld [vmem:[%s4 + $0x108] sm:$0xff]
  %v3452 = vld [vmem:[%s4 + $0x110] sm:$0xff]
  %v3453 = vld [vmem:[%s4 + $0x118] sm:$0xff]
  %3454 = vrot.lane.b32.xlu0 %v3396, 32
  %v3455 = vpop.permute.xlu0 %3454
  %3456 = vrot.lane.b32.xlu0 %v3407, 32
  %v3457 = vpop.permute.xlu0 %3456
  %3460 = vrot.lane.b32.xlu0 %v3406, 64
  %v3461 = vpop.permute.xlu0 %3460
  %3462 = vrot.lane.b32.xlu0 %v3408, 64
  %v3463 = vpop.permute.xlu0 %3462
  %3466 = vrot.lane.b32.xlu0 %v3403, 96
  %v3467 = vpop.permute.xlu0 %3466
  %3468 = vrot.lane.b32.xlu0 %v3409, 96
  %v3469 = vpop.permute.xlu0 %3468
  %3472 = vrot.lane.b32.xlu0 %v3403, 32
  %v3473 = vpop.permute.xlu0 %3472
  %3474 = vrot.lane.b32.xlu0 %v3405, 32
  %v3475 = vpop.permute.xlu0 %3474
  %3476 = vrot.lane.b32.xlu0 %v3409, 32
  %v3477 = vpop.permute.xlu0 %3476
  %3478 = vrot.lane.b32.xlu0 %v3411, 32
  %v3479 = vpop.permute.xlu0 %3478
  %3484 = vrot.lane.b32.xlu0 %v3412, 64
  %v3485 = vpop.permute.xlu0 %3484
  %3487 = vrot.lane.b32.xlu0 %v3396, 96
  %v3488 = vpop.permute.xlu0 %3487
  %3489 = vrot.lane.b32.xlu0 %v3407, 96
  %v3490 = vpop.permute.xlu0 %3489
  %3491 = vrot.lane.b32.xlu0 %v3398, 96
  %v3492 = vpop.permute.xlu0 %3491
  %3493 = vrot.lane.b32.xlu0 %v3413, 96
  %v3494 = vpop.permute.xlu0 %3493
  %v3499 = vsel %vm2313, 0.0, %v3455
  %v3500 = vsel %vm2313, %v3406, %v3457
  %v3501 = vsel %vm3064, %v3499, %v3461
  %v3502 = vsel %vm3064, %v3500, %v3463
  %v3503 = vsel %vm3078, %v3065, %v3467
  %v3504 = vsel %vm3078, %v3501, %v2908
  %v3505 = vsel %vm3078, %v3502, %v3469
  %v3506 = vsel %vm2313, %v3395, %v3473
  %v3507 = vsel %vm2313, %v3404, %v3475
  %v3508 = vsel %vm2313, %v3397, %v3477
  %v3509 = vsel %vm2313, %v3410, %v3479
  %v3510 = vsel %vm3064, %v3506, %v2869
  %v3511 = vsel %vm3064, %v3507, %v3461
  %v3512 = vsel %vm3064, %v3508, %v2869
  %v3513 = vsel %vm3064, %v3509, %v3485
  %v3514 = vsel %vm3078, %v3510, %v3488
  %v3515 = vsel %vm3078, %v3511, %v3490
  %v3516 = vsel %vm3078, %v3512, %v3492
  %v3517 = vsel %vm3078, %v3513, %v3494
  %v3525 = vrot.slane %v3514, 6
  %v3526 = vrot.slane %v3406, 4
  %v3527 = vrot.slane %v3515, 6
  %v3528 = vrot.slane %v3408, 4
  %v3529 = vrot.slane %v3516, 6
  %v3530 = vrot.slane %v3412, 4
  %v3531 = vrot.slane %v3517, 6
  %v3532 = vrot.slane %v3414, 4
  %v3533 = vsel %vm3207, %v3079, %v3525
  %v3534 = vsel %vm2563, %v3533, %v3526
  %v3535 = vsel %vm3207, %v3503, %v3527
  %v3536 = vsel %vm2563, %v3535, %v3528
  %v3537 = vsel %vm3207, %v3504, %v3529
  %v3538 = vsel %vm2563, %v3537, %v3530
  %v3539 = vsel %vm3207, %v3505, %v3531
  %v3540 = vsel %vm2563, %v3539, %v3532
  %v3541 = vperm.slane %v44, 2
  %3542 = vst [vmem:[#allocation1] ss:$4 sm:$0xff] %v3534
  %s3543 = scalar_lea.vmem [#allocation1], 1
  %3544 = vst [vmem:[%s3543] ss:$4 sm:$0xff] %v3536
  %s3545 = scalar_lea.vmem [#allocation1], 2
  %3546 = vst [vmem:[%s3545] ss:$4 sm:$0xff] %v3538
  %s3547 = scalar_lea.vmem [#allocation1], 3
  %3548 = vst [vmem:[%s3547] ss:$4 sm:$0xff] %v3540
  %v3549 = vld.sshfl [vmem:[#allocation1] sm:$0xff pattern:$0x73625140]
  %v3550 = vld.sshfl [vmem:[#allocation1 + $0x8] sm:$0xff pattern:$0x73625140]
  %v3551 = vld.sshfl [vmem:[#allocation1 + $0x10] sm:$0xff pattern:$0x73625140]
  %v3554 = vsel %vm2313, %v3551, 0
  %3556 = vmatpush.msra.mxu0 %v3433
  %3557 = vmatpush.msra.mxu0 %v3432
  %3558 = vmatpush.msra.mxu0 %v3431
  %3559 = vmatpush.msra.mxu0 %v3430
  %3560 = vmatpush.msra.mxu0 %v3429
  %3561 = vmatpush.msra.mxu0 %v3428
  %3562 = vmatpush.msra.mxu0 %v3427
  %3563 = vmatpush.msra.mxu0 %v3426
  %3564 = vmatpush.msra.mxu0 %v3425
  %3565 = vmatpush.msra.mxu0 %v3424
  %3566 = vmatpush.msra.mxu0 %v3423
  %3567 = vmatpush.msra.mxu0 %v3422
  %3568 = vmatpush.msra.mxu0 %v3421
  %3569 = vmatpush.msra.mxu0 %v3420
  %3570 = vmatpush.msra.mxu0 %v3419
  %3571 = vmatpush.msra.mxu0 %v3418
  %3572 = vmatmul.f32.gmra.mxu0 %v3549
  %v3573 = vpop.f32.mrf.mxu0
  %v3574 = vadd.f32 %v3541, %v3573
  %3575 = vdwg.mxu0
  %3576 = vmatpush.msra.mxu0 %v3449
  %3577 = vmatpush.msra.mxu0 %v3448
  %3578 = vmatpush.msra.mxu0 %v3447
  %3579 = vmatpush.msra.mxu0 %v3446
  %3580 = vmatpush.msra.mxu0 %v3445
  %3581 = vmatpush.msra.mxu0 %v3444
  %3582 = vmatpush.msra.mxu0 %v3443
  %3583 = vmatpush.msra.mxu0 %v3442
  %3584 = vmatpush.msra.mxu0 %v3441
  %3585 = vmatpush.msra.mxu0 %v3440
  %3586 = vmatpush.msra.mxu0 %v3439
  %3587 = vmatpush.msra.mxu0 %v3438
  %3588 = vmatpush.msra.mxu0 %v3437
  %3589 = vmatpush.msra.mxu0 %v3436
  %3590 = vmatpush.msra.mxu0 %v3435
  %3591 = vmatpush.msra.mxu0 %v3434
  %3592 = vmatmul.f32.gmra.mxu0 %v3550
  %v3593 = vpop.f32.mrf.mxu0
  %v3594 = vadd.f32 %v3574, %v3593
  %3595 = vdwg.mxu0
  %3596 = vmatpush.msra.mxu0 0.0
  %3597 = vmatpush.msra.mxu0 0.0
  %3598 = vmatpush.msra.mxu0 0.0
  %3599 = vmatpush.msra.mxu0 0.0
  %3600 = vmatpush.msra.mxu0 0.0
  %3601 = vmatpush.msra.mxu0 0.0
  %3602 = vmatpush.msra.mxu0 0.0
  %3603 = vmatpush.msra.mxu0 0.0
  %3604 = vmatpush.msra.mxu0 0.0
  %3605 = vmatpush.msra.mxu0 0.0
  %3606 = vmatpush.msra.mxu0 0.0
  %3607 = vmatpush.msra.mxu0 0.0
  %3608 = vmatpush.msra.mxu0 %v3453
  %3609 = vmatpush.msra.mxu0 %v3452
  %3610 = vmatpush.msra.mxu0 %v3451
  %3611 = vmatpush.msra.mxu0 %v3450
  %3612 = vmatmul.f32.gmra.mxu0 %v3554
  %v3613 = vpop.f32.mrf.mxu0
  %v3614 = vadd.f32 %v3594, %v3613
  %3615 = vdwg.mxu0
  %vm3616 = vcmp.gt.f32.partialorder %v3614, 0.0
  %v3617 = vmul.f32 %v3614, 1.442695
  %v3618 = vpow.pop %v3617
  %v3619 = vsub.f32 %v3618, 1.0
  %v3620 = vsel %vm3616, %v3614, %v3619
  %v3622 = vrot.slane %v3620, 2
  %v3623 = vrot.slane %v3620, 4
  %v3624 = vrot.slane %v3620, 6
  %v3625 = vld [vmem:[%s5] sm:$0xff]
  %v3626 = vld [vmem:[%s5 + $0x8] sm:$0xff]
  %v3627 = vld [vmem:[%s5 + $0x10] sm:$0xff]
  %v3628 = vld [vmem:[%s5 + $0x18] sm:$0xff]
  %v3629 = vld [vmem:[%s5 + $0x20] sm:$0xff]
  %v3630 = vld [vmem:[%s5 + $0x28] sm:$0xff]
  %v3631 = vld [vmem:[%s5 + $0x30] sm:$0xff]
  %v3632 = vld [vmem:[%s5 + $0x38] sm:$0xff]
  %v3633 = vld [vmem:[%s5 + $0x40] sm:$0xff]
  %v3634 = vld [vmem:[%s5 + $0x48] sm:$0xff]
  %v3635 = vld [vmem:[%s5 + $0x50] sm:$0xff]
  %v3636 = vld [vmem:[%s5 + $0x58] sm:$0xff]
  %v3637 = vld [vmem:[%s5 + $0x60] sm:$0xff]
  %v3638 = vld [vmem:[%s5 + $0x68] sm:$0xff]
  %v3639 = vld [vmem:[%s5 + $0x70] sm:$0xff]
  %v3640 = vld [vmem:[%s5 + $0x78] sm:$0xff]
  %v3641 = vld [vmem:[%s5 + $0x80] sm:$0xff]
  %v3642 = vld [vmem:[%s5 + $0x88] sm:$0xff]
  %v3643 = vld [vmem:[%s5 + $0x90] sm:$0xff]
  %v3644 = vld [vmem:[%s5 + $0x98] sm:$0xff]
  %v3645 = vld [vmem:[%s5 + $0xa0] sm:$0xff]
  %v3646 = vld [vmem:[%s5 + $0xa8] sm:$0xff]
  %v3647 = vld [vmem:[%s5 + $0xb0] sm:$0xff]
  %v3648 = vld [vmem:[%s5 + $0xb8] sm:$0xff]
  %v3649 = vld [vmem:[%s5 + $0xc0] sm:$0xff]
  %v3650 = vld [vmem:[%s5 + $0xc8] sm:$0xff]
  %v3651 = vld [vmem:[%s5 + $0xd0] sm:$0xff]
  %v3652 = vld [vmem:[%s5 + $0xd8] sm:$0xff]
  %v3653 = vld [vmem:[%s5 + $0xe0] sm:$0xff]
  %v3654 = vld [vmem:[%s5 + $0xe8] sm:$0xff]
  %v3655 = vld [vmem:[%s5 + $0xf0] sm:$0xff]
  %v3656 = vld [vmem:[%s5 + $0xf8] sm:$0xff]
  %v3657 = vld [vmem:[%s5 + $0x100] sm:$0xff]
  %v3658 = vld [vmem:[%s5 + $0x108] sm:$0xff]
  %v3659 = vld [vmem:[%s5 + $0x110] sm:$0xff]
  %v3660 = vld [vmem:[%s5 + $0x118] sm:$0xff]
  %3661 = vrot.lane.b32.xlu0 %v3622, 32
  %v3662 = vpop.permute.xlu0 %3661
  %3664 = vrot.lane.b32.xlu0 %v3623, 96
  %v3665 = vpop.permute.xlu0 %3664
  %v3667 = vsel %vm2313, %v3620, %v3662
  %v3668 = vsel %vm3064, %v3667, %v2869
  %v3669 = vsel %vm3078, %v3668, %v3665
  %v3670 = vperm.slane %v44, 3
  %v3671 = vsel %vm2313, %v3624, 0
  %3673 = vmatpush.msra.mxu0 %v3640
  %3674 = vmatpush.msra.mxu0 %v3639
  %3675 = vmatpush.msra.mxu0 %v3638
  %3676 = vmatpush.msra.mxu0 %v3637
  %3677 = vmatpush.msra.mxu0 %v3636
  %3678 = vmatpush.msra.mxu0 %v3635
  %3679 = vmatpush.msra.mxu0 %v3634
  %3680 = vmatpush.msra.mxu0 %v3633
  %3681 = vmatpush.msra.mxu0 %v3632
  %3682 = vmatpush.msra.mxu0 %v3631
  %3683 = vmatpush.msra.mxu0 %v3630
  %3684 = vmatpush.msra.mxu0 %v3629
  %3685 = vmatpush.msra.mxu0 %v3628
  %3686 = vmatpush.msra.mxu0 %v3627
  %3687 = vmatpush.msra.mxu0 %v3626
  %3688 = vmatpush.msra.mxu0 %v3625
  %3689 = vmatmul.f32.gmra.mxu0 %v3079
  %v3690 = vpop.f32.mrf.mxu0
  %v3691 = vadd.f32 %v3670, %v3690
  %3692 = vdwg.mxu0
  %3693 = vmatpush.msra.mxu0 %v3656
  %3694 = vmatpush.msra.mxu0 %v3655
  %3695 = vmatpush.msra.mxu0 %v3654
  %3696 = vmatpush.msra.mxu0 %v3653
  %3697 = vmatpush.msra.mxu0 %v3652
  %3698 = vmatpush.msra.mxu0 %v3651
  %3699 = vmatpush.msra.mxu0 %v3650
  %3700 = vmatpush.msra.mxu0 %v3649
  %3701 = vmatpush.msra.mxu0 %v3648
  %3702 = vmatpush.msra.mxu0 %v3647
  %3703 = vmatpush.msra.mxu0 %v3646
  %3704 = vmatpush.msra.mxu0 %v3645
  %3705 = vmatpush.msra.mxu0 %v3644
  %3706 = vmatpush.msra.mxu0 %v3643
  %3707 = vmatpush.msra.mxu0 %v3642
  %3708 = vmatpush.msra.mxu0 %v3641
  %3709 = vmatmul.f32.gmra.mxu0 %v3669
  %v3710 = vpop.f32.mrf.mxu0
  %v3711 = vadd.f32 %v3691, %v3710
  %3712 = vdwg.mxu0
  %3713 = vmatpush.msra.mxu0 0.0
  %3714 = vmatpush.msra.mxu0 0.0
  %3715 = vmatpush.msra.mxu0 0.0
  %3716 = vmatpush.msra.mxu0 0.0
  %3717 = vmatpush.msra.mxu0 0.0
  %3718 = vmatpush.msra.mxu0 0.0
  %3719 = vmatpush.msra.mxu0 0.0
  %3720 = vmatpush.msra.mxu0 0.0
  %3721 = vmatpush.msra.mxu0 0.0
  %3722 = vmatpush.msra.mxu0 0.0
  %3723 = vmatpush.msra.mxu0 0.0
  %3724 = vmatpush.msra.mxu0 0.0
  %3725 = vmatpush.msra.mxu0 %v3660
  %3726 = vmatpush.msra.mxu0 %v3659
  %3727 = vmatpush.msra.mxu0 %v3658
  %3728 = vmatpush.msra.mxu0 %v3657
  %3729 = vmatmul.f32.gmra.mxu0 %v3671
  %v3730 = vpop.f32.mrf.mxu0
  %v3731 = vadd.f32 %v3711, %v3730
  %3732 = vdwg.mxu0
  %vm3733 = vcmp.gt.f32.partialorder %v3731, 0.0
  %v3734 = vmul.f32 %v3731, 1.442695
  %v3735 = vpow.pop %v3734
  %v3736 = vsub.f32 %v3735, 1.0
  %v3737 = vsel %vm3733, %v3731, %v3736
  %v3738 = vld [vmem:[%s1] sm:$0x3]
  %v3739 = vld [vmem:[%s7] sm:$0xff]
  %v3740 = vld [vmem:[%s7 + $0x8] sm:$0xff]
  %v3741 = vld [vmem:[%s7 + $0x10] sm:$0xff]
  %v3742 = vld [vmem:[%s7 + $0x18] sm:$0xff]
  %v3744 = vsel %vm2313, %v3737, 0
  %3746 = vmatpush.msra.mxu0 0.0
  %3747 = vmatpush.msra.mxu0 0.0
  %3748 = vmatpush.msra.mxu0 0.0
  %3749 = vmatpush.msra.mxu0 0.0
  %3750 = vmatpush.msra.mxu0 0.0
  %3751 = vmatpush.msra.mxu0 0.0
  %3752 = vmatpush.msra.mxu0 0.0
  %3753 = vmatpush.msra.mxu0 0.0
  %3754 = vmatpush.msra.mxu0 0.0
  %3755 = vmatpush.msra.mxu0 0.0
  %3756 = vmatpush.msra.mxu0 0.0
  %3757 = vmatpush.msra.mxu0 0.0
  %3758 = vmatpush.msra.mxu0 %v3742
  %3759 = vmatpush.msra.mxu0 %v3741
  %3760 = vmatpush.msra.mxu0 %v3740
  %3761 = vmatpush.msra.mxu0 %v3739
  %3762 = vmatmul.f32.gmra.mxu0 %v3744
  %v3763 = vpop.f32.mrf.mxu0
  %v3764 = vadd.f32 0.0, %v3763
  %3765 = vdwg.mxu0
  %v3766 = vld [vmem:[%s8] sm:$0xff]
  %v3767 = vld [vmem:[%s8 + $0x8] sm:$0xff]
  %v3768 = vld [vmem:[%s8 + $0x10] sm:$0xff]
  %v3769 = vld [vmem:[%s8 + $0x18] sm:$0xff]
  %v3771 = vsel %vm2313, %v3738, 0
  %3773 = vmatpush.msra.mxu0 0.0
  %3774 = vmatpush.msra.mxu0 0.0
  %3775 = vmatpush.msra.mxu0 0.0
  %3776 = vmatpush.msra.mxu0 0.0
  %3777 = vmatpush.msra.mxu0 0.0
  %3778 = vmatpush.msra.mxu0 0.0
  %3779 = vmatpush.msra.mxu0 0.0
  %3780 = vmatpush.msra.mxu0 0.0
  %3781 = vmatpush.msra.mxu0 0.0
  %3782 = vmatpush.msra.mxu0 0.0
  %3783 = vmatpush.msra.mxu0 0.0
  %3784 = vmatpush.msra.mxu0 0.0
  %3785 = vmatpush.msra.mxu0 %v3769
  %3786 = vmatpush.msra.mxu0 %v3768
  %3787 = vmatpush.msra.mxu0 %v3767
  %3788 = vmatpush.msra.mxu0 %v3766
  %3789 = vmatmul.f32.gmra.mxu0 %v3771
  %v3790 = vpop.f32.mrf.mxu0
  %v3791 = vadd.f32 0.0, %v3790
  %3792 = vdwg.mxu0
  %v3793 = vld [vmem:[%s9] sm:$0x1]
  %v3794 = vadd.f32 %v3764, %v3791
  %v3796 = vperm.slane %v3793, 0
  %v3798 = vadd.f32 %v3794, %v3796
  %v3799 = vxor.u32 %v3798, 2147483648
  %v3800 = vmul.f32 %v3799, 1.442695
  %v3801 = vpow.pop %v3800
  %v3802 = vadd.f32 %v3801, 1.0
  %v3803 = vrcp.pop %v3802
  %v3804 = vmul.f32 %v3802, %v3803
  %v3805 = vsub.f32 1.0, %v3804
  %v3806 = vmul.f32 %v3803, %v3805
  %v3807 = vadd.f32 %v3803, %v3806
  %vm3808 = vweird.f32 %v3802
  %vm3809 = vweird.f32 %v3803
  %vm3810 = vmor %vm3808, %vm3809
  %v3811 = vsel %vm3810, %v3803, %v3807
  %v3812 = vand.u32 2147483647, %v3802
  %vm3813 = vcmp.eq.f32.partialorder %v3812, 8.507059e+37
  %v3814 = vand.u32 %v3802, 2147483648
  %v3815 = vor.u32 1.1754944e-38, %v3814
  %v3816 = vsel %vm3813, %v3815, %v3811
  %v3817 = vmul.f32 1.0, %v3816
  %v3818 = vadd.f32 %v3764, %v3796
  %v3819 = vld [vmem:[%s10] sm:$0x1]
  %v3821 = vperm.slane %v3819, 0
  %3822 = vrot.lane.b32.xlu0 %v3821, 64
  %v3823 = vpop.permute.xlu0 %3822
  %v3825 = vadd.f32 %v3791, %v3823
  %3827 = vrot.lane.b32.xlu0 %v3825, 64
  %v3828 = vpop.permute.xlu0 %3827
  %v3830 = vmul.f32 %v3817, %v3828
  %3832 = vrot.lane.b32.xlu0 %v3830, 64
  %v3833 = vpop.permute.xlu0 %3832
  %v3835 = vadd.f32 %v3818, %v3833
  %v3836 = vtanh.pop %v3835
  %v3837 = vsub.f32 1.0, %v3817
  %3839 = vrot.lane.b32.xlu0 %v3836, 96
  %v3840 = vpop.permute.xlu0 %3839
  %v3842 = vmul.f32 %v3837, %v3840
  %3843 = vrot.lane.b32.xlu0 %v3738, 32
  %v3844 = vpop.permute.xlu0 %3843
  %v3846 = vmul.f32 %v3817, %v3844
  %v3847 = vadd.f32 %v3842, %v3846
  %v3848 = vld [vmem:[%s11] sm:$0xff]
  %v3849 = vld [vmem:[%s11 + $0x8] sm:$0xff]
  %v3850 = vld [vmem:[%s11 + $0x10] sm:$0xff]
  %v3851 = vld [vmem:[%s11 + $0x18] sm:$0xff]
  %v3852 = vld [vmem:[%s12] sm:$0x1]
  %v3854 = vperm.slane %v3852, 0
  %3857 = vrot.lane.b32.xlu0 %v3847, 96
  %v3858 = vpop.permute.xlu0 %3857
  %v3859 = vsel %vm2313, %v3858, 0
  %3861 = vmatpush.msra.mxu0 0.0
  %3862 = vmatpush.msra.mxu0 0.0
  %3863 = vmatpush.msra.mxu0 0.0
  %3864 = vmatpush.msra.mxu0 0.0
  %3865 = vmatpush.msra.mxu0 0.0
  %3866 = vmatpush.msra.mxu0 0.0
  %3867 = vmatpush.msra.mxu0 0.0
  %3868 = vmatpush.msra.mxu0 0.0
  %3869 = vmatpush.msra.mxu0 0.0
  %3870 = vmatpush.msra.mxu0 0.0
  %3871 = vmatpush.msra.mxu0 0.0
  %3872 = vmatpush.msra.mxu0 0.0
  %3873 = vmatpush.msra.mxu0 %v3851
  %3874 = vmatpush.msra.mxu0 %v3850
  %3875 = vmatpush.msra.mxu0 %v3849
  %3876 = vmatpush.msra.mxu0 %v3848
  %3877 = vmatmul.f32.gmra.mxu0 %v3859
  %v3878 = vpop.f32.mrf.mxu0
  %v3879 = vadd.f32 %v3854, %v3878
  %3880 = vdwg.mxu0
  %3881 = vst [vmem:[%s13] sm:$0x3] %v3879
  // Predicated region
  $region54: #{nn_policy_forward.1} parent=0 // pred_check
    _
  $region55: #{nn_policy_forward.1} parent=0 // pred_check_branch
    %3883 = sbr.rel (0) target = $region57
  $region56: #{nn_policy_forward.1} parent=0 // pred_region
    _
  $region57: #{nn_policy_forward.1} parent=0 // pred_fallthru
    _
  // Predicated region
  $region58: #{nn_policy_forward.1} parent=0 // pred_check
    _
  $region59: #{nn_policy_forward.1} parent=0 // pred_check_branch
    %3885 = sbr.rel (0) target = $region61
  $region60: #{nn_policy_forward.1} parent=0 // pred_region
    _
  $region61: #{nn_policy_forward.1} parent=0 // pred_fallthru
    _

</llo_original>
